<compile_context>
chip_gen: v7x
topology: tpu7x:2x2x1
jax: 0.10.0
libtpu: 0.0.40
codegen_flags: <defaults>
</compile_context>

<pallas_src>
import jax
import jax.numpy as jnp
from jax import lax
from jax.experimental import pallas as pl
from jax.experimental.pallas import tpu as pltpu


def _basic_block_kernel(x_ref, w1_ref, w2_ref, s1_ref, b1_ref, s2_ref, b2_ref,
                        o_ref, pad_ref):
    # x_ref  : (1, H, W, C)    f32   activation (also used as the residual)
    # w1_ref : (3, 3*C, P)     bf16  conv1 weights, kw folded into contraction
    # w2_ref : (3, 3*P, P)     bf16  conv2 weights, kw folded into contraction
    # s*/b*  : (1, P)          f32   folded BN scale / bias
    # o_ref  : (1, H, W, P)    f32
    # pad_ref: (H+2, W+2, C)   bf16  padded conv input, reused by both convs
    H, W, C = x_ref.shape[1], x_ref.shape[2], x_ref.shape[3]
    P = w1_ref.shape[2]

    zero_row = jnp.zeros((1, W + 2, C), pad_ref.dtype)
    zero_col = jnp.zeros((H, 1, C), pad_ref.dtype)

    # Top/bottom halo rows only: O(W) work, done every step so the kernel is
    # correct even when the batch axis is split across TensorCores (each core
    # has its own scratch instance).
    pad_ref[0:1] = zero_row
    pad_ref[H + 1:H + 2] = zero_row

    def write_interior(val_hwc):
        # Full-width, sublane-aligned store: the side halo columns are part of
        # the stored row block, so no masked [1:W+1] interior write is needed.
        pad_ref[1:H + 1] = jnp.concatenate(
            [zero_col, val_hwc.astype(pad_ref.dtype), zero_col], axis=1)

    def conv3x3(w_ref, cin):
        # 3 matmuls with K = 3*cin: the three kw taps are fused into the
        # contraction dimension (fewer, fatter MXU pushes).
        acc = None
        for kh in range(3):
            rows = pad_ref[kh:kh + H]                       # (H, W+2, cin) bf16
            patch = jnp.concatenate(
                [rows[:, 0:W], rows[:, 1:W + 1], rows[:, 2:W + 2]],
                axis=-1).reshape(H * W, 3 * cin)            # (H*W, 3*cin) bf16
            part = jnp.dot(patch, w_ref[kh],
                           preferred_element_type=jnp.float32)
            acc = part if acc is None else acc + part
        return acc                                          # (H*W, P) f32

    # ---- conv1 -> bn1 -> relu ----
    write_interior(x_ref[0])
    out1 = conv3x3(w1_ref, C)
    out1 = jnp.maximum(out1 * s1_ref[0] + b1_ref[0], 0.0)   # f32 epilogue

    # ---- conv2 -> bn2 -> +residual -> relu ----
    write_interior(out1.reshape(H, W, P))                   # Cin == Cout: reuse scratch
    out2 = conv3x3(w2_ref, P)
    out2 = out2 * s2_ref[0] + b2_ref[0]
    res = x_ref[0].reshape(H * W, C)                        # residual in f32
    out = jnp.maximum(out2 + res, 0.0)
    o_ref[0] = out.reshape(H, W, P).astype(o_ref.dtype)


def _vmem_limit_bytes(H, W, C, P):
    f32, bf16 = 4, 2
    est = (
        2 * H * W * C * f32                      # double-buffered input block
        + 2 * H * W * P * f32                    # double-buffered output block
        + 2 * 3 * 3 * C * P * bf16               # conv1 weights
        + 2 * 3 * 3 * P * P * bf16               # conv2 weights
        + (H + 2) * (W + 2) * C * bf16           # padded scratch
        + 8 * H * W * max(3 * C, P) * f32        # patches / accumulators / temps
    )
    est = int(1.5 * est)
    return max(32 * 1024 * 1024, min(est, 96 * 1024 * 1024))


def basic_block_forward(x_nchw, w1, w2, bn1_scale, bn1_bias, bn2_scale, bn2_bias):
    """x_nchw: (N, C, H, W) float32.  Conv weights in HWIO: (3, 3, Cin, Cout)."""
    N, C, H, W = x_nchw.shape
    P = w1.shape[-1]
    assert C == P, "downsample=None + stride=1 requires inplanes == planes"

    # Single copy of the activation (NCHW -> NHWC); padding happens in-kernel.
    x = jnp.transpose(x_nchw, (0, 2, 3, 1)).astype(jnp.float32)

    # Fold kw into the contraction dim and cast weights to bf16 for the MXU.
    w1k = w1.astype(jnp.bfloat16).reshape(3, 3 * C, P)
    w2k = w2.astype(jnp.bfloat16).reshape(3, 3 * P, P)

    s1 = bn1_scale.reshape(1, P).astype(jnp.float32)
    b1 = bn1_bias.reshape(1, P).astype(jnp.float32)
    s2 = bn2_scale.reshape(1, P).astype(jnp.float32)
    b2 = bn2_bias.reshape(1, P).astype(jnp.float32)

    out_nhwc = pl.pallas_call(
        _basic_block_kernel,
        out_shape=jax.ShapeDtypeStruct((N, H, W, P), jnp.float32),
        grid_spec=pltpu.PrefetchScalarGridSpec(
            num_scalar_prefetch=0,
            grid=(N,),
            in_specs=[
                pl.BlockSpec((1, H, W, C), lambda n: (n, 0, 0, 0)),
                pl.BlockSpec((3, 3 * C, P), lambda n: (0, 0, 0)),
                pl.BlockSpec((3, 3 * P, P), lambda n: (0, 0, 0)),
                pl.BlockSpec((1, P), lambda n: (0, 0)),
                pl.BlockSpec((1, P), lambda n: (0, 0)),
                pl.BlockSpec((1, P), lambda n: (0, 0)),
                pl.BlockSpec((1, P), lambda n: (0, 0)),
            ],
            out_specs=pl.BlockSpec((1, H, W, P), lambda n: (n, 0, 0, 0)),
            scratch_shapes=[pltpu.VMEM((H + 2, W + 2, C), jnp.bfloat16)],
        ),
        compiler_params=pltpu.CompilerParams(
            dimension_semantics=("parallel",),
            vmem_limit_bytes=_vmem_limit_bytes(H, W, C, P)),
    )(x, w1k, w2k, s1, b1, s2, b2)

    # TODO(synk): for large H*W (e.g. 224x224x64 on v7x's 64 MiB VMEM/TC), add
    # a halo'd row-tile grid axis instead of whole-image blocks.
    return jnp.transpose(out_nhwc, (0, 3, 1, 2))


def _reference_forward_f32(x, w1, w2, s1, b1, s2, b2):
    """Pure-f32 reference (NCHW), matches the PyTorch BasicBlock in eval mode."""
    dn = lax.conv_dimension_numbers(x.shape, w1.shape, ("NCHW", "HWIO", "NCHW"))
    out = lax.conv_general_dilated(x, w1, (1, 1), ((1, 1), (1, 1)),
                                   dimension_numbers=dn)
    out = out * s1[None, :, None, None] + b1[None, :, None, None]
    out = jnp.maximum(out, 0.0)
    out = lax.conv_general_dilated(out, w2, (1, 1), ((1, 1), (1, 1)),
                                   dimension_numbers=dn)
    out = out * s2[None, :, None, None] + b2[None, :, None, None]
    return jnp.maximum(out + x, 0.0)


def _reference_forward_mixed(x, w1, w2, s1, b1, s2, b2):
    """Mirrors the kernel's numerics: bf16 conv inputs, f32 accumulation,
    f32 BN / residual / ReLU."""
    dn = lax.conv_dimension_numbers(x.shape, w1.shape, ("NCHW", "HWIO", "NCHW"))
    out = lax.conv_general_dilated(
        x.astype(jnp.bfloat16), w1.astype(jnp.bfloat16), (1, 1),
        ((1, 1), (1, 1)), dimension_numbers=dn,
        preferred_element_type=jnp.float32)
    out = out * s1[None, :, None, None] + b1[None, :, None, None]
    out = jnp.maximum(out, 0.0)
    out = lax.conv_general_dilated(
        out.astype(jnp.bfloat16), w2.astype(jnp.bfloat16), (1, 1),
        ((1, 1), (1, 1)), dimension_numbers=dn,
        preferred_element_type=jnp.float32)
    out = out * s2[None, :, None, None] + b2[None, :, None, None]
    return jnp.maximum(out + x, 0.0)


if __name__ == "__main__":
    # Small shapes consistent with the module: inplanes = planes = 4,
    # stride = 1, downsample = None.
    N, C, H, W = 2, 4, 16, 16
    P = C
    eps = 1e-5

    key = jax.random.PRNGKey(0)
    keys = jax.random.split(key, 8)

    x = jax.random.normal(keys[0], (N, C, H, W), jnp.float32)
    # Conv weights stored HWIO: (kh, kw, in, out)
    w1 = jax.random.normal(keys[1], (3, 3, C, P), jnp.float32) * 0.1
    w2 = jax.random.normal(keys[2], (3, 3, P, P), jnp.float32) * 0.1

    # BatchNorm (inference mode) parameters, folded to scale/bias.
    gamma1 = 1.0 + 0.1 * jax.random.normal(keys[3], (P,), jnp.float32)
    beta1 = 0.1 * jax.random.normal(keys[4], (P,), jnp.float32)
    rmean1 = 0.1 * jax.random.normal(keys[5], (P,), jnp.float32)
    rvar1 = jnp.abs(1.0 + 0.1 * jax.random.normal(keys[6], (P,), jnp.float32))
    gamma2 = jnp.ones((P,), jnp.float32)
    beta2 = jnp.zeros((P,), jnp.float32)
    rmean2 = 0.05 * jax.random.normal(keys[7], (P,), jnp.float32)
    rvar2 = jnp.ones((P,), jnp.float32)

    s1 = gamma1 / jnp.sqrt(rvar1 + eps)
    b1 = beta1 - rmean1 * s1
    s2 = gamma2 / jnp.sqrt(rvar2 + eps)
    b2 = beta2 - rmean2 * s2

    out = jax.block_until_ready(basic_block_forward(x, w1, w2, s1, b1, s2, b2))
    assert out.shape == (N, P, H, W)

    ref_mixed = _reference_forward_mixed(x, w1, w2, s1, b1, s2, b2)
    ref_f32 = _reference_forward_f32(x, w1, w2, s1, b1, s2, b2)

    err_mixed = float(jnp.max(jnp.abs(out - ref_mixed)))
    err_f32 = float(jnp.max(jnp.abs(out - ref_f32)))
    # Tight check vs. a reference that mirrors the kernel's bf16-matmul /
    # f32-accumulation numerics; looser check vs. the pure-f32 module.
    assert jnp.allclose(out, ref_mixed, atol=5e-3, rtol=5e-3), \
        f"mixed-precision max abs err = {err_mixed}"
    assert jnp.allclose(out, ref_f32, atol=2e-2, rtol=2e-2), \
        f"f32 max abs err = {err_f32}"

    print("KERNEL_OK")
</pallas_src>

<mosaic_0001>
module attributes {stable_mosaic.version = 11 : i64} {
  func.func @_basic_block_kernel(%arg0: i32, %arg1: memref<1x16x16x4xf32, #tpu.memory_space<vmem>>, %arg2: memref<3x12x4xbf16, #tpu.memory_space<vmem>>, %arg3: memref<3x12x4xbf16, #tpu.memory_space<vmem>>, %arg4: memref<1x4xf32, #tpu.memory_space<vmem>>, %arg5: memref<1x4xf32, #tpu.memory_space<vmem>>, %arg6: memref<1x4xf32, #tpu.memory_space<vmem>>, %arg7: memref<1x4xf32, #tpu.memory_space<vmem>>, %arg8: memref<1x16x16x4xf32, #tpu.memory_space<vmem>>, %arg9: memref<18x18x4xbf16, #tpu.memory_space<vmem>>) attributes {dimension_semantics = [#tpu.dimension_semantics<parallel>], iteration_bounds = array<i64: 2>, scalar_prefetch = 0 : i64, scratch_operands = 1 : i64, tpu.core_type = #tpu.core_type<tc>, window_params = [{transform_indices = @transform_0, window_bounds = array<i64: 1, 16, 16, 4>}, {pipeline_mode = #tpu.pipeline_mode<synchronous>, transform_indices = @transform_1, window_bounds = array<i64: 3, 12, 4>}, {pipeline_mode = #tpu.pipeline_mode<synchronous>, transform_indices = @transform_2, window_bounds = array<i64: 3, 12, 4>}, {pipeline_mode = #tpu.pipeline_mode<synchronous>, transform_indices = @transform_3, window_bounds = array<i64: 1, 4>}, {pipeline_mode = #tpu.pipeline_mode<synchronous>, transform_indices = @transform_4, window_bounds = array<i64: 1, 4>}, {pipeline_mode = #tpu.pipeline_mode<synchronous>, transform_indices = @transform_5, window_bounds = array<i64: 1, 4>}, {pipeline_mode = #tpu.pipeline_mode<synchronous>, transform_indices = @transform_6, window_bounds = array<i64: 1, 4>}, {transform_indices = @transform_7, window_bounds = array<i64: 1, 16, 16, 4>}]} {
    %cst = arith.constant 0.000000e+00 : bf16
    %0 = vector.broadcast %cst : bf16 to vector<1x18x4xbf16>
    %cst_0 = arith.constant 0.000000e+00 : bf16
    %1 = vector.broadcast %cst_0 : bf16 to vector<16x1x4xbf16>
    %c0 = arith.constant 0 : index
    %c0_1 = arith.constant 0 : index
    %c0_2 = arith.constant 0 : index
    %2 = vector.load %arg9[%c0, %c0_1, %c0_2] : memref<18x18x4xbf16, #tpu.memory_space<vmem>>, vector<1x18x4xbf16>
    tpu.vector_store %arg9[%c0, %c0_1, %c0_2], %0 {strides = array<i32>} : memref<18x18x4xbf16, #tpu.memory_space<vmem>>, vector<1x18x4xbf16>,
    %c17 = arith.constant 17 : index
    %c0_3 = arith.constant 0 : index
    %c0_4 = arith.constant 0 : index
    %3 = vector.load %arg9[%c17, %c0_3, %c0_4] : memref<18x18x4xbf16, #tpu.memory_space<vmem>>, vector<1x18x4xbf16>
    tpu.vector_store %arg9[%c17, %c0_3, %c0_4], %0 {strides = array<i32>} : memref<18x18x4xbf16, #tpu.memory_space<vmem>>, vector<1x18x4xbf16>,
    %c0_5 = arith.constant 0 : index
    %c0_6 = arith.constant 0 : index
    %c0_7 = arith.constant 0 : index
    %c0_8 = arith.constant 0 : index
    %4 = vector.load %arg1[%c0_5, %c0_6, %c0_7, %c0_8] : memref<1x16x16x4xf32, #tpu.memory_space<vmem>>, vector<1x16x16x4xf32>
    %5 = vector.shape_cast %4 : vector<1x16x16x4xf32> to vector<16x16x4xf32>
    %6 = arith.truncf %5 : vector<16x16x4xf32> to vector<16x16x4xbf16>
    %7 = tpu.concatenate %1, %6, %1 in 1 : vector<16x1x4xbf16>, vector<16x16x4xbf16>, vector<16x1x4xbf16> -> vector<16x18x4xbf16>
    %c1 = arith.constant 1 : index
    %c0_9 = arith.constant 0 : index
    %c0_10 = arith.constant 0 : index
    %8 = vector.load %arg9[%c1, %c0_9, %c0_10] : memref<18x18x4xbf16, #tpu.memory_space<vmem>>, vector<16x18x4xbf16>
    tpu.vector_store %arg9[%c1, %c0_9, %c0_10], %7 {strides = array<i32>} : memref<18x18x4xbf16, #tpu.memory_space<vmem>>, vector<16x18x4xbf16>,
    %c0_11 = arith.constant 0 : index
    %c0_12 = arith.constant 0 : index
    %c0_13 = arith.constant 0 : index
    %9 = vector.load %arg9[%c0_11, %c0_12, %c0_13] : memref<18x18x4xbf16, #tpu.memory_space<vmem>>, vector<16x18x4xbf16>
    %10 = vector.extract_strided_slice %9 {offsets = [0, 0, 0], sizes = [16, 16, 4], strides = [1, 1, 1]} : vector<16x18x4xbf16> to vector<16x16x4xbf16>
    %11 = vector.extract_strided_slice %9 {offsets = [0, 1, 0], sizes = [16, 16, 4], strides = [1, 1, 1]} : vector<16x18x4xbf16> to vector<16x16x4xbf16>
    %12 = vector.extract_strided_slice %9 {offsets = [0, 2, 0], sizes = [16, 16, 4], strides = [1, 1, 1]} : vector<16x18x4xbf16> to vector<16x16x4xbf16>
    %13 = tpu.concatenate %10, %11, %12 in 2 : vector<16x16x4xbf16>, vector<16x16x4xbf16>, vector<16x16x4xbf16> -> vector<16x16x12xbf16>
    %14 = vector.shape_cast %13 : vector<16x16x12xbf16> to vector<256x12xbf16>
    %c0_14 = arith.constant 0 : index
    %c0_15 = arith.constant 0 : index
    %c0_16 = arith.constant 0 : index
    %15 = vector.load %arg2[%c0_14, %c0_15, %c0_16] : memref<3x12x4xbf16, #tpu.memory_space<vmem>>, vector<1x12x4xbf16>
    %16 = vector.shape_cast %15 : vector<1x12x4xbf16> to vector<12x4xbf16>
    %cst_17 = arith.constant dense<0.000000e+00> : vector<256x4xf32>
    %17 = tpu.matmul %14, %16, %cst_17 {dimension_numbers = #tpu.dot_dimension_numbers<[1], [0], [0], [1], [0, 0, 1, 1], [], []>} : vector<256x12xbf16>, vector<12x4xbf16>, vector<256x4xf32> -> vector<256x4xf32>
    %c1_18 = arith.constant 1 : index
    %c0_19 = arith.constant 0 : index
    %c0_20 = arith.constant 0 : index
    %18 = vector.load %arg9[%c1_18, %c0_19, %c0_20] : memref<18x18x4xbf16, #tpu.memory_space<vmem>>, vector<16x18x4xbf16>
    %19 = vector.extract_strided_slice %18 {offsets = [0, 0, 0], sizes = [16, 16, 4], strides = [1, 1, 1]} : vector<16x18x4xbf16> to vector<16x16x4xbf16>
    %20 = vector.extract_strided_slice %18 {offsets = [0, 1, 0], sizes = [16, 16, 4], strides = [1, 1, 1]} : vector<16x18x4xbf16> to vector<16x16x4xbf16>
    %21 = vector.extract_strided_slice %18 {offsets = [0, 2, 0], sizes = [16, 16, 4], strides = [1, 1, 1]} : vector<16x18x4xbf16> to vector<16x16x4xbf16>
    %22 = tpu.concatenate %19, %20, %21 in 2 : vector<16x16x4xbf16>, vector<16x16x4xbf16>, vector<16x16x4xbf16> -> vector<16x16x12xbf16>
    %23 = vector.shape_cast %22 : vector<16x16x12xbf16> to vector<256x12xbf16>
    %c1_21 = arith.constant 1 : index
    %c0_22 = arith.constant 0 : index
    %c0_23 = arith.constant 0 : index
    %24 = vector.load %arg2[%c1_21, %c0_22, %c0_23] : memref<3x12x4xbf16, #tpu.memory_space<vmem>>, vector<1x12x4xbf16>
    %25 = vector.shape_cast %24 : vector<1x12x4xbf16> to vector<12x4xbf16>
    %cst_24 = arith.constant dense<0.000000e+00> : vector<256x4xf32>
    %26 = tpu.matmul %23, %25, %cst_24 {dimension_numbers = #tpu.dot_dimension_numbers<[1], [0], [0], [1], [0, 0, 1, 1], [], []>} : vector<256x12xbf16>, vector<12x4xbf16>, vector<256x4xf32> -> vector<256x4xf32>
    %27 = arith.addf %17, %26 : vector<256x4xf32>
    %c2 = arith.constant 2 : index
    %c0_25 = arith.constant 0 : index
    %c0_26 = arith.constant 0 : index
    %28 = vector.load %arg9[%c2, %c0_25, %c0_26] : memref<18x18x4xbf16, #tpu.memory_space<vmem>>, vector<16x18x4xbf16>
    %29 = vector.extract_strided_slice %28 {offsets = [0, 0, 0], sizes = [16, 16, 4], strides = [1, 1, 1]} : vector<16x18x4xbf16> to vector<16x16x4xbf16>
    %30 = vector.extract_strided_slice %28 {offsets = [0, 1, 0], sizes = [16, 16, 4], strides = [1, 1, 1]} : vector<16x18x4xbf16> to vector<16x16x4xbf16>
    %31 = vector.extract_strided_slice %28 {offsets = [0, 2, 0], sizes = [16, 16, 4], strides = [1, 1, 1]} : vector<16x18x4xbf16> to vector<16x16x4xbf16>
    %32 = tpu.concatenate %29, %30, %31 in 2 : vector<16x16x4xbf16>, vector<16x16x4xbf16>, vector<16x16x4xbf16> -> vector<16x16x12xbf16>
    %33 = vector.shape_cast %32 : vector<16x16x12xbf16> to vector<256x12xbf16>
    %c2_27 = arith.constant 2 : index
    %c0_28 = arith.constant 0 : index
    %c0_29 = arith.constant 0 : index
    %34 = vector.load %arg2[%c2_27, %c0_28, %c0_29] : memref<3x12x4xbf16, #tpu.memory_space<vmem>>, vector<1x12x4xbf16>
    %35 = vector.shape_cast %34 : vector<1x12x4xbf16> to vector<12x4xbf16>
    %cst_30 = arith.constant dense<0.000000e+00> : vector<256x4xf32>
    %36 = tpu.matmul %33, %35, %cst_30 {dimension_numbers = #tpu.dot_dimension_numbers<[1], [0], [0], [1], [0, 0, 1, 1], [], []>} : vector<256x12xbf16>, vector<12x4xbf16>, vector<256x4xf32> -> vector<256x4xf32>
    %37 = arith.addf %27, %36 : vector<256x4xf32>
    %c0_31 = arith.constant 0 : index
    %c0_32 = arith.constant 0 : index
    %38 = vector.load %arg4[%c0_31, %c0_32] : memref<1x4xf32, #tpu.memory_space<vmem>>, vector<1x4xf32>
    %39 = vector.shape_cast %38 : vector<1x4xf32> to vector<4xf32>
    %40 = vector.shape_cast %39 : vector<4xf32> to vector<1x4xf32>
    %41 = vector.broadcast %40 : vector<1x4xf32> to vector<256x4xf32>
    %42 = arith.mulf %37, %41 : vector<256x4xf32>
    %c0_33 = arith.constant 0 : index
    %c0_34 = arith.constant 0 : index
    %43 = vector.load %arg5[%c0_33, %c0_34] : memref<1x4xf32, #tpu.memory_space<vmem>>, vector<1x4xf32>
    %44 = vector.shape_cast %43 : vector<1x4xf32> to vector<4xf32>
    %45 = vector.shape_cast %44 : vector<4xf32> to vector<1x4xf32>
    %46 = vector.broadcast %45 : vector<1x4xf32> to vector<256x4xf32>
    %47 = arith.addf %42, %46 : vector<256x4xf32>
    %cst_35 = arith.constant 0.000000e+00 : f32
    %48 = vector.broadcast %cst_35 : f32 to vector<256x4xf32>
    %49 = arith.maximumf %47, %48 : vector<256x4xf32>
    %50 = vector.shape_cast %49 : vector<256x4xf32> to vector<16x16x4xf32>
    %51 = arith.truncf %50 : vector<16x16x4xf32> to vector<16x16x4xbf16>
    %52 = tpu.concatenate %1, %51, %1 in 1 : vector<16x1x4xbf16>, vector<16x16x4xbf16>, vector<16x1x4xbf16> -> vector<16x18x4xbf16>
    %c1_36 = arith.constant 1 : index
    %c0_37 = arith.constant 0 : index
    %c0_38 = arith.constant 0 : index
    %53 = vector.load %arg9[%c1_36, %c0_37, %c0_38] : memref<18x18x4xbf16, #tpu.memory_space<vmem>>, vector<16x18x4xbf16>
    tpu.vector_store %arg9[%c1_36, %c0_37, %c0_38], %52 {strides = array<i32>} : memref<18x18x4xbf16, #tpu.memory_space<vmem>>, vector<16x18x4xbf16>,
    %c0_39 = arith.constant 0 : index
    %c0_40 = arith.constant 0 : index
    %c0_41 = arith.constant 0 : index
    %54 = vector.load %arg9[%c0_39, %c0_40, %c0_41] : memref<18x18x4xbf16, #tpu.memory_space<vmem>>, vector<16x18x4xbf16>
    %55 = vector.extract_strided_slice %54 {offsets = [0, 0, 0], sizes = [16, 16, 4], strides = [1, 1, 1]} : vector<16x18x4xbf16> to vector<16x16x4xbf16>
    %56 = vector.extract_strided_slice %54 {offsets = [0, 1, 0], sizes = [16, 16, 4], strides = [1, 1, 1]} : vector<16x18x4xbf16> to vector<16x16x4xbf16>
    %57 = vector.extract_strided_slice %54 {offsets = [0, 2, 0], sizes = [16, 16, 4], strides = [1, 1, 1]} : vector<16x18x4xbf16> to vector<16x16x4xbf16>
    %58 = tpu.concatenate %55, %56, %57 in 2 : vector<16x16x4xbf16>, vector<16x16x4xbf16>, vector<16x16x4xbf16> -> vector<16x16x12xbf16>
    %59 = vector.shape_cast %58 : vector<16x16x12xbf16> to vector<256x12xbf16>
    %c0_42 = arith.constant 0 : index
    %c0_43 = arith.constant 0 : index
    %c0_44 = arith.constant 0 : index
    %60 = vector.load %arg3[%c0_42, %c0_43, %c0_44] : memref<3x12x4xbf16, #tpu.memory_space<vmem>>, vector<1x12x4xbf16>
    %61 = vector.shape_cast %60 : vector<1x12x4xbf16> to vector<12x4xbf16>
    %cst_45 = arith.constant dense<0.000000e+00> : vector<256x4xf32>
    %62 = tpu.matmul %59, %61, %cst_45 {dimension_numbers = #tpu.dot_dimension_numbers<[1], [0], [0], [1], [0, 0, 1, 1], [], []>} : vector<256x12xbf16>, vector<12x4xbf16>, vector<256x4xf32> -> vector<256x4xf32>
    %c1_46 = arith.constant 1 : index
    %c0_47 = arith.constant 0 : index
    %c0_48 = arith.constant 0 : index
    %63 = vector.load %arg9[%c1_46, %c0_47, %c0_48] : memref<18x18x4xbf16, #tpu.memory_space<vmem>>, vector<16x18x4xbf16>
    %64 = vector.extract_strided_slice %63 {offsets = [0, 0, 0], sizes = [16, 16, 4], strides = [1, 1, 1]} : vector<16x18x4xbf16> to vector<16x16x4xbf16>
    %65 = vector.extract_strided_slice %63 {offsets = [0, 1, 0], sizes = [16, 16, 4], strides = [1, 1, 1]} : vector<16x18x4xbf16> to vector<16x16x4xbf16>
    %66 = vector.extract_strided_slice %63 {offsets = [0, 2, 0], sizes = [16, 16, 4], strides = [1, 1, 1]} : vector<16x18x4xbf16> to vector<16x16x4xbf16>
    %67 = tpu.concatenate %64, %65, %66 in 2 : vector<16x16x4xbf16>, vector<16x16x4xbf16>, vector<16x16x4xbf16> -> vector<16x16x12xbf16>
    %68 = vector.shape_cast %67 : vector<16x16x12xbf16> to vector<256x12xbf16>
    %c1_49 = arith.constant 1 : index
    %c0_50 = arith.constant 0 : index
    %c0_51 = arith.constant 0 : index
    %69 = vector.load %arg3[%c1_49, %c0_50, %c0_51] : memref<3x12x4xbf16, #tpu.memory_space<vmem>>, vector<1x12x4xbf16>
    %70 = vector.shape_cast %69 : vector<1x12x4xbf16> to vector<12x4xbf16>
    %cst_52 = arith.constant dense<0.000000e+00> : vector<256x4xf32>
    %71 = tpu.matmul %68, %70, %cst_52 {dimension_numbers = #tpu.dot_dimension_numbers<[1], [0], [0], [1], [0, 0, 1, 1], [], []>} : vector<256x12xbf16>, vector<12x4xbf16>, vector<256x4xf32> -> vector<256x4xf32>
    %72 = arith.addf %62, %71 : vector<256x4xf32>
    %c2_53 = arith.constant 2 : index
    %c0_54 = arith.constant 0 : index
    %c0_55 = arith.constant 0 : index
    %73 = vector.load %arg9[%c2_53, %c0_54, %c0_55] : memref<18x18x4xbf16, #tpu.memory_space<vmem>>, vector<16x18x4xbf16>
    %74 = vector.extract_strided_slice %73 {offsets = [0, 0, 0], sizes = [16, 16, 4], strides = [1, 1, 1]} : vector<16x18x4xbf16> to vector<16x16x4xbf16>
    %75 = vector.extract_strided_slice %73 {offsets = [0, 1, 0], sizes = [16, 16, 4], strides = [1, 1, 1]} : vector<16x18x4xbf16> to vector<16x16x4xbf16>
    %76 = vector.extract_strided_slice %73 {offsets = [0, 2, 0], sizes = [16, 16, 4], strides = [1, 1, 1]} : vector<16x18x4xbf16> to vector<16x16x4xbf16>
    %77 = tpu.concatenate %74, %75, %76 in 2 : vector<16x16x4xbf16>, vector<16x16x4xbf16>, vector<16x16x4xbf16> -> vector<16x16x12xbf16>
    %78 = vector.shape_cast %77 : vector<16x16x12xbf16> to vector<256x12xbf16>
    %c2_56 = arith.constant 2 : index
    %c0_57 = arith.constant 0 : index
    %c0_58 = arith.constant 0 : index
    %79 = vector.load %arg3[%c2_56, %c0_57, %c0_58] : memref<3x12x4xbf16, #tpu.memory_space<vmem>>, vector<1x12x4xbf16>
    %80 = vector.shape_cast %79 : vector<1x12x4xbf16> to vector<12x4xbf16>
    %cst_59 = arith.constant dense<0.000000e+00> : vector<256x4xf32>
    %81 = tpu.matmul %78, %80, %cst_59 {dimension_numbers = #tpu.dot_dimension_numbers<[1], [0], [0], [1], [0, 0, 1, 1], [], []>} : vector<256x12xbf16>, vector<12x4xbf16>, vector<256x4xf32> -> vector<256x4xf32>
    %82 = arith.addf %72, %81 : vector<256x4xf32>
    %c0_60 = arith.constant 0 : index
    %c0_61 = arith.constant 0 : index
    %83 = vector.load %arg6[%c0_60, %c0_61] : memref<1x4xf32, #tpu.memory_space<vmem>>, vector<1x4xf32>
    %84 = vector.shape_cast %83 : vector<1x4xf32> to vector<4xf32>
    %85 = vector.shape_cast %84 : vector<4xf32> to vector<1x4xf32>
    %86 = vector.broadcast %85 : vector<1x4xf32> to vector<256x4xf32>
    %87 = arith.mulf %82, %86 : vector<256x4xf32>
    %c0_62 = arith.constant 0 : index
    %c0_63 = arith.constant 0 : index
    %88 = vector.load %arg7[%c0_62, %c0_63] : memref<1x4xf32, #tpu.memory_space<vmem>>, vector<1x4xf32>
    %89 = vector.shape_cast %88 : vector<1x4xf32> to vector<4xf32>
    %90 = vector.shape_cast %89 : vector<4xf32> to vector<1x4xf32>
    %91 = vector.broadcast %90 : vector<1x4xf32> to vector<256x4xf32>
    %92 = arith.addf %87, %91 : vector<256x4xf32>
    %c0_64 = arith.constant 0 : index
    %c0_65 = arith.constant 0 : index
    %c0_66 = arith.constant 0 : index
    %c0_67 = arith.constant 0 : index
    %93 = vector.load %arg1[%c0_64, %c0_65, %c0_66, %c0_67] : memref<1x16x16x4xf32, #tpu.memory_space<vmem>>, vector<1x16x16x4xf32>
    %94 = vector.shape_cast %93 : vector<1x16x16x4xf32> to vector<16x16x4xf32>
    %95 = vector.shape_cast %94 : vector<16x16x4xf32> to vector<256x4xf32>
    %96 = arith.addf %92, %95 : vector<256x4xf32>
    %cst_68 = arith.constant 0.000000e+00 : f32
    %97 = vector.broadcast %cst_68 : f32 to vector<256x4xf32>
    %98 = arith.maximumf %96, %97 : vector<256x4xf32>
    %99 = vector.shape_cast %98 : vector<256x4xf32> to vector<16x16x4xf32>
    %c0_69 = arith.constant 0 : index
    %c0_70 = arith.constant 0 : index
    %c0_71 = arith.constant 0 : index
    %c0_72 = arith.constant 0 : index
    %100 = vector.load %arg8[%c0_69, %c0_70, %c0_71, %c0_72] : memref<1x16x16x4xf32, #tpu.memory_space<vmem>>, vector<1x16x16x4xf32>
    %101 = vector.shape_cast %100 : vector<1x16x16x4xf32> to vector<16x16x4xf32>
    %102 = vector.shape_cast %99 : vector<16x16x4xf32> to vector<1x16x16x4xf32>
    tpu.vector_store %arg8[%c0_69, %c0_70, %c0_71, %c0_72], %102 {strides = array<i32>} : memref<1x16x16x4xf32, #tpu.memory_space<vmem>>, vector<1x16x16x4xf32>,
    return
  }
  func.func @transform_0(%arg0: i32) -> (i32, i32, i32, i32) {
    %c0_i32 = arith.constant 0 : i32
    %c0_i32_0 = arith.constant 0 : i32
    %c0_i32_1 = arith.constant 0 : i32
    %c0_i32_2 = arith.constant 0 : i32
    return %arg0, %c0_i32, %c0_i32_0, %c0_i32_1 : i32, i32, i32, i32
  }
  func.func @transform_1(%arg0: i32) -> (i32, i32, i32) {
    %c0_i32 = arith.constant 0 : i32
    %c0_i32_0 = arith.constant 0 : i32
    %c0_i32_1 = arith.constant 0 : i32
    %c0_i32_2 = arith.constant 0 : i32
    return %c0_i32, %c0_i32_0, %c0_i32_1 : i32, i32, i32
  }
  func.func @transform_2(%arg0: i32) -> (i32, i32, i32) {
    %c0_i32 = arith.constant 0 : i32
    %c0_i32_0 = arith.constant 0 : i32
    %c0_i32_1 = arith.constant 0 : i32
    %c0_i32_2 = arith.constant 0 : i32
    return %c0_i32, %c0_i32_0, %c0_i32_1 : i32, i32, i32
  }
  func.func @transform_3(%arg0: i32) -> (i32, i32) {
    %c0_i32 = arith.constant 0 : i32
    %c0_i32_0 = arith.constant 0 : i32
    %c0_i32_1 = arith.constant 0 : i32
    return %c0_i32, %c0_i32_0 : i32, i32
  }
  func.func @transform_4(%arg0: i32) -> (i32, i32) {
    %c0_i32 = arith.constant 0 : i32
    %c0_i32_0 = arith.constant 0 : i32
    %c0_i32_1 = arith.constant 0 : i32
    return %c0_i32, %c0_i32_0 : i32, i32
  }
  func.func @transform_5(%arg0: i32) -> (i32, i32) {
    %c0_i32 = arith.constant 0 : i32
    %c0_i32_0 = arith.constant 0 : i32
    %c0_i32_1 = arith.constant 0 : i32
    return %c0_i32, %c0_i32_0 : i32, i32
  }
  func.func @transform_6(%arg0: i32) -> (i32, i32) {
    %c0_i32 = arith.constant 0 : i32
    %c0_i32_0 = arith.constant 0 : i32
    %c0_i32_1 = arith.constant 0 : i32
    return %c0_i32, %c0_i32_0 : i32, i32
  }
  func.func @transform_7(%arg0: i32) -> (i32, i32, i32, i32) {
    %c0_i32 = arith.constant 0 : i32
    %c0_i32_0 = arith.constant 0 : i32
    %c0_i32_1 = arith.constant 0 : i32
    %c0_i32_2 = arith.constant 0 : i32
    return %arg0, %c0_i32, %c0_i32_0, %c0_i32_1 : i32, i32, i32, i32
  }
}

</mosaic_0001>

<llo_original>
// kernel: tpu_custom_call.1
$region0: #{tpu_custom_call.1}
  #allocation0 [shape = 'u32[]', space=smem, size = 0x4, offset = 0x4, fixed_abs, tag = 'smem constant byte address 0x4 - core index']
  #allocation1 [shape = 'u32[144,128]{1,0:T(1,128)}', space=vmem, size = 0x12000, scoped, tag = 'internal scratch']
  #allocation2 [shape = 'bf16[18,18,4]{2,1,0:T(8,128)(2,1)}', space=vmem, size = 0x1b000, scoped, tag = 'scratch operand']
  %s0 = inlined_call_operand.vmem [shape: f32[2,16,16,4], index: 0, kind: input, shape index: {}]
  %s1 = inlined_call_operand.vmem [shape: bf16[3,12,4], index: 1, kind: input, shape index: {}]
  %s2 = inlined_call_operand.vmem [shape: bf16[3,12,4], index: 2, kind: input, shape index: {}]
  %s3 = inlined_call_operand.vmem [shape: f32[1,4], index: 3, kind: input, shape index: {}]
  %s4 = inlined_call_operand.vmem [shape: f32[1,4], index: 4, kind: input, shape index: {}]
  %s5 = inlined_call_operand.vmem [shape: f32[1,4], index: 5, kind: input, shape index: {}]
  %s6 = inlined_call_operand.vmem [shape: f32[1,4], index: 6, kind: input, shape index: {}]
  %s7 = inlined_call_operand.vmem [shape: f32[2,16,16,4], index: 7, kind: output, shape index: {}]
  %s8 = sld [smem:[#allocation0]]
  $region61: #{tpu_custom_call.1} parent=0
    _
  %s10 = ssub.s32 1, %s8
  %s11 = scalar_select 0, %s10, %s8
  loop: start=0, step=1, limit=4
  $region2: #{tpu_custom_call.1} parent=0 // loop_pre_header
    _
  $region3: #{tpu_custom_call.1} parent=0 // loop_header
    %s13 = sphi 0, %s17
    %p14 = scmp.ge.s32.totalorder %s13, 4
    %s23 = sphi 0, %s25
    %s26 = sphi 0, %s23
    %s27 = sphi 0, %s26
    %s43 = sphi 0, %s27
    %s47 = sphi 0, %s47
    %s49 = sphi 0, %s47
    %s50 = sphi 0, %s49
    %s64 = sphi 0, %s50
    %s68 = sphi 0, %s68
    %s70 = sphi 0, %s68
    %s71 = sphi 0, %s70
    %s85 = sphi 0, %s71
    %s89 = sphi 0, %s89
    %s91 = sphi 0, %s89
    %s92 = sphi 0, %s91
    %s106 = sphi 0, %s92
    %s110 = sphi 0, %s110
    %s112 = sphi 0, %s110
    %s113 = sphi 0, %s112
    %s127 = sphi 0, %s113
    %s131 = sphi 0, %s131
    %s133 = sphi 0, %s131
    %s134 = sphi 0, %s133
    %s148 = sphi 0, %s134
    %s152 = sphi 0, %s152
    %s154 = sphi 0, %s152
    %s155 = sphi 0, %s154
    %s169 = sphi 0, %s155
    %s175 = sphi 0, %s177
    %s178 = sphi 0, %s175
    %s179 = sphi 0, %s178
    %s195 = sphi 0, %s179
  $region4: #{tpu_custom_call.1} parent=0 // loop_header_branch
    %16 = sbr.rel (%p14) target = $region8
  $region5: #{tpu_custom_call.1} parent=0 // loop_body
    %s18 = ssub.s32 %s13, 1
    %s19 = ssub.s32 %s13, 2
    %s20 = sadd.s32 %s13, 1
    %s21 = ssub.s32 %s13, %s20
    %p22 = scmp.eq.s32.totalorder %s21, 0
    %s24 = sadd.s32 %s23, 1
    %s25 = scalar_select %p22, %s23, %s24
    %p28 = pneg %p22
    %p29 = scmp.eq.s32.totalorder %s13, 1
    %p30 = por %p28, %p29
    %p31 = scmp.ne.s32.totalorder %s23, %s26
    %p32 = scmp.eq.s32.totalorder %s13, 0
    %p33 = por %p31, %p32
    %p34 = scmp.ne.s32.totalorder %s23, %s26
    %p35 = scmp.eq.s32.totalorder %s18, 1
    %p36 = por %p34, %p35
    %p37 = scmp.ne.s32.totalorder %s26, %s27
    %p38 = scmp.eq.s32.totalorder %s18, 0
    %p39 = por %p37, %p38
    %p40 = scmp.ne.s32.totalorder %s26, %s27
    %p41 = scmp.eq.s32.totalorder %s19, 1
    %p42 = por %p40, %p41
    %p44 = scmp.ne.s32.totalorder %s27, %s43
    %p45 = scmp.eq.s32.totalorder %s19, 0
    %p46 = por %p44, %p45
    %s48 = sadd.s32 %s47, 1
    %p51 = scmp.eq.s32.totalorder %s13, 1
    %p52 = scmp.ne.s32.totalorder %s47, %s49
    %p53 = scmp.eq.s32.totalorder %s13, 0
    %p54 = por %p52, %p53
    %p55 = scmp.ne.s32.totalorder %s47, %s49
    %p56 = scmp.eq.s32.totalorder %s18, 1
    %p57 = por %p55, %p56
    %p58 = scmp.ne.s32.totalorder %s49, %s50
    %p59 = scmp.eq.s32.totalorder %s18, 0
    %p60 = por %p58, %p59
    %p61 = scmp.ne.s32.totalorder %s49, %s50
    %p62 = scmp.eq.s32.totalorder %s19, 1
    %p63 = por %p61, %p62
    %p65 = scmp.ne.s32.totalorder %s50, %s64
    %p66 = scmp.eq.s32.totalorder %s19, 0
    %p67 = por %p65, %p66
    %s69 = sadd.s32 %s68, 1
    %p72 = scmp.eq.s32.totalorder %s13, 1
    %p73 = scmp.ne.s32.totalorder %s68, %s70
    %p74 = scmp.eq.s32.totalorder %s13, 0
    %p75 = por %p73, %p74
    %p76 = scmp.ne.s32.totalorder %s68, %s70
    %p77 = scmp.eq.s32.totalorder %s18, 1
    %p78 = por %p76, %p77
    %p79 = scmp.ne.s32.totalorder %s70, %s71
    %p80 = scmp.eq.s32.totalorder %s18, 0
    %p81 = por %p79, %p80
    %p82 = scmp.ne.s32.totalorder %s70, %s71
    %p83 = scmp.eq.s32.totalorder %s19, 1
    %p84 = por %p82, %p83
    %p86 = scmp.ne.s32.totalorder %s71, %s85
    %p87 = scmp.eq.s32.totalorder %s19, 0
    %p88 = por %p86, %p87
    %s90 = sadd.s32 %s89, 1
    %p93 = scmp.eq.s32.totalorder %s13, 1
    %p94 = scmp.ne.s32.totalorder %s89, %s91
    %p95 = scmp.eq.s32.totalorder %s13, 0
    %p96 = por %p94, %p95
    %p97 = scmp.ne.s32.totalorder %s89, %s91
    %p98 = scmp.eq.s32.totalorder %s18, 1
    %p99 = por %p97, %p98
    %p100 = scmp.ne.s32.totalorder %s91, %s92
    %p101 = scmp.eq.s32.totalorder %s18, 0
    %p102 = por %p100, %p101
    %p103 = scmp.ne.s32.totalorder %s91, %s92
    %p104 = scmp.eq.s32.totalorder %s19, 1
    %p105 = por %p103, %p104
    %p107 = scmp.ne.s32.totalorder %s92, %s106
    %p108 = scmp.eq.s32.totalorder %s19, 0
    %p109 = por %p107, %p108
    %s111 = sadd.s32 %s110, 1
    %p114 = scmp.eq.s32.totalorder %s13, 1
    %p115 = scmp.ne.s32.totalorder %s110, %s112
    %p116 = scmp.eq.s32.totalorder %s13, 0
    %p117 = por %p115, %p116
    %p118 = scmp.ne.s32.totalorder %s110, %s112
    %p119 = scmp.eq.s32.totalorder %s18, 1
    %p120 = por %p118, %p119
    %p121 = scmp.ne.s32.totalorder %s112, %s113
    %p122 = scmp.eq.s32.totalorder %s18, 0
    %p123 = por %p121, %p122
    %p124 = scmp.ne.s32.totalorder %s112, %s113
    %p125 = scmp.eq.s32.totalorder %s19, 1
    %p126 = por %p124, %p125
    %p128 = scmp.ne.s32.totalorder %s113, %s127
    %p129 = scmp.eq.s32.totalorder %s19, 0
    %p130 = por %p128, %p129
    %s132 = sadd.s32 %s131, 1
    %p135 = scmp.eq.s32.totalorder %s13, 1
    %p136 = scmp.ne.s32.totalorder %s131, %s133
    %p137 = scmp.eq.s32.totalorder %s13, 0
    %p138 = por %p136, %p137
    %p139 = scmp.ne.s32.totalorder %s131, %s133
    %p140 = scmp.eq.s32.totalorder %s18, 1
    %p141 = por %p139, %p140
    %p142 = scmp.ne.s32.totalorder %s133, %s134
    %p143 = scmp.eq.s32.totalorder %s18, 0
    %p144 = por %p142, %p143
    %p145 = scmp.ne.s32.totalorder %s133, %s134
    %p146 = scmp.eq.s32.totalorder %s19, 1
    %p147 = por %p145, %p146
    %p149 = scmp.ne.s32.totalorder %s134, %s148
    %p150 = scmp.eq.s32.totalorder %s19, 0
    %p151 = por %p149, %p150
    %s153 = sadd.s32 %s152, 1
    %p156 = scmp.eq.s32.totalorder %s13, 1
    %p157 = scmp.ne.s32.totalorder %s152, %s154
    %p158 = scmp.eq.s32.totalorder %s13, 0
    %p159 = por %p157, %p158
    %p160 = scmp.ne.s32.totalorder %s152, %s154
    %p161 = scmp.eq.s32.totalorder %s18, 1
    %p162 = por %p160, %p161
    %p163 = scmp.ne.s32.totalorder %s154, %s155
    %p164 = scmp.eq.s32.totalorder %s18, 0
    %p165 = por %p163, %p164
    %p166 = scmp.ne.s32.totalorder %s154, %s155
    %p167 = scmp.eq.s32.totalorder %s19, 1
    %p168 = por %p166, %p167
    %p170 = scmp.ne.s32.totalorder %s155, %s169
    %p171 = scmp.eq.s32.totalorder %s19, 0
    %p172 = por %p170, %p171
    %s173 = ssub.s32 %s13, %s20
    %p174 = scmp.eq.s32.totalorder %s173, 0
    %s176 = sadd.s32 %s175, 1
    %s177 = scalar_select %p174, %s175, %s176
    %p180 = pneg %p174
    %p181 = scmp.eq.s32.totalorder %s13, 1
    %p182 = por %p180, %p181
    %p183 = scmp.ne.s32.totalorder %s175, %s178
    %p184 = scmp.eq.s32.totalorder %s13, 0
    %p185 = por %p183, %p184
    %p186 = scmp.ne.s32.totalorder %s175, %s178
    %p187 = scmp.eq.s32.totalorder %s18, 1
    %p188 = por %p186, %p187
    %p189 = scmp.ne.s32.totalorder %s178, %s179
    %p190 = scmp.eq.s32.totalorder %s18, 0
    %p191 = por %p189, %p190
    %p192 = scmp.ne.s32.totalorder %s178, %s179
    %p193 = scmp.eq.s32.totalorder %s19, 1
    %p194 = por %p192, %p193
    %p196 = scmp.ne.s32.totalorder %s179, %s195
    %p197 = scmp.eq.s32.totalorder %s19, 0
    %p198 = por %p196, %p197
    %p199 = scmp.le.s32.totalorder 1, %s13
    %p200 = scmp.lt.s32.totalorder %s13, 3
    %p201 = pnand %p199, %p200
    %p202 = pneg %p201
    // Predicated region
    $region9: #{tpu_custom_call.1} parent=5 // pred_check
      _
    $region10: #{tpu_custom_call.1} parent=5 // pred_check_branch
      %204 = sbr.rel (%p201) target = $region12
    $region11: #{tpu_custom_call.1} parent=5 // pred_region
      %s205 = ssub.s32 %s13, 1
      // Predicated region
      $region13: #{tpu_custom_call.1} parent=11 // pred_check
        %p206 = pneg %p60
      $region14: #{tpu_custom_call.1} parent=11 // pred_check_branch
        %208 = sbr.rel (%p206) target = $region16
      $region15: #{tpu_custom_call.1} parent=11 // pred_region
        _
      $region16: #{tpu_custom_call.1} parent=11 // pred_fallthru
        _
      // Predicated region
      $region17: #{tpu_custom_call.1} parent=11 // pred_check
        %p209 = pneg %p81
      $region18: #{tpu_custom_call.1} parent=11 // pred_check_branch
        %211 = sbr.rel (%p209) target = $region20
      $region19: #{tpu_custom_call.1} parent=11 // pred_region
        _
      $region20: #{tpu_custom_call.1} parent=11 // pred_fallthru
        _
      // Predicated region
      $region21: #{tpu_custom_call.1} parent=11 // pred_check
        %p212 = pneg %p102
      $region22: #{tpu_custom_call.1} parent=11 // pred_check_branch
        %214 = sbr.rel (%p212) target = $region24
      $region23: #{tpu_custom_call.1} parent=11 // pred_region
        _
      $region24: #{tpu_custom_call.1} parent=11 // pred_fallthru
        _
      // Predicated region
      $region25: #{tpu_custom_call.1} parent=11 // pred_check
        %p215 = pneg %p123
      $region26: #{tpu_custom_call.1} parent=11 // pred_check_branch
        %217 = sbr.rel (%p215) target = $region28
      $region27: #{tpu_custom_call.1} parent=11 // pred_region
        _
      $region28: #{tpu_custom_call.1} parent=11 // pred_fallthru
        _
      // Predicated region
      $region29: #{tpu_custom_call.1} parent=11 // pred_check
        %p218 = pneg %p144
      $region30: #{tpu_custom_call.1} parent=11 // pred_check_branch
        %220 = sbr.rel (%p218) target = $region32
      $region31: #{tpu_custom_call.1} parent=11 // pred_region
        _
      $region32: #{tpu_custom_call.1} parent=11 // pred_fallthru
        _
      // Predicated region
      $region33: #{tpu_custom_call.1} parent=11 // pred_check
        %p221 = pneg %p165
      $region34: #{tpu_custom_call.1} parent=11 // pred_check_branch
        %223 = sbr.rel (%p221) target = $region36
      $region35: #{tpu_custom_call.1} parent=11 // pred_region
        _
      $region36: #{tpu_custom_call.1} parent=11 // pred_fallthru
        _
    $region12: #{tpu_custom_call.1} parent=5 // pred_fallthru
      _
    %p224 = scmp.lt.s32.totalorder %s13, 2
    // Predicated region
    $region37: #{tpu_custom_call.1} parent=5 // pred_check
      %p225 = pneg %p224
    $region38: #{tpu_custom_call.1} parent=5 // pred_check_branch
      %227 = sbr.rel (%p225) target = $region40
    $region39: #{tpu_custom_call.1} parent=5 // pred_region
      // Predicated region
      $region41: #{tpu_custom_call.1} parent=39 // pred_check
        %p228 = pneg %p33
      $region42: #{tpu_custom_call.1} parent=39 // pred_check_branch
        %230 = sbr.rel (%p228) target = $region44
      $region43: #{tpu_custom_call.1} parent=39 // pred_region
        %p231 = scmp.lt.s32.totalorder %s13, 1
        %s232 = scalar_select %p231, %s13, 1
        %s233 = smul.addr %s232, 32
        %s234 = smul.addr %s233, 8
        %s235 = scalar_lea.vmem %s0, %s234
      $region44: #{tpu_custom_call.1} parent=39 // pred_fallthru
        _
    $region40: #{tpu_custom_call.1} parent=5 // pred_fallthru
      _
    %p236 = scmp.le.s32.totalorder 1, %s13
    %p237 = scmp.lt.s32.totalorder %s13, 3
    %p238 = pnand %p236, %p237
    %p239 = pneg %p238
    // Predicated region
    $region45: #{tpu_custom_call.1} parent=5 // pred_check
      _
    $region46: #{tpu_custom_call.1} parent=5 // pred_check_branch
      %241 = sbr.rel (%p238) target = $region48
    $region47: #{tpu_custom_call.1} parent=5 // pred_region
      %s242 = ssub.s32 %s13, 1
      %p243 = scmp.lt.s32.totalorder %s18, 1
      %s244 = scalar_select %p243, %s18, 1
      %s245 = smul.addr %s244, 32
      %s246 = smul.addr %s245, 8
      %s247 = scalar_lea.vmem %s0, %s246
      %p248 = pneg %p39
      %p249 = pneg %p36
      %p250 = pneg %p60
      %p251 = pneg %p57
      %p252 = pneg %p81
      %p253 = pneg %p78
      %p254 = pneg %p102
      %p255 = pneg %p99
      %p256 = pneg %p123
      %p257 = pneg %p120
      %p258 = pneg %p144
      %p259 = pneg %p141
      %p260 = pneg %p165
      %p261 = pneg %p162
      %p262 = pneg %p191
      %p263 = pneg %p188
      %p264 = scmp.lt.s32.totalorder %s18, 1
      %s265 = scalar_select %p264, %s18, 1
      %s266 = smul.addr %s265, 32
      %s267 = smul.addr %s266, 8
      %s268 = scalar_lea.vmem %s7, %s267
      %p269 = scmp.lt.s32.totalorder %s18, 1
      %s270 = scalar_select %p269, %s18, 1
      %s271 = smul.addr %s270, 32
      %s272 = smul.addr %s271, 8
      %s273 = scalar_lea.vmem %s0, %s272
      %p274 = scmp.lt.s32.totalorder %s18, 1
      %s275 = scalar_select %p274, %s18, 1
      %s276 = smul.addr %s275, 32
      %s277 = smul.addr %s276, 8
      %s278 = scalar_lea.vmem %s7, %s277
      %vm280 = vcmask 27648
      %281 = vst.msk [vmem:[#allocation2] sm:$0xf] %vm280, 0
      %282 = vst.msk [vmem:[#allocation2 + $0x4] sm:$0xf] %vm280, 0
      %vm283 = vcmask 24576
      %284 = vst.msk [vmem:[#allocation2 + $0x8] sm:$0x1] %vm283, 0
      %s285 = scalar_lea.vmem [#allocation2], 204
      %286 = vst.msk [vmem:[%s285] sm:$0xf] %vm280, 0
      %287 = vst.msk [vmem:[%s285 + $0x4] sm:$0xf] %vm280, 0
      %288 = vst.msk [vmem:[%s285 + $0x8] sm:$0x1] %vm283, 0
      %v289 = vld [vmem:[%s273] sm:$0xff]
      %v290 = vld [vmem:[%s273 + $0x8] sm:$0xff]
      %v291 = vld [vmem:[%s273 + $0x10] sm:$0xff]
      %v292 = vld [vmem:[%s273 + $0x18] sm:$0xff]
      %v293 = vld [vmem:[%s273 + $0x20] sm:$0xff]
      %v294 = vld [vmem:[%s273 + $0x28] sm:$0xff]
      %v295 = vld [vmem:[%s273 + $0x30] sm:$0xff]
      %v296 = vld [vmem:[%s273 + $0x38] sm:$0xff]
      %v297 = vld [vmem:[%s273 + $0x40] sm:$0xff]
      %v298 = vld [vmem:[%s273 + $0x48] sm:$0xff]
      %v299 = vld [vmem:[%s273 + $0x50] sm:$0xff]
      %v300 = vld [vmem:[%s273 + $0x58] sm:$0xff]
      %v301 = vld [vmem:[%s273 + $0x60] sm:$0xff]
      %v302 = vld [vmem:[%s273 + $0x68] sm:$0xff]
      %v303 = vld [vmem:[%s273 + $0x70] sm:$0xff]
      %v304 = vld [vmem:[%s273 + $0x78] sm:$0xff]
      %v305 = vld [vmem:[%s273 + $0x80] sm:$0xff]
      %v306 = vld [vmem:[%s273 + $0x88] sm:$0xff]
      %v307 = vld [vmem:[%s273 + $0x90] sm:$0xff]
      %v308 = vld [vmem:[%s273 + $0x98] sm:$0xff]
      %v309 = vld [vmem:[%s273 + $0xa0] sm:$0xff]
      %v310 = vld [vmem:[%s273 + $0xa8] sm:$0xff]
      %v311 = vld [vmem:[%s273 + $0xb0] sm:$0xff]
      %v312 = vld [vmem:[%s273 + $0xb8] sm:$0xff]
      %v313 = vld [vmem:[%s273 + $0xc0] sm:$0xff]
      %v314 = vld [vmem:[%s273 + $0xc8] sm:$0xff]
      %v315 = vld [vmem:[%s273 + $0xd0] sm:$0xff]
      %v316 = vld [vmem:[%s273 + $0xd8] sm:$0xff]
      %v317 = vld [vmem:[%s273 + $0xe0] sm:$0xff]
      %v318 = vld [vmem:[%s273 + $0xe8] sm:$0xff]
      %v319 = vld [vmem:[%s273 + $0xf0] sm:$0xff]
      %v320 = vld [vmem:[%s273 + $0xf8] sm:$0xff]
      %v321 = vpack.c.bf16 %v290, %v289
      %v322 = vpack.c.bf16 %v292, %v291
      %v323 = vpack.c.bf16 %v294, %v293
      %v324 = vpack.c.bf16 %v296, %v295
      %v325 = vpack.c.bf16 %v298, %v297
      %v326 = vpack.c.bf16 %v300, %v299
      %v327 = vpack.c.bf16 %v302, %v301
      %v328 = vpack.c.bf16 %v304, %v303
      %v329 = vpack.c.bf16 %v306, %v305
      %v330 = vpack.c.bf16 %v308, %v307
      %v331 = vpack.c.bf16 %v310, %v309
      %v332 = vpack.c.bf16 %v312, %v311
      %v333 = vpack.c.bf16 %v314, %v313
      %v334 = vpack.c.bf16 %v316, %v315
      %v335 = vpack.c.bf16 %v318, %v317
      %v336 = vpack.c.bf16 %v320, %v319
      %v338 = vshrl.u32 %v321, 16
      %v340 = vrot.slane %v338, 7
      %v341 = vshll.u32 %v321, 16
      %v343 = vor.u32 %v340, %v341
      %v345 = vshrl.u32 %v322, 16
      %v347 = vrot.slane %v345, 7
      %v348 = vshll.u32 %v322, 16
      %v350 = vor.u32 %v347, %v348
      %v352 = vshrl.u32 %v323, 16
      %v354 = vrot.slane %v352, 7
      %v355 = vshll.u32 %v323, 16
      %v357 = vor.u32 %v354, %v355
      %v359 = vshrl.u32 %v324, 16
      %v361 = vrot.slane %v359, 7
      %v362 = vshll.u32 %v324, 16
      %v364 = vor.u32 %v361, %v362
      %v366 = vshrl.u32 %v325, 16
      %v368 = vrot.slane %v366, 7
      %v369 = vshll.u32 %v325, 16
      %v371 = vor.u32 %v368, %v369
      %v373 = vshrl.u32 %v326, 16
      %v375 = vrot.slane %v373, 7
      %v376 = vshll.u32 %v326, 16
      %v378 = vor.u32 %v375, %v376
      %v380 = vshrl.u32 %v327, 16
      %v382 = vrot.slane %v380, 7
      %v383 = vshll.u32 %v327, 16
      %v385 = vor.u32 %v382, %v383
      %v387 = vshrl.u32 %v328, 16
      %v389 = vrot.slane %v387, 7
      %v390 = vshll.u32 %v328, 16
      %v392 = vor.u32 %v389, %v390
      %v394 = vshrl.u32 %v329, 16
      %v396 = vrot.slane %v394, 7
      %v397 = vshll.u32 %v329, 16
      %v399 = vor.u32 %v396, %v397
      %v401 = vshrl.u32 %v330, 16
      %v403 = vrot.slane %v401, 7
      %v404 = vshll.u32 %v330, 16
      %v406 = vor.u32 %v403, %v404
      %v408 = vshrl.u32 %v331, 16
      %v410 = vrot.slane %v408, 7
      %v411 = vshll.u32 %v331, 16
      %v413 = vor.u32 %v410, %v411
      %v415 = vshrl.u32 %v332, 16
      %v417 = vrot.slane %v415, 7
      %v418 = vshll.u32 %v332, 16
      %v420 = vor.u32 %v417, %v418
      %v422 = vshrl.u32 %v333, 16
      %v424 = vrot.slane %v422, 7
      %v425 = vshll.u32 %v333, 16
      %v427 = vor.u32 %v424, %v425
      %v429 = vshrl.u32 %v334, 16
      %v431 = vrot.slane %v429, 7
      %v432 = vshll.u32 %v334, 16
      %v434 = vor.u32 %v431, %v432
      %v436 = vshrl.u32 %v335, 16
      %v438 = vrot.slane %v436, 7
      %v439 = vshll.u32 %v335, 16
      %v441 = vor.u32 %v438, %v439
      %v443 = vshrl.u32 %v336, 16
      %v445 = vrot.slane %v443, 7
      %v446 = vshll.u32 %v336, 16
      %v448 = vor.u32 %v445, %v446
      %vm481 = vcmask 1040384
      %vm482 = vsmask.f32 256
      %vm483 = vmand %vm481, %vm482
      %v484 = vsel %vm483, 0, %v343
      %v485 = vsel %vm483, 0, %v350
      %v486 = vsel %vm483, 0, %v357
      %v487 = vsel %vm483, 0, %v364
      %v488 = vsel %vm483, 0, %v371
      %v489 = vsel %vm483, 0, %v378
      %v490 = vsel %vm483, 0, %v385
      %v491 = vsel %vm483, 0, %v392
      %v492 = vsel %vm483, 0, %v399
      %v493 = vsel %vm483, 0, %v406
      %v494 = vsel %vm483, 0, %v413
      %v495 = vsel %vm483, 0, %v420
      %v496 = vsel %vm483, 0, %v427
      %v497 = vsel %vm483, 0, %v434
      %v498 = vsel %vm483, 0, %v441
      %v499 = vsel %vm483, 0, %v448
      %v500 = vsel %vm483, %v340, 0
      %v501 = vsel %vm483, %v347, 0
      %v502 = vsel %vm483, %v354, 0
      %v503 = vsel %vm483, %v361, 0
      %v504 = vsel %vm483, %v368, 0
      %v505 = vsel %vm483, %v375, 0
      %v506 = vsel %vm483, %v382, 0
      %v507 = vsel %vm483, %v389, 0
      %v508 = vsel %vm483, %v396, 0
      %v509 = vsel %vm483, %v403, 0
      %v510 = vsel %vm483, %v410, 0
      %v511 = vsel %vm483, %v417, 0
      %v512 = vsel %vm483, %v424, 0
      %v513 = vsel %vm483, %v431, 0
      %v514 = vsel %vm483, %v438, 0
      %v515 = vsel %vm483, %v445, 0
      %v548 = vunpack.c.l.b16 %v484
      %v549 = vunpack.c.h.b16 %v484
      %v550 = vunpack.c.l.b16 %v500
      %v551 = vunpack.c.l.b16 %v485
      %v552 = vunpack.c.h.b16 %v485
      %v553 = vunpack.c.l.b16 %v501
      %v554 = vunpack.c.l.b16 %v486
      %v555 = vunpack.c.h.b16 %v486
      %v556 = vunpack.c.l.b16 %v502
      %v557 = vunpack.c.l.b16 %v487
      %v558 = vunpack.c.h.b16 %v487
      %v559 = vunpack.c.l.b16 %v503
      %v560 = vunpack.c.l.b16 %v488
      %v561 = vunpack.c.h.b16 %v488
      %v562 = vunpack.c.l.b16 %v504
      %v563 = vunpack.c.l.b16 %v489
      %v564 = vunpack.c.h.b16 %v489
      %v565 = vunpack.c.l.b16 %v505
      %v566 = vunpack.c.l.b16 %v490
      %v567 = vunpack.c.h.b16 %v490
      %v568 = vunpack.c.l.b16 %v506
      %v569 = vunpack.c.l.b16 %v491
      %v570 = vunpack.c.h.b16 %v491
      %v571 = vunpack.c.l.b16 %v507
      %v572 = vunpack.c.l.b16 %v492
      %v573 = vunpack.c.h.b16 %v492
      %v574 = vunpack.c.l.b16 %v508
      %v575 = vunpack.c.l.b16 %v493
      %v576 = vunpack.c.h.b16 %v493
      %v577 = vunpack.c.l.b16 %v509
      %v578 = vunpack.c.l.b16 %v494
      %v579 = vunpack.c.h.b16 %v494
      %v580 = vunpack.c.l.b16 %v510
      %v581 = vunpack.c.l.b16 %v495
      %v582 = vunpack.c.h.b16 %v495
      %v583 = vunpack.c.l.b16 %v511
      %v584 = vunpack.c.l.b16 %v496
      %v585 = vunpack.c.h.b16 %v496
      %v586 = vunpack.c.l.b16 %v512
      %v587 = vunpack.c.l.b16 %v497
      %v588 = vunpack.c.h.b16 %v497
      %v589 = vunpack.c.l.b16 %v513
      %v590 = vunpack.c.l.b16 %v498
      %v591 = vunpack.c.h.b16 %v498
      %v592 = vunpack.c.l.b16 %v514
      %v593 = vunpack.c.l.b16 %v499
      %v594 = vunpack.c.h.b16 %v499
      %v595 = vunpack.c.l.b16 %v515
      %v596 = vpack.c.b16 %v548, %v548
      %v597 = vpack.c.b16 %v549, %v549
      %v598 = vpack.c.b16 %v550, %v550
      %v599 = vpack.c.b16 %v551, %v551
      %v600 = vpack.c.b16 %v552, %v552
      %v601 = vpack.c.b16 %v553, %v553
      %v602 = vpack.c.b16 %v554, %v554
      %v603 = vpack.c.b16 %v555, %v555
      %v604 = vpack.c.b16 %v556, %v556
      %v605 = vpack.c.b16 %v557, %v557
      %v606 = vpack.c.b16 %v558, %v558
      %v607 = vpack.c.b16 %v559, %v559
      %v608 = vpack.c.b16 %v560, %v560
      %v609 = vpack.c.b16 %v561, %v561
      %v610 = vpack.c.b16 %v562, %v562
      %v611 = vpack.c.b16 %v563, %v563
      %v612 = vpack.c.b16 %v564, %v564
      %v613 = vpack.c.b16 %v565, %v565
      %v614 = vpack.c.b16 %v566, %v566
      %v615 = vpack.c.b16 %v567, %v567
      %v616 = vpack.c.b16 %v568, %v568
      %v617 = vpack.c.b16 %v569, %v569
      %v618 = vpack.c.b16 %v570, %v570
      %v619 = vpack.c.b16 %v571, %v571
      %v620 = vpack.c.b16 %v572, %v572
      %v621 = vpack.c.b16 %v573, %v573
      %v622 = vpack.c.b16 %v574, %v574
      %v623 = vpack.c.b16 %v575, %v575
      %v624 = vpack.c.b16 %v576, %v576
      %v625 = vpack.c.b16 %v577, %v577
      %v626 = vpack.c.b16 %v578, %v578
      %v627 = vpack.c.b16 %v579, %v579
      %v628 = vpack.c.b16 %v580, %v580
      %v629 = vpack.c.b16 %v581, %v581
      %v630 = vpack.c.b16 %v582, %v582
      %v631 = vpack.c.b16 %v583, %v583
      %v632 = vpack.c.b16 %v584, %v584
      %v633 = vpack.c.b16 %v585, %v585
      %v634 = vpack.c.b16 %v586, %v586
      %v635 = vpack.c.b16 %v587, %v587
      %v636 = vpack.c.b16 %v588, %v588
      %v637 = vpack.c.b16 %v589, %v589
      %v638 = vpack.c.b16 %v590, %v590
      %v639 = vpack.c.b16 %v591, %v591
      %v640 = vpack.c.b16 %v592, %v592
      %v641 = vpack.c.b16 %v593, %v593
      %v642 = vpack.c.b16 %v594, %v594
      %v643 = vpack.c.b16 %v595, %v595
      %s692 = scalar_lea.vmem [#allocation2], 12
      %693 = vst.msk [vmem:[%s692] sm:$0xf] %vm280, %v596
      %694 = vst.msk [vmem:[%s692 + $0x4] sm:$0xf] %vm280, %v597
      %695 = vst.msk [vmem:[%s692 + $0x8] sm:$0x1] %vm283, %v598
      %696 = vst.msk [vmem:[%s692 + $0xc] sm:$0xf] %vm280, %v599
      %697 = vst.msk [vmem:[%s692 + $0x10] sm:$0xf] %vm280, %v600
      %698 = vst.msk [vmem:[%s692 + $0x14] sm:$0x1] %vm283, %v601
      %699 = vst.msk [vmem:[%s692 + $0x18] sm:$0xf] %vm280, %v602
      %700 = vst.msk [vmem:[%s692 + $0x1c] sm:$0xf] %vm280, %v603
      %701 = vst.msk [vmem:[%s692 + $0x20] sm:$0x1] %vm283, %v604
      %702 = vst.msk [vmem:[%s692 + $0x24] sm:$0xf] %vm280, %v605
      %703 = vst.msk [vmem:[%s692 + $0x28] sm:$0xf] %vm280, %v606
      %704 = vst.msk [vmem:[%s692 + $0x2c] sm:$0x1] %vm283, %v607
      %705 = vst.msk [vmem:[%s692 + $0x30] sm:$0xf] %vm280, %v608
      %706 = vst.msk [vmem:[%s692 + $0x34] sm:$0xf] %vm280, %v609
      %707 = vst.msk [vmem:[%s692 + $0x38] sm:$0x1] %vm283, %v610
      %708 = vst.msk [vmem:[%s692 + $0x3c] sm:$0xf] %vm280, %v611
      %709 = vst.msk [vmem:[%s692 + $0x40] sm:$0xf] %vm280, %v612
      %710 = vst.msk [vmem:[%s692 + $0x44] sm:$0x1] %vm283, %v613
      %711 = vst.msk [vmem:[%s692 + $0x48] sm:$0xf] %vm280, %v614
      %712 = vst.msk [vmem:[%s692 + $0x4c] sm:$0xf] %vm280, %v615
      %713 = vst.msk [vmem:[%s692 + $0x50] sm:$0x1] %vm283, %v616
      %714 = vst.msk [vmem:[%s692 + $0x54] sm:$0xf] %vm280, %v617
      %715 = vst.msk [vmem:[%s692 + $0x58] sm:$0xf] %vm280, %v618
      %716 = vst.msk [vmem:[%s692 + $0x5c] sm:$0x1] %vm283, %v619
      %717 = vst.msk [vmem:[%s692 + $0x60] sm:$0xf] %vm280, %v620
      %718 = vst.msk [vmem:[%s692 + $0x64] sm:$0xf] %vm280, %v621
      %719 = vst.msk [vmem:[%s692 + $0x68] sm:$0x1] %vm283, %v622
      %720 = vst.msk [vmem:[%s692 + $0x6c] sm:$0xf] %vm280, %v623
      %721 = vst.msk [vmem:[%s692 + $0x70] sm:$0xf] %vm280, %v624
      %722 = vst.msk [vmem:[%s692 + $0x74] sm:$0x1] %vm283, %v625
      %723 = vst.msk [vmem:[%s692 + $0x78] sm:$0xf] %vm280, %v626
      %724 = vst.msk [vmem:[%s692 + $0x7c] sm:$0xf] %vm280, %v627
      %725 = vst.msk [vmem:[%s692 + $0x80] sm:$0x1] %vm283, %v628
      %726 = vst.msk [vmem:[%s692 + $0x84] sm:$0xf] %vm280, %v629
      %727 = vst.msk [vmem:[%s692 + $0x88] sm:$0xf] %vm280, %v630
      %728 = vst.msk [vmem:[%s692 + $0x8c] sm:$0x1] %vm283, %v631
      %729 = vst.msk [vmem:[%s692 + $0x90] sm:$0xf] %vm280, %v632
      %730 = vst.msk [vmem:[%s692 + $0x94] sm:$0xf] %vm280, %v633
      %731 = vst.msk [vmem:[%s692 + $0x98] sm:$0x1] %vm283, %v634
      %732 = vst.msk [vmem:[%s692 + $0x9c] sm:$0xf] %vm280, %v635
      %733 = vst.msk [vmem:[%s692 + $0xa0] sm:$0xf] %vm280, %v636
      %734 = vst.msk [vmem:[%s692 + $0xa4] sm:$0x1] %vm283, %v637
      %735 = vst.msk [vmem:[%s692 + $0xa8] sm:$0xf] %vm280, %v638
      %736 = vst.msk [vmem:[%s692 + $0xac] sm:$0xf] %vm280, %v639
      %737 = vst.msk [vmem:[%s692 + $0xb0] sm:$0x1] %vm283, %v640
      %738 = vst.msk [vmem:[%s692 + $0xb4] sm:$0xf] %vm280, %v641
      %739 = vst.msk [vmem:[%s692 + $0xb8] sm:$0xf] %vm280, %v642
      %740 = vst.msk [vmem:[%s692 + $0xbc] sm:$0x1] %vm283, %v643
      %v741 = vld [vmem:[#allocation2] sm:$0xf]
      %v742 = vld [vmem:[#allocation2 + $0x4] sm:$0xf]
      %v743 = vld [vmem:[#allocation2 + $0x8] sm:$0x1]
      %v744 = vld [vmem:[#allocation2 + $0xc] sm:$0xf]
      %v745 = vld [vmem:[#allocation2 + $0x10] sm:$0xf]
      %v746 = vld [vmem:[#allocation2 + $0x14] sm:$0x1]
      %v747 = vld [vmem:[#allocation2 + $0x18] sm:$0xf]
      %v748 = vld [vmem:[#allocation2 + $0x1c] sm:$0xf]
      %v749 = vld [vmem:[#allocation2 + $0x20] sm:$0x1]
      %v750 = vld [vmem:[#allocation2 + $0x24] sm:$0xf]
      %v751 = vld [vmem:[#allocation2 + $0x28] sm:$0xf]
      %v752 = vld [vmem:[#allocation2 + $0x2c] sm:$0x1]
      %v753 = vld [vmem:[#allocation2 + $0x30] sm:$0xf]
      %v754 = vld [vmem:[#allocation2 + $0x34] sm:$0xf]
      %v755 = vld [vmem:[#allocation2 + $0x38] sm:$0x1]
      %v756 = vld [vmem:[#allocation2 + $0x3c] sm:$0xf]
      %v757 = vld [vmem:[#allocation2 + $0x40] sm:$0xf]
      %v758 = vld [vmem:[#allocation2 + $0x44] sm:$0x1]
      %v759 = vld [vmem:[#allocation2 + $0x48] sm:$0xf]
      %v760 = vld [vmem:[#allocation2 + $0x4c] sm:$0xf]
      %v761 = vld [vmem:[#allocation2 + $0x50] sm:$0x1]
      %v762 = vld [vmem:[#allocation2 + $0x54] sm:$0xf]
      %v763 = vld [vmem:[#allocation2 + $0x58] sm:$0xf]
      %v764 = vld [vmem:[#allocation2 + $0x5c] sm:$0x1]
      %v765 = vld [vmem:[#allocation2 + $0x60] sm:$0xf]
      %v766 = vld [vmem:[#allocation2 + $0x64] sm:$0xf]
      %v767 = vld [vmem:[#allocation2 + $0x68] sm:$0x1]
      %v768 = vld [vmem:[#allocation2 + $0x6c] sm:$0xf]
      %v769 = vld [vmem:[#allocation2 + $0x70] sm:$0xf]
      %v770 = vld [vmem:[#allocation2 + $0x74] sm:$0x1]
      %v771 = vld [vmem:[#allocation2 + $0x78] sm:$0xf]
      %v772 = vld [vmem:[#allocation2 + $0x7c] sm:$0xf]
      %v773 = vld [vmem:[#allocation2 + $0x80] sm:$0x1]
      %v774 = vld [vmem:[#allocation2 + $0x84] sm:$0xf]
      %v775 = vld [vmem:[#allocation2 + $0x88] sm:$0xf]
      %v776 = vld [vmem:[#allocation2 + $0x8c] sm:$0x1]
      %v777 = vld [vmem:[#allocation2 + $0x90] sm:$0xf]
      %v778 = vld [vmem:[#allocation2 + $0x94] sm:$0xf]
      %v779 = vld [vmem:[#allocation2 + $0x98] sm:$0x1]
      %v780 = vld [vmem:[#allocation2 + $0x9c] sm:$0xf]
      %v781 = vld [vmem:[#allocation2 + $0xa0] sm:$0xf]
      %v782 = vld [vmem:[#allocation2 + $0xa4] sm:$0x1]
      %v783 = vld [vmem:[#allocation2 + $0xa8] sm:$0xf]
      %v784 = vld [vmem:[#allocation2 + $0xac] sm:$0xf]
      %v785 = vld [vmem:[#allocation2 + $0xb0] sm:$0x1]
      %v786 = vld [vmem:[#allocation2 + $0xb4] sm:$0xf]
      %v787 = vld [vmem:[#allocation2 + $0xb8] sm:$0xf]
      %v788 = vld [vmem:[#allocation2 + $0xbc] sm:$0x1]
      %v821 = vunpack.c.l.b16 %v741
      %v822 = vunpack.c.l.b16 %v742
      %v823 = vunpack.c.l.b16 %v744
      %v824 = vunpack.c.l.b16 %v745
      %v825 = vunpack.c.l.b16 %v747
      %v826 = vunpack.c.l.b16 %v748
      %v827 = vunpack.c.l.b16 %v750
      %v828 = vunpack.c.l.b16 %v751
      %v829 = vunpack.c.l.b16 %v753
      %v830 = vunpack.c.l.b16 %v754
      %v831 = vunpack.c.l.b16 %v756
      %v832 = vunpack.c.l.b16 %v757
      %v833 = vunpack.c.l.b16 %v759
      %v834 = vunpack.c.l.b16 %v760
      %v835 = vunpack.c.l.b16 %v762
      %v836 = vunpack.c.l.b16 %v763
      %v837 = vunpack.c.l.b16 %v765
      %v838 = vunpack.c.l.b16 %v766
      %v839 = vunpack.c.l.b16 %v768
      %v840 = vunpack.c.l.b16 %v769
      %v841 = vunpack.c.l.b16 %v771
      %v842 = vunpack.c.l.b16 %v772
      %v843 = vunpack.c.l.b16 %v774
      %v844 = vunpack.c.l.b16 %v775
      %v845 = vunpack.c.l.b16 %v777
      %v846 = vunpack.c.l.b16 %v778
      %v847 = vunpack.c.l.b16 %v780
      %v848 = vunpack.c.l.b16 %v781
      %v849 = vunpack.c.l.b16 %v783
      %v850 = vunpack.c.l.b16 %v784
      %v851 = vunpack.c.l.b16 %v786
      %v852 = vunpack.c.l.b16 %v787
      %v853 = vpack.c.b16 %v822, %v821
      %v854 = vpack.c.b16 %v824, %v823
      %v855 = vpack.c.b16 %v826, %v825
      %v856 = vpack.c.b16 %v828, %v827
      %v857 = vpack.c.b16 %v830, %v829
      %v858 = vpack.c.b16 %v832, %v831
      %v859 = vpack.c.b16 %v834, %v833
      %v860 = vpack.c.b16 %v836, %v835
      %v861 = vpack.c.b16 %v838, %v837
      %v862 = vpack.c.b16 %v840, %v839
      %v863 = vpack.c.b16 %v842, %v841
      %v864 = vpack.c.b16 %v844, %v843
      %v865 = vpack.c.b16 %v846, %v845
      %v866 = vpack.c.b16 %v848, %v847
      %v867 = vpack.c.b16 %v850, %v849
      %v868 = vpack.c.b16 %v852, %v851
      %v885 = vunpack.c.l.b16 %v743
      %v886 = vunpack.c.l.b16 %v746
      %v887 = vunpack.c.l.b16 %v749
      %v888 = vunpack.c.l.b16 %v752
      %v889 = vunpack.c.l.b16 %v755
      %v890 = vunpack.c.l.b16 %v758
      %v891 = vunpack.c.l.b16 %v761
      %v892 = vunpack.c.l.b16 %v764
      %v893 = vunpack.c.l.b16 %v767
      %v894 = vunpack.c.l.b16 %v770
      %v895 = vunpack.c.l.b16 %v773
      %v896 = vunpack.c.l.b16 %v776
      %v897 = vunpack.c.l.b16 %v779
      %v898 = vunpack.c.l.b16 %v782
      %v899 = vunpack.c.l.b16 %v785
      %v900 = vunpack.c.l.b16 %v788
      %v901 = vpack.c.b16 %v885, %v885
      %v902 = vpack.c.b16 %v886, %v886
      %v903 = vpack.c.b16 %v887, %v887
      %v904 = vpack.c.b16 %v888, %v888
      %v905 = vpack.c.b16 %v889, %v889
      %v906 = vpack.c.b16 %v890, %v890
      %v907 = vpack.c.b16 %v891, %v891
      %v908 = vpack.c.b16 %v892, %v892
      %v909 = vpack.c.b16 %v893, %v893
      %v910 = vpack.c.b16 %v894, %v894
      %v911 = vpack.c.b16 %v895, %v895
      %v912 = vpack.c.b16 %v896, %v896
      %v913 = vpack.c.b16 %v897, %v897
      %v914 = vpack.c.b16 %v898, %v898
      %v915 = vpack.c.b16 %v899, %v899
      %v916 = vpack.c.b16 %v900, %v900
      %vm917 = vsmask.f32 7424
      %v919 = vshrl.u32 %v853, 16
      %v921 = vshll.u32 %v853, 16
      %v923 = vrot.slane %v921, 1
      %v924 = vor.u32 %v919, %v923
      %v926 = vshll.u32 %v901, 16
      %v928 = vrot.slane %v926, 1
      %v929 = vsel %vm917, %v924, %v928
      %v931 = vshrl.u32 %v854, 16
      %v933 = vshll.u32 %v854, 16
      %v935 = vrot.slane %v933, 1
      %v936 = vor.u32 %v931, %v935
      %v938 = vshll.u32 %v902, 16
      %v940 = vrot.slane %v938, 1
      %v941 = vsel %vm917, %v936, %v940
      %v943 = vshrl.u32 %v855, 16
      %v945 = vshll.u32 %v855, 16
      %v947 = vrot.slane %v945, 1
      %v948 = vor.u32 %v943, %v947
      %v950 = vshll.u32 %v903, 16
      %v952 = vrot.slane %v950, 1
      %v953 = vsel %vm917, %v948, %v952
      %v955 = vshrl.u32 %v856, 16
      %v957 = vshll.u32 %v856, 16
      %v959 = vrot.slane %v957, 1
      %v960 = vor.u32 %v955, %v959
      %v962 = vshll.u32 %v904, 16
      %v964 = vrot.slane %v962, 1
      %v965 = vsel %vm917, %v960, %v964
      %v967 = vshrl.u32 %v857, 16
      %v969 = vshll.u32 %v857, 16
      %v971 = vrot.slane %v969, 1
      %v972 = vor.u32 %v967, %v971
      %v974 = vshll.u32 %v905, 16
      %v976 = vrot.slane %v974, 1
      %v977 = vsel %vm917, %v972, %v976
      %v979 = vshrl.u32 %v858, 16
      %v981 = vshll.u32 %v858, 16
      %v983 = vrot.slane %v981, 1
      %v984 = vor.u32 %v979, %v983
      %v986 = vshll.u32 %v906, 16
      %v988 = vrot.slane %v986, 1
      %v989 = vsel %vm917, %v984, %v988
      %v991 = vshrl.u32 %v859, 16
      %v993 = vshll.u32 %v859, 16
      %v995 = vrot.slane %v993, 1
      %v996 = vor.u32 %v991, %v995
      %v998 = vshll.u32 %v907, 16
      %v1000 = vrot.slane %v998, 1
      %v1001 = vsel %vm917, %v996, %v1000
      %v1003 = vshrl.u32 %v860, 16
      %v1005 = vshll.u32 %v860, 16
      %v1007 = vrot.slane %v1005, 1
      %v1008 = vor.u32 %v1003, %v1007
      %v1010 = vshll.u32 %v908, 16
      %v1012 = vrot.slane %v1010, 1
      %v1013 = vsel %vm917, %v1008, %v1012
      %v1015 = vshrl.u32 %v861, 16
      %v1017 = vshll.u32 %v861, 16
      %v1019 = vrot.slane %v1017, 1
      %v1020 = vor.u32 %v1015, %v1019
      %v1022 = vshll.u32 %v909, 16
      %v1024 = vrot.slane %v1022, 1
      %v1025 = vsel %vm917, %v1020, %v1024
      %v1027 = vshrl.u32 %v862, 16
      %v1029 = vshll.u32 %v862, 16
      %v1031 = vrot.slane %v1029, 1
      %v1032 = vor.u32 %v1027, %v1031
      %v1034 = vshll.u32 %v910, 16
      %v1036 = vrot.slane %v1034, 1
      %v1037 = vsel %vm917, %v1032, %v1036
      %v1039 = vshrl.u32 %v863, 16
      %v1041 = vshll.u32 %v863, 16
      %v1043 = vrot.slane %v1041, 1
      %v1044 = vor.u32 %v1039, %v1043
      %v1046 = vshll.u32 %v911, 16
      %v1048 = vrot.slane %v1046, 1
      %v1049 = vsel %vm917, %v1044, %v1048
      %v1051 = vshrl.u32 %v864, 16
      %v1053 = vshll.u32 %v864, 16
      %v1055 = vrot.slane %v1053, 1
      %v1056 = vor.u32 %v1051, %v1055
      %v1058 = vshll.u32 %v912, 16
      %v1060 = vrot.slane %v1058, 1
      %v1061 = vsel %vm917, %v1056, %v1060
      %v1063 = vshrl.u32 %v865, 16
      %v1065 = vshll.u32 %v865, 16
      %v1067 = vrot.slane %v1065, 1
      %v1068 = vor.u32 %v1063, %v1067
      %v1070 = vshll.u32 %v913, 16
      %v1072 = vrot.slane %v1070, 1
      %v1073 = vsel %vm917, %v1068, %v1072
      %v1075 = vshrl.u32 %v866, 16
      %v1077 = vshll.u32 %v866, 16
      %v1079 = vrot.slane %v1077, 1
      %v1080 = vor.u32 %v1075, %v1079
      %v1082 = vshll.u32 %v914, 16
      %v1084 = vrot.slane %v1082, 1
      %v1085 = vsel %vm917, %v1080, %v1084
      %v1087 = vshrl.u32 %v867, 16
      %v1089 = vshll.u32 %v867, 16
      %v1091 = vrot.slane %v1089, 1
      %v1092 = vor.u32 %v1087, %v1091
      %v1094 = vshll.u32 %v915, 16
      %v1096 = vrot.slane %v1094, 1
      %v1097 = vsel %vm917, %v1092, %v1096
      %v1099 = vshrl.u32 %v868, 16
      %v1101 = vshll.u32 %v868, 16
      %v1103 = vrot.slane %v1101, 1
      %v1104 = vor.u32 %v1099, %v1103
      %v1106 = vshll.u32 %v916, 16
      %v1108 = vrot.slane %v1106, 1
      %v1109 = vsel %vm917, %v1104, %v1108
      %1110 = vrot.lane.b32.xlu0 %v929, 4
      %v1111 = vpop.permute.xlu0 %1110
      %1112 = vrot.lane.b32.xlu0 %v941, 4
      %v1113 = vpop.permute.xlu0 %1112
      %1114 = vrot.lane.b32.xlu0 %v953, 4
      %v1115 = vpop.permute.xlu0 %1114
      %1116 = vrot.lane.b32.xlu0 %v965, 4
      %v1117 = vpop.permute.xlu0 %1116
      %1118 = vrot.lane.b32.xlu0 %v977, 4
      %v1119 = vpop.permute.xlu0 %1118
      %1120 = vrot.lane.b32.xlu0 %v989, 4
      %v1121 = vpop.permute.xlu0 %1120
      %1122 = vrot.lane.b32.xlu0 %v1001, 4
      %v1123 = vpop.permute.xlu0 %1122
      %1124 = vrot.lane.b32.xlu0 %v1013, 4
      %v1125 = vpop.permute.xlu0 %1124
      %1126 = vrot.lane.b32.xlu0 %v1025, 4
      %v1127 = vpop.permute.xlu0 %1126
      %1128 = vrot.lane.b32.xlu0 %v1037, 4
      %v1129 = vpop.permute.xlu0 %1128
      %1130 = vrot.lane.b32.xlu0 %v1049, 4
      %v1131 = vpop.permute.xlu0 %1130
      %1132 = vrot.lane.b32.xlu0 %v1061, 4
      %v1133 = vpop.permute.xlu0 %1132
      %1134 = vrot.lane.b32.xlu0 %v1073, 4
      %v1135 = vpop.permute.xlu0 %1134
      %1136 = vrot.lane.b32.xlu0 %v1085, 4
      %v1137 = vpop.permute.xlu0 %1136
      %1138 = vrot.lane.b32.xlu0 %v1097, 4
      %v1139 = vpop.permute.xlu0 %1138
      %1140 = vrot.lane.b32.xlu0 %v1109, 4
      %v1141 = vpop.permute.xlu0 %1140
      %vm1142 = vcmask 1046528
      %v1143 = vrot.slane %v853, 1
      %v1144 = vrot.slane %v901, 1
      %v1145 = vsel %vm1142, %v1143, %v1144
      %v1146 = vrot.slane %v854, 1
      %v1147 = vrot.slane %v902, 1
      %v1148 = vsel %vm1142, %v1146, %v1147
      %v1149 = vrot.slane %v855, 1
      %v1150 = vrot.slane %v903, 1
      %v1151 = vsel %vm1142, %v1149, %v1150
      %v1152 = vrot.slane %v856, 1
      %v1153 = vrot.slane %v904, 1
      %v1154 = vsel %vm1142, %v1152, %v1153
      %v1155 = vrot.slane %v857, 1
      %v1156 = vrot.slane %v905, 1
      %v1157 = vsel %vm1142, %v1155, %v1156
      %v1158 = vrot.slane %v858, 1
      %v1159 = vrot.slane %v906, 1
      %v1160 = vsel %vm1142, %v1158, %v1159
      %v1161 = vrot.slane %v859, 1
      %v1162 = vrot.slane %v907, 1
      %v1163 = vsel %vm1142, %v1161, %v1162
      %v1164 = vrot.slane %v860, 1
      %v1165 = vrot.slane %v908, 1
      %v1166 = vsel %vm1142, %v1164, %v1165
      %v1167 = vrot.slane %v861, 1
      %v1168 = vrot.slane %v909, 1
      %v1169 = vsel %vm1142, %v1167, %v1168
      %v1170 = vrot.slane %v862, 1
      %v1171 = vrot.slane %v910, 1
      %v1172 = vsel %vm1142, %v1170, %v1171
      %v1173 = vrot.slane %v863, 1
      %v1174 = vrot.slane %v911, 1
      %v1175 = vsel %vm1142, %v1173, %v1174
      %v1176 = vrot.slane %v864, 1
      %v1177 = vrot.slane %v912, 1
      %v1178 = vsel %vm1142, %v1176, %v1177
      %v1179 = vrot.slane %v865, 1
      %v1180 = vrot.slane %v913, 1
      %v1181 = vsel %vm1142, %v1179, %v1180
      %v1182 = vrot.slane %v866, 1
      %v1183 = vrot.slane %v914, 1
      %v1184 = vsel %vm1142, %v1182, %v1183
      %v1185 = vrot.slane %v867, 1
      %v1186 = vrot.slane %v915, 1
      %v1187 = vsel %vm1142, %v1185, %v1186
      %v1188 = vrot.slane %v868, 1
      %v1189 = vrot.slane %v916, 1
      %v1190 = vsel %vm1142, %v1188, %v1189
      %1191 = vrot.lane.b32.xlu0 %v1145, 8
      %v1192 = vpop.permute.xlu0 %1191
      %1193 = vrot.lane.b32.xlu0 %v1148, 8
      %v1194 = vpop.permute.xlu0 %1193
      %1195 = vrot.lane.b32.xlu0 %v1151, 8
      %v1196 = vpop.permute.xlu0 %1195
      %1197 = vrot.lane.b32.xlu0 %v1154, 8
      %v1198 = vpop.permute.xlu0 %1197
      %1199 = vrot.lane.b32.xlu0 %v1157, 8
      %v1200 = vpop.permute.xlu0 %1199
      %1201 = vrot.lane.b32.xlu0 %v1160, 8
      %v1202 = vpop.permute.xlu0 %1201
      %1203 = vrot.lane.b32.xlu0 %v1163, 8
      %v1204 = vpop.permute.xlu0 %1203
      %1205 = vrot.lane.b32.xlu0 %v1166, 8
      %v1206 = vpop.permute.xlu0 %1205
      %1207 = vrot.lane.b32.xlu0 %v1169, 8
      %v1208 = vpop.permute.xlu0 %1207
      %1209 = vrot.lane.b32.xlu0 %v1172, 8
      %v1210 = vpop.permute.xlu0 %1209
      %1211 = vrot.lane.b32.xlu0 %v1175, 8
      %v1212 = vpop.permute.xlu0 %1211
      %1213 = vrot.lane.b32.xlu0 %v1178, 8
      %v1214 = vpop.permute.xlu0 %1213
      %1215 = vrot.lane.b32.xlu0 %v1181, 8
      %v1216 = vpop.permute.xlu0 %1215
      %1217 = vrot.lane.b32.xlu0 %v1184, 8
      %v1218 = vpop.permute.xlu0 %1217
      %1219 = vrot.lane.b32.xlu0 %v1187, 8
      %v1220 = vpop.permute.xlu0 %1219
      %1221 = vrot.lane.b32.xlu0 %v1190, 8
      %v1222 = vpop.permute.xlu0 %1221
      %vm1223 = vcmask 31744
      %v1225 = vsel %vm1223, %v853, %v1111
      %v1227 = vsel %vm1223, %v854, %v1113
      %v1229 = vsel %vm1223, %v855, %v1115
      %v1231 = vsel %vm1223, %v856, %v1117
      %v1233 = vsel %vm1223, %v857, %v1119
      %v1235 = vsel %vm1223, %v858, %v1121
      %v1237 = vsel %vm1223, %v859, %v1123
      %v1239 = vsel %vm1223, %v860, %v1125
      %v1241 = vsel %vm1223, %v861, %v1127
      %v1243 = vsel %vm1223, %v862, %v1129
      %v1245 = vsel %vm1223, %v863, %v1131
      %v1247 = vsel %vm1223, %v864, %v1133
      %v1249 = vsel %vm1223, %v865, %v1135
      %v1251 = vsel %vm1223, %v866, %v1137
      %v1253 = vsel %vm1223, %v867, %v1139
      %v1255 = vsel %vm1223, %v868, %v1141
      %vm1256 = vcmask 64512
      %v1258 = vsel %vm1256, %v1225, %v1192
      %v1260 = vsel %vm1256, %v1227, %v1194
      %v1262 = vsel %vm1256, %v1229, %v1196
      %v1264 = vsel %vm1256, %v1231, %v1198
      %v1266 = vsel %vm1256, %v1233, %v1200
      %v1268 = vsel %vm1256, %v1235, %v1202
      %v1270 = vsel %vm1256, %v1237, %v1204
      %v1272 = vsel %vm1256, %v1239, %v1206
      %v1274 = vsel %vm1256, %v1241, %v1208
      %v1276 = vsel %vm1256, %v1243, %v1210
      %v1278 = vsel %vm1256, %v1245, %v1212
      %v1280 = vsel %vm1256, %v1247, %v1214
      %v1282 = vsel %vm1256, %v1249, %v1216
      %v1284 = vsel %vm1256, %v1251, %v1218
      %v1286 = vsel %vm1256, %v1253, %v1220
      %v1288 = vsel %vm1256, %v1255, %v1222
      %v1289 = vld [vmem:[%s1] sm:$0xf]
      %v1290 = vld [vmem:[%s1 + $0x4] sm:$0x3]
      %v1291 = vld [vmem:[%s692] sm:$0xf]
      %v1292 = vld [vmem:[%s692 + $0x4] sm:$0xf]
      %v1293 = vld [vmem:[%s692 + $0x8] sm:$0x1]
      %v1294 = vld [vmem:[%s692 + $0xc] sm:$0xf]
      %v1295 = vld [vmem:[%s692 + $0x10] sm:$0xf]
      %v1296 = vld [vmem:[%s692 + $0x14] sm:$0x1]
      %v1297 = vld [vmem:[%s692 + $0x18] sm:$0xf]
      %v1298 = vld [vmem:[%s692 + $0x1c] sm:$0xf]
      %v1299 = vld [vmem:[%s692 + $0x20] sm:$0x1]
      %v1300 = vld [vmem:[%s692 + $0x24] sm:$0xf]
      %v1301 = vld [vmem:[%s692 + $0x28] sm:$0xf]
      %v1302 = vld [vmem:[%s692 + $0x2c] sm:$0x1]
      %v1303 = vld [vmem:[%s692 + $0x30] sm:$0xf]
      %v1304 = vld [vmem:[%s692 + $0x34] sm:$0xf]
      %v1305 = vld [vmem:[%s692 + $0x38] sm:$0x1]
      %v1306 = vld [vmem:[%s692 + $0x3c] sm:$0xf]
      %v1307 = vld [vmem:[%s692 + $0x40] sm:$0xf]
      %v1308 = vld [vmem:[%s692 + $0x44] sm:$0x1]
      %v1309 = vld [vmem:[%s692 + $0x48] sm:$0xf]
      %v1310 = vld [vmem:[%s692 + $0x4c] sm:$0xf]
      %v1311 = vld [vmem:[%s692 + $0x50] sm:$0x1]
      %v1312 = vld [vmem:[%s692 + $0x54] sm:$0xf]
      %v1313 = vld [vmem:[%s692 + $0x58] sm:$0xf]
      %v1314 = vld [vmem:[%s692 + $0x5c] sm:$0x1]
      %v1315 = vld [vmem:[%s692 + $0x60] sm:$0xf]
      %v1316 = vld [vmem:[%s692 + $0x64] sm:$0xf]
      %v1317 = vld [vmem:[%s692 + $0x68] sm:$0x1]
      %v1318 = vld [vmem:[%s692 + $0x6c] sm:$0xf]
      %v1319 = vld [vmem:[%s692 + $0x70] sm:$0xf]
      %v1320 = vld [vmem:[%s692 + $0x74] sm:$0x1]
      %v1321 = vld [vmem:[%s692 + $0x78] sm:$0xf]
      %v1322 = vld [vmem:[%s692 + $0x7c] sm:$0xf]
      %v1323 = vld [vmem:[%s692 + $0x80] sm:$0x1]
      %v1324 = vld [vmem:[%s692 + $0x84] sm:$0xf]
      %v1325 = vld [vmem:[%s692 + $0x88] sm:$0xf]
      %v1326 = vld [vmem:[%s692 + $0x8c] sm:$0x1]
      %v1327 = vld [vmem:[%s692 + $0x90] sm:$0xf]
      %v1328 = vld [vmem:[%s692 + $0x94] sm:$0xf]
      %v1329 = vld [vmem:[%s692 + $0x98] sm:$0x1]
      %v1330 = vld [vmem:[%s692 + $0x9c] sm:$0xf]
      %v1331 = vld [vmem:[%s692 + $0xa0] sm:$0xf]
      %v1332 = vld [vmem:[%s692 + $0xa4] sm:$0x1]
      %v1333 = vld [vmem:[%s692 + $0xa8] sm:$0xf]
      %v1334 = vld [vmem:[%s692 + $0xac] sm:$0xf]
      %v1335 = vld [vmem:[%s692 + $0xb0] sm:$0x1]
      %v1336 = vld [vmem:[%s692 + $0xb4] sm:$0xf]
      %v1337 = vld [vmem:[%s692 + $0xb8] sm:$0xf]
      %v1338 = vld [vmem:[%s692 + $0xbc] sm:$0x1]
      %v1371 = vunpack.c.l.b16 %v1291
      %v1372 = vunpack.c.l.b16 %v1292
      %v1373 = vunpack.c.l.b16 %v1294
      %v1374 = vunpack.c.l.b16 %v1295
      %v1375 = vunpack.c.l.b16 %v1297
      %v1376 = vunpack.c.l.b16 %v1298
      %v1377 = vunpack.c.l.b16 %v1300
      %v1378 = vunpack.c.l.b16 %v1301
      %v1379 = vunpack.c.l.b16 %v1303
      %v1380 = vunpack.c.l.b16 %v1304
      %v1381 = vunpack.c.l.b16 %v1306
      %v1382 = vunpack.c.l.b16 %v1307
      %v1383 = vunpack.c.l.b16 %v1309
      %v1384 = vunpack.c.l.b16 %v1310
      %v1385 = vunpack.c.l.b16 %v1312
      %v1386 = vunpack.c.l.b16 %v1313
      %v1387 = vunpack.c.l.b16 %v1315
      %v1388 = vunpack.c.l.b16 %v1316
      %v1389 = vunpack.c.l.b16 %v1318
      %v1390 = vunpack.c.l.b16 %v1319
      %v1391 = vunpack.c.l.b16 %v1321
      %v1392 = vunpack.c.l.b16 %v1322
      %v1393 = vunpack.c.l.b16 %v1324
      %v1394 = vunpack.c.l.b16 %v1325
      %v1395 = vunpack.c.l.b16 %v1327
      %v1396 = vunpack.c.l.b16 %v1328
      %v1397 = vunpack.c.l.b16 %v1330
      %v1398 = vunpack.c.l.b16 %v1331
      %v1399 = vunpack.c.l.b16 %v1333
      %v1400 = vunpack.c.l.b16 %v1334
      %v1401 = vunpack.c.l.b16 %v1336
      %v1402 = vunpack.c.l.b16 %v1337
      %v1403 = vpack.c.b16 %v1372, %v1371
      %v1404 = vpack.c.b16 %v1374, %v1373
      %v1405 = vpack.c.b16 %v1376, %v1375
      %v1406 = vpack.c.b16 %v1378, %v1377
      %v1407 = vpack.c.b16 %v1380, %v1379
      %v1408 = vpack.c.b16 %v1382, %v1381
      %v1409 = vpack.c.b16 %v1384, %v1383
      %v1410 = vpack.c.b16 %v1386, %v1385
      %v1411 = vpack.c.b16 %v1388, %v1387
      %v1412 = vpack.c.b16 %v1390, %v1389
      %v1413 = vpack.c.b16 %v1392, %v1391
      %v1414 = vpack.c.b16 %v1394, %v1393
      %v1415 = vpack.c.b16 %v1396, %v1395
      %v1416 = vpack.c.b16 %v1398, %v1397
      %v1417 = vpack.c.b16 %v1400, %v1399
      %v1418 = vpack.c.b16 %v1402, %v1401
      %v1435 = vunpack.c.l.b16 %v1293
      %v1436 = vunpack.c.l.b16 %v1296
      %v1437 = vunpack.c.l.b16 %v1299
      %v1438 = vunpack.c.l.b16 %v1302
      %v1439 = vunpack.c.l.b16 %v1305
      %v1440 = vunpack.c.l.b16 %v1308
      %v1441 = vunpack.c.l.b16 %v1311
      %v1442 = vunpack.c.l.b16 %v1314
      %v1443 = vunpack.c.l.b16 %v1317
      %v1444 = vunpack.c.l.b16 %v1320
      %v1445 = vunpack.c.l.b16 %v1323
      %v1446 = vunpack.c.l.b16 %v1326
      %v1447 = vunpack.c.l.b16 %v1329
      %v1448 = vunpack.c.l.b16 %v1332
      %v1449 = vunpack.c.l.b16 %v1335
      %v1450 = vunpack.c.l.b16 %v1338
      %v1451 = vpack.c.b16 %v1435, %v1435
      %v1452 = vpack.c.b16 %v1436, %v1436
      %v1453 = vpack.c.b16 %v1437, %v1437
      %v1454 = vpack.c.b16 %v1438, %v1438
      %v1455 = vpack.c.b16 %v1439, %v1439
      %v1456 = vpack.c.b16 %v1440, %v1440
      %v1457 = vpack.c.b16 %v1441, %v1441
      %v1458 = vpack.c.b16 %v1442, %v1442
      %v1459 = vpack.c.b16 %v1443, %v1443
      %v1460 = vpack.c.b16 %v1444, %v1444
      %v1461 = vpack.c.b16 %v1445, %v1445
      %v1462 = vpack.c.b16 %v1446, %v1446
      %v1463 = vpack.c.b16 %v1447, %v1447
      %v1464 = vpack.c.b16 %v1448, %v1448
      %v1465 = vpack.c.b16 %v1449, %v1449
      %v1466 = vpack.c.b16 %v1450, %v1450
      %v1468 = vshrl.u32 %v1403, 16
      %v1470 = vshll.u32 %v1403, 16
      %v1472 = vrot.slane %v1470, 1
      %v1473 = vor.u32 %v1468, %v1472
      %v1475 = vshll.u32 %v1451, 16
      %v1477 = vrot.slane %v1475, 1
      %v1478 = vsel %vm917, %v1473, %v1477
      %v1480 = vshrl.u32 %v1404, 16
      %v1482 = vshll.u32 %v1404, 16
      %v1484 = vrot.slane %v1482, 1
      %v1485 = vor.u32 %v1480, %v1484
      %v1487 = vshll.u32 %v1452, 16
      %v1489 = vrot.slane %v1487, 1
      %v1490 = vsel %vm917, %v1485, %v1489
      %v1492 = vshrl.u32 %v1405, 16
      %v1494 = vshll.u32 %v1405, 16
      %v1496 = vrot.slane %v1494, 1
      %v1497 = vor.u32 %v1492, %v1496
      %v1499 = vshll.u32 %v1453, 16
      %v1501 = vrot.slane %v1499, 1
      %v1502 = vsel %vm917, %v1497, %v1501
      %v1504 = vshrl.u32 %v1406, 16
      %v1506 = vshll.u32 %v1406, 16
      %v1508 = vrot.slane %v1506, 1
      %v1509 = vor.u32 %v1504, %v1508
      %v1511 = vshll.u32 %v1454, 16
      %v1513 = vrot.slane %v1511, 1
      %v1514 = vsel %vm917, %v1509, %v1513
      %v1516 = vshrl.u32 %v1407, 16
      %v1518 = vshll.u32 %v1407, 16
      %v1520 = vrot.slane %v1518, 1
      %v1521 = vor.u32 %v1516, %v1520
      %v1523 = vshll.u32 %v1455, 16
      %v1525 = vrot.slane %v1523, 1
      %v1526 = vsel %vm917, %v1521, %v1525
      %v1528 = vshrl.u32 %v1408, 16
      %v1530 = vshll.u32 %v1408, 16
      %v1532 = vrot.slane %v1530, 1
      %v1533 = vor.u32 %v1528, %v1532
      %v1535 = vshll.u32 %v1456, 16
      %v1537 = vrot.slane %v1535, 1
      %v1538 = vsel %vm917, %v1533, %v1537
      %v1540 = vshrl.u32 %v1409, 16
      %v1542 = vshll.u32 %v1409, 16
      %v1544 = vrot.slane %v1542, 1
      %v1545 = vor.u32 %v1540, %v1544
      %v1547 = vshll.u32 %v1457, 16
      %v1549 = vrot.slane %v1547, 1
      %v1550 = vsel %vm917, %v1545, %v1549
      %v1552 = vshrl.u32 %v1410, 16
      %v1554 = vshll.u32 %v1410, 16
      %v1556 = vrot.slane %v1554, 1
      %v1557 = vor.u32 %v1552, %v1556
      %v1559 = vshll.u32 %v1458, 16
      %v1561 = vrot.slane %v1559, 1
      %v1562 = vsel %vm917, %v1557, %v1561
      %v1564 = vshrl.u32 %v1411, 16
      %v1566 = vshll.u32 %v1411, 16
      %v1568 = vrot.slane %v1566, 1
      %v1569 = vor.u32 %v1564, %v1568
      %v1571 = vshll.u32 %v1459, 16
      %v1573 = vrot.slane %v1571, 1
      %v1574 = vsel %vm917, %v1569, %v1573
      %v1576 = vshrl.u32 %v1412, 16
      %v1578 = vshll.u32 %v1412, 16
      %v1580 = vrot.slane %v1578, 1
      %v1581 = vor.u32 %v1576, %v1580
      %v1583 = vshll.u32 %v1460, 16
      %v1585 = vrot.slane %v1583, 1
      %v1586 = vsel %vm917, %v1581, %v1585
      %v1588 = vshrl.u32 %v1413, 16
      %v1590 = vshll.u32 %v1413, 16
      %v1592 = vrot.slane %v1590, 1
      %v1593 = vor.u32 %v1588, %v1592
      %v1595 = vshll.u32 %v1461, 16
      %v1597 = vrot.slane %v1595, 1
      %v1598 = vsel %vm917, %v1593, %v1597
      %v1600 = vshrl.u32 %v1414, 16
      %v1602 = vshll.u32 %v1414, 16
      %v1604 = vrot.slane %v1602, 1
      %v1605 = vor.u32 %v1600, %v1604
      %v1607 = vshll.u32 %v1462, 16
      %v1609 = vrot.slane %v1607, 1
      %v1610 = vsel %vm917, %v1605, %v1609
      %v1612 = vshrl.u32 %v1415, 16
      %v1614 = vshll.u32 %v1415, 16
      %v1616 = vrot.slane %v1614, 1
      %v1617 = vor.u32 %v1612, %v1616
      %v1619 = vshll.u32 %v1463, 16
      %v1621 = vrot.slane %v1619, 1
      %v1622 = vsel %vm917, %v1617, %v1621
      %v1624 = vshrl.u32 %v1416, 16
      %v1626 = vshll.u32 %v1416, 16
      %v1628 = vrot.slane %v1626, 1
      %v1629 = vor.u32 %v1624, %v1628
      %v1631 = vshll.u32 %v1464, 16
      %v1633 = vrot.slane %v1631, 1
      %v1634 = vsel %vm917, %v1629, %v1633
      %v1636 = vshrl.u32 %v1417, 16
      %v1638 = vshll.u32 %v1417, 16
      %v1640 = vrot.slane %v1638, 1
      %v1641 = vor.u32 %v1636, %v1640
      %v1643 = vshll.u32 %v1465, 16
      %v1645 = vrot.slane %v1643, 1
      %v1646 = vsel %vm917, %v1641, %v1645
      %v1648 = vshrl.u32 %v1418, 16
      %v1650 = vshll.u32 %v1418, 16
      %v1652 = vrot.slane %v1650, 1
      %v1653 = vor.u32 %v1648, %v1652
      %v1655 = vshll.u32 %v1466, 16
      %v1657 = vrot.slane %v1655, 1
      %v1658 = vsel %vm917, %v1653, %v1657
      %1659 = vrot.lane.b32.xlu0 %v1478, 4
      %v1660 = vpop.permute.xlu0 %1659
      %1661 = vrot.lane.b32.xlu0 %v1490, 4
      %v1662 = vpop.permute.xlu0 %1661
      %1663 = vrot.lane.b32.xlu0 %v1502, 4
      %v1664 = vpop.permute.xlu0 %1663
      %1665 = vrot.lane.b32.xlu0 %v1514, 4
      %v1666 = vpop.permute.xlu0 %1665
      %1667 = vrot.lane.b32.xlu0 %v1526, 4
      %v1668 = vpop.permute.xlu0 %1667
      %1669 = vrot.lane.b32.xlu0 %v1538, 4
      %v1670 = vpop.permute.xlu0 %1669
      %1671 = vrot.lane.b32.xlu0 %v1550, 4
      %v1672 = vpop.permute.xlu0 %1671
      %1673 = vrot.lane.b32.xlu0 %v1562, 4
      %v1674 = vpop.permute.xlu0 %1673
      %1675 = vrot.lane.b32.xlu0 %v1574, 4
      %v1676 = vpop.permute.xlu0 %1675
      %1677 = vrot.lane.b32.xlu0 %v1586, 4
      %v1678 = vpop.permute.xlu0 %1677
      %1679 = vrot.lane.b32.xlu0 %v1598, 4
      %v1680 = vpop.permute.xlu0 %1679
      %1681 = vrot.lane.b32.xlu0 %v1610, 4
      %v1682 = vpop.permute.xlu0 %1681
      %1683 = vrot.lane.b32.xlu0 %v1622, 4
      %v1684 = vpop.permute.xlu0 %1683
      %1685 = vrot.lane.b32.xlu0 %v1634, 4
      %v1686 = vpop.permute.xlu0 %1685
      %1687 = vrot.lane.b32.xlu0 %v1646, 4
      %v1688 = vpop.permute.xlu0 %1687
      %1689 = vrot.lane.b32.xlu0 %v1658, 4
      %v1690 = vpop.permute.xlu0 %1689
      %v1691 = vrot.slane %v1403, 1
      %v1692 = vrot.slane %v1451, 1
      %v1693 = vsel %vm1142, %v1691, %v1692
      %v1694 = vrot.slane %v1404, 1
      %v1695 = vrot.slane %v1452, 1
      %v1696 = vsel %vm1142, %v1694, %v1695
      %v1697 = vrot.slane %v1405, 1
      %v1698 = vrot.slane %v1453, 1
      %v1699 = vsel %vm1142, %v1697, %v1698
      %v1700 = vrot.slane %v1406, 1
      %v1701 = vrot.slane %v1454, 1
      %v1702 = vsel %vm1142, %v1700, %v1701
      %v1703 = vrot.slane %v1407, 1
      %v1704 = vrot.slane %v1455, 1
      %v1705 = vsel %vm1142, %v1703, %v1704
      %v1706 = vrot.slane %v1408, 1
      %v1707 = vrot.slane %v1456, 1
      %v1708 = vsel %vm1142, %v1706, %v1707
      %v1709 = vrot.slane %v1409, 1
      %v1710 = vrot.slane %v1457, 1
      %v1711 = vsel %vm1142, %v1709, %v1710
      %v1712 = vrot.slane %v1410, 1
      %v1713 = vrot.slane %v1458, 1
      %v1714 = vsel %vm1142, %v1712, %v1713
      %v1715 = vrot.slane %v1411, 1
      %v1716 = vrot.slane %v1459, 1
      %v1717 = vsel %vm1142, %v1715, %v1716
      %v1718 = vrot.slane %v1412, 1
      %v1719 = vrot.slane %v1460, 1
      %v1720 = vsel %vm1142, %v1718, %v1719
      %v1721 = vrot.slane %v1413, 1
      %v1722 = vrot.slane %v1461, 1
      %v1723 = vsel %vm1142, %v1721, %v1722
      %v1724 = vrot.slane %v1414, 1
      %v1725 = vrot.slane %v1462, 1
      %v1726 = vsel %vm1142, %v1724, %v1725
      %v1727 = vrot.slane %v1415, 1
      %v1728 = vrot.slane %v1463, 1
      %v1729 = vsel %vm1142, %v1727, %v1728
      %v1730 = vrot.slane %v1416, 1
      %v1731 = vrot.slane %v1464, 1
      %v1732 = vsel %vm1142, %v1730, %v1731
      %v1733 = vrot.slane %v1417, 1
      %v1734 = vrot.slane %v1465, 1
      %v1735 = vsel %vm1142, %v1733, %v1734
      %v1736 = vrot.slane %v1418, 1
      %v1737 = vrot.slane %v1466, 1
      %v1738 = vsel %vm1142, %v1736, %v1737
      %1739 = vrot.lane.b32.xlu0 %v1693, 8
      %v1740 = vpop.permute.xlu0 %1739
      %1741 = vrot.lane.b32.xlu0 %v1696, 8
      %v1742 = vpop.permute.xlu0 %1741
      %1743 = vrot.lane.b32.xlu0 %v1699, 8
      %v1744 = vpop.permute.xlu0 %1743
      %1745 = vrot.lane.b32.xlu0 %v1702, 8
      %v1746 = vpop.permute.xlu0 %1745
      %1747 = vrot.lane.b32.xlu0 %v1705, 8
      %v1748 = vpop.permute.xlu0 %1747
      %1749 = vrot.lane.b32.xlu0 %v1708, 8
      %v1750 = vpop.permute.xlu0 %1749
      %1751 = vrot.lane.b32.xlu0 %v1711, 8
      %v1752 = vpop.permute.xlu0 %1751
      %1753 = vrot.lane.b32.xlu0 %v1714, 8
      %v1754 = vpop.permute.xlu0 %1753
      %1755 = vrot.lane.b32.xlu0 %v1717, 8
      %v1756 = vpop.permute.xlu0 %1755
      %1757 = vrot.lane.b32.xlu0 %v1720, 8
      %v1758 = vpop.permute.xlu0 %1757
      %1759 = vrot.lane.b32.xlu0 %v1723, 8
      %v1760 = vpop.permute.xlu0 %1759
      %1761 = vrot.lane.b32.xlu0 %v1726, 8
      %v1762 = vpop.permute.xlu0 %1761
      %1763 = vrot.lane.b32.xlu0 %v1729, 8
      %v1764 = vpop.permute.xlu0 %1763
      %1765 = vrot.lane.b32.xlu0 %v1732, 8
      %v1766 = vpop.permute.xlu0 %1765
      %1767 = vrot.lane.b32.xlu0 %v1735, 8
      %v1768 = vpop.permute.xlu0 %1767
      %1769 = vrot.lane.b32.xlu0 %v1738, 8
      %v1770 = vpop.permute.xlu0 %1769
      %v1772 = vsel %vm1223, %v1403, %v1660
      %v1774 = vsel %vm1223, %v1404, %v1662
      %v1776 = vsel %vm1223, %v1405, %v1664
      %v1778 = vsel %vm1223, %v1406, %v1666
      %v1780 = vsel %vm1223, %v1407, %v1668
      %v1782 = vsel %vm1223, %v1408, %v1670
      %v1784 = vsel %vm1223, %v1409, %v1672
      %v1786 = vsel %vm1223, %v1410, %v1674
      %v1788 = vsel %vm1223, %v1411, %v1676
      %v1790 = vsel %vm1223, %v1412, %v1678
      %v1792 = vsel %vm1223, %v1413, %v1680
      %v1794 = vsel %vm1223, %v1414, %v1682
      %v1796 = vsel %vm1223, %v1415, %v1684
      %v1798 = vsel %vm1223, %v1416, %v1686
      %v1800 = vsel %vm1223, %v1417, %v1688
      %v1802 = vsel %vm1223, %v1418, %v1690
      %v1804 = vsel %vm1256, %v1772, %v1740
      %v1806 = vsel %vm1256, %v1774, %v1742
      %v1808 = vsel %vm1256, %v1776, %v1744
      %v1810 = vsel %vm1256, %v1778, %v1746
      %v1812 = vsel %vm1256, %v1780, %v1748
      %v1814 = vsel %vm1256, %v1782, %v1750
      %v1816 = vsel %vm1256, %v1784, %v1752
      %v1818 = vsel %vm1256, %v1786, %v1754
      %v1820 = vsel %vm1256, %v1788, %v1756
      %v1822 = vsel %vm1256, %v1790, %v1758
      %v1824 = vsel %vm1256, %v1792, %v1760
      %v1826 = vsel %vm1256, %v1794, %v1762
      %v1828 = vsel %vm1256, %v1796, %v1764
      %v1830 = vsel %vm1256, %v1798, %v1766
      %v1832 = vsel %vm1256, %v1800, %v1768
      %v1834 = vsel %vm1256, %v1802, %v1770
      %s1835 = scalar_lea.vmem %s1, 8
      %v1836 = vld [vmem:[%s1835] sm:$0xf]
      %v1837 = vld [vmem:[%s1835 + $0x4] sm:$0x3]
      %v1840 = vunpack.c.l.b16 %v1836
      %v1841 = vunpack.c.l.b16 %v1837
      %v1842 = vpack.c.b16 %v1841, %v1840
      %vm1843 = vcmask 97280
      %v1844 = vsel %vm1843, %v1804, 0
      %v1846 = vsel %vm1843, %v1806, 0
      %v1848 = vsel %vm1843, %v1808, 0
      %v1850 = vsel %vm1843, %v1810, 0
      %v1852 = vsel %vm1843, %v1812, 0
      %v1854 = vsel %vm1843, %v1814, 0
      %v1856 = vsel %vm1843, %v1816, 0
      %v1858 = vsel %vm1843, %v1818, 0
      %v1860 = vsel %vm1843, %v1820, 0
      %v1862 = vsel %vm1843, %v1822, 0
      %v1864 = vsel %vm1843, %v1824, 0
      %v1866 = vsel %vm1843, %v1826, 0
      %v1868 = vsel %vm1843, %v1828, 0
      %v1870 = vsel %vm1843, %v1830, 0
      %v1872 = vsel %vm1843, %v1832, 0
      %v1874 = vsel %vm1843, %v1834, 0
      %vm1876 = vcmask 1045504
      %v1878 = vsel %vm1876, %v1842, 0
      %1880 = vmatprep.subr.bf16.mxu0 0
      %1881 = vmatpush1.bf16.msra.mxu0 %v1878
      %1882 = vmatprep.subr.bf16.mxu0 0
      %1883 = vmatpush1.bf16.msra.mxu0 0
      %1884 = vmatprep.subr.bf16.mxu0 0
      %1885 = vmatpush1.bf16.msra.mxu0 0
      %1886 = vmatprep.subr.bf16.mxu0 0
      %1887 = vmatpush1.bf16.msra.mxu0 0
      %1888 = vmatprep.subr.bf16.mxu0 0
      %1889 = vmatpush1.bf16.msra.mxu0 0
      %1890 = vmatprep.subr.bf16.mxu0 0
      %1891 = vmatpush1.bf16.msra.mxu0 0
      %1892 = vmatprep.subr.bf16.mxu0 0
      %1893 = vmatpush1.bf16.msra.mxu0 0
      %1894 = vmatprep.subr.bf16.mxu0 0
      %1895 = vmatpush1.bf16.msra.mxu0 0
      %1896 = vmatprep.subr.bf16.mxu0 0
      %1897 = vmatpush1.bf16.msra.mxu0 0
      %1898 = vmatprep.subr.bf16.mxu0 0
      %1899 = vmatpush1.bf16.msra.mxu0 0
      %1900 = vmatprep.subr.bf16.mxu0 0
      %1901 = vmatpush1.bf16.msra.mxu0 0
      %1902 = vmatprep.subr.bf16.mxu0 0
      %1903 = vmatpush1.bf16.msra.mxu0 0
      %1904 = vmatprep.subr.bf16.mxu0 0
      %1905 = vmatpush1.bf16.msra.mxu0 0
      %1906 = vmatprep.subr.bf16.mxu0 0
      %1907 = vmatpush1.bf16.msra.mxu0 0
      %1908 = vmatprep.subr.bf16.mxu0 0
      %1909 = vmatpush1.bf16.msra.mxu0 0
      %1910 = vmatprep.subr.bf16.mxu0 0
      %1911 = vmatpush1.bf16.msra.mxu0 0
      %1912 = vmatprep.mubr.bf16.mxu0 0
      %1913 = vmatmul.mubr.bf16.gmra.mrb[0].mxu0 %v1844
      %v1914 = vpop.f32.mrb[0].mxu0
      %v1915 = vadd.f32 0.0, %v1914
      %v1916 = vpop.f32.mrb[0].mxu0
      %v1917 = vpop.f32.mrb[0].mxu0
      %v1918 = vadd.f32 0.0, %v1917
      %v1919 = vpop.f32.mrb[0].mxu0
      %1920 = vmatprep.mubr.bf16.mxu0 0
      %1921 = vmatmul.mubr.bf16.gmra.mrb[0].mxu0 %v1846
      %v1922 = vpop.f32.mrb[0].mxu0
      %v1923 = vadd.f32 0.0, %v1922
      %v1924 = vpop.f32.mrb[0].mxu0
      %v1925 = vpop.f32.mrb[0].mxu0
      %v1926 = vadd.f32 0.0, %v1925
      %v1927 = vpop.f32.mrb[0].mxu0
      %1928 = vmatprep.mubr.bf16.mxu0 0
      %1929 = vmatmul.mubr.bf16.gmra.mrb[0].mxu0 %v1848
      %v1930 = vpop.f32.mrb[0].mxu0
      %v1931 = vadd.f32 0.0, %v1930
      %v1932 = vpop.f32.mrb[0].mxu0
      %v1933 = vpop.f32.mrb[0].mxu0
      %v1934 = vadd.f32 0.0, %v1933
      %v1935 = vpop.f32.mrb[0].mxu0
      %1936 = vmatprep.mubr.bf16.mxu0 0
      %1937 = vmatmul.mubr.bf16.gmra.mrb[0].mxu0 %v1850
      %v1938 = vpop.f32.mrb[0].mxu0
      %v1939 = vadd.f32 0.0, %v1938
      %v1940 = vpop.f32.mrb[0].mxu0
      %v1941 = vpop.f32.mrb[0].mxu0
      %v1942 = vadd.f32 0.0, %v1941
      %v1943 = vpop.f32.mrb[0].mxu0
      %1944 = vmatprep.mubr.bf16.mxu0 0
      %1945 = vmatmul.mubr.bf16.gmra.mrb[0].mxu0 %v1852
      %v1946 = vpop.f32.mrb[0].mxu0
      %v1947 = vadd.f32 0.0, %v1946
      %v1948 = vpop.f32.mrb[0].mxu0
      %v1949 = vpop.f32.mrb[0].mxu0
      %v1950 = vadd.f32 0.0, %v1949
      %v1951 = vpop.f32.mrb[0].mxu0
      %1952 = vmatprep.mubr.bf16.mxu0 0
      %1953 = vmatmul.mubr.bf16.gmra.mrb[0].mxu0 %v1854
      %v1954 = vpop.f32.mrb[0].mxu0
      %v1955 = vadd.f32 0.0, %v1954
      %v1956 = vpop.f32.mrb[0].mxu0
      %v1957 = vpop.f32.mrb[0].mxu0
      %v1958 = vadd.f32 0.0, %v1957
      %v1959 = vpop.f32.mrb[0].mxu0
      %1960 = vmatprep.mubr.bf16.mxu0 0
      %1961 = vmatmul.mubr.bf16.gmra.mrb[0].mxu0 %v1856
      %v1962 = vpop.f32.mrb[0].mxu0
      %v1963 = vadd.f32 0.0, %v1962
      %v1964 = vpop.f32.mrb[0].mxu0
      %v1965 = vpop.f32.mrb[0].mxu0
      %v1966 = vadd.f32 0.0, %v1965
      %v1967 = vpop.f32.mrb[0].mxu0
      %1968 = vmatprep.mubr.bf16.mxu0 0
      %1969 = vmatmul.mubr.bf16.gmra.mrb[0].mxu0 %v1858
      %v1970 = vpop.f32.mrb[0].mxu0
      %v1971 = vadd.f32 0.0, %v1970
      %v1972 = vpop.f32.mrb[0].mxu0
      %v1973 = vpop.f32.mrb[0].mxu0
      %v1974 = vadd.f32 0.0, %v1973
      %v1975 = vpop.f32.mrb[0].mxu0
      %1976 = vmatprep.mubr.bf16.mxu0 0
      %1977 = vmatmul.mubr.bf16.gmra.mrb[0].mxu0 %v1860
      %v1978 = vpop.f32.mrb[0].mxu0
      %v1979 = vadd.f32 0.0, %v1978
      %v1980 = vpop.f32.mrb[0].mxu0
      %v1981 = vpop.f32.mrb[0].mxu0
      %v1982 = vadd.f32 0.0, %v1981
      %v1983 = vpop.f32.mrb[0].mxu0
      %1984 = vmatprep.mubr.bf16.mxu0 0
      %1985 = vmatmul.mubr.bf16.gmra.mrb[0].mxu0 %v1862
      %v1986 = vpop.f32.mrb[0].mxu0
      %v1987 = vadd.f32 0.0, %v1986
      %v1988 = vpop.f32.mrb[0].mxu0
      %v1989 = vpop.f32.mrb[0].mxu0
      %v1990 = vadd.f32 0.0, %v1989
      %v1991 = vpop.f32.mrb[0].mxu0
      %1992 = vmatprep.mubr.bf16.mxu0 0
      %1993 = vmatmul.mubr.bf16.gmra.mrb[0].mxu0 %v1864
      %v1994 = vpop.f32.mrb[0].mxu0
      %v1995 = vadd.f32 0.0, %v1994
      %v1996 = vpop.f32.mrb[0].mxu0
      %v1997 = vpop.f32.mrb[0].mxu0
      %v1998 = vadd.f32 0.0, %v1997
      %v1999 = vpop.f32.mrb[0].mxu0
      %2000 = vmatprep.mubr.bf16.mxu0 0
      %2001 = vmatmul.mubr.bf16.gmra.mrb[0].mxu0 %v1866
      %v2002 = vpop.f32.mrb[0].mxu0
      %v2003 = vadd.f32 0.0, %v2002
      %v2004 = vpop.f32.mrb[0].mxu0
      %v2005 = vpop.f32.mrb[0].mxu0
      %v2006 = vadd.f32 0.0, %v2005
      %v2007 = vpop.f32.mrb[0].mxu0
      %2008 = vmatprep.mubr.bf16.mxu0 0
      %2009 = vmatmul.mubr.bf16.gmra.mrb[0].mxu0 %v1868
      %v2010 = vpop.f32.mrb[0].mxu0
      %v2011 = vadd.f32 0.0, %v2010
      %v2012 = vpop.f32.mrb[0].mxu0
      %v2013 = vpop.f32.mrb[0].mxu0
      %v2014 = vadd.f32 0.0, %v2013
      %v2015 = vpop.f32.mrb[0].mxu0
      %2016 = vmatprep.mubr.bf16.mxu0 0
      %2017 = vmatmul.mubr.bf16.gmra.mrb[0].mxu0 %v1870
      %v2018 = vpop.f32.mrb[0].mxu0
      %v2019 = vadd.f32 0.0, %v2018
      %v2020 = vpop.f32.mrb[0].mxu0
      %v2021 = vpop.f32.mrb[0].mxu0
      %v2022 = vadd.f32 0.0, %v2021
      %v2023 = vpop.f32.mrb[0].mxu0
      %2024 = vmatprep.mubr.bf16.mxu0 0
      %2025 = vmatmul.mubr.bf16.gmra.mrb[0].mxu0 %v1872
      %v2026 = vpop.f32.mrb[0].mxu0
      %v2027 = vadd.f32 0.0, %v2026
      %v2028 = vpop.f32.mrb[0].mxu0
      %v2029 = vpop.f32.mrb[0].mxu0
      %v2030 = vadd.f32 0.0, %v2029
      %v2031 = vpop.f32.mrb[0].mxu0
      %2032 = vmatprep.mubr.bf16.mxu0 0
      %2033 = vmatmul.mubr.bf16.gmra.mrb[0].mxu0 %v1874
      %v2034 = vpop.f32.mrb[0].mxu0
      %v2035 = vadd.f32 0.0, %v2034
      %v2036 = vpop.f32.mrb[0].mxu0
      %v2037 = vpop.f32.mrb[0].mxu0
      %v2038 = vadd.f32 0.0, %v2037
      %v2039 = vpop.f32.mrb[0].mxu0
      %2040 = vdwg.mxu0
      %v2043 = vunpack.c.l.b16 %v1289
      %v2044 = vunpack.c.l.b16 %v1290
      %v2045 = vpack.c.b16 %v2044, %v2043
      %v2046 = vsel %vm1843, %v1258, 0
      %v2048 = vsel %vm1843, %v1260, 0
      %v2050 = vsel %vm1843, %v1262, 0
      %v2052 = vsel %vm1843, %v1264, 0
      %v2054 = vsel %vm1843, %v1266, 0
      %v2056 = vsel %vm1843, %v1268, 0
      %v2058 = vsel %vm1843, %v1270, 0
      %v2060 = vsel %vm1843, %v1272, 0
      %v2062 = vsel %vm1843, %v1274, 0
      %v2064 = vsel %vm1843, %v1276, 0
      %v2066 = vsel %vm1843, %v1278, 0
      %v2068 = vsel %vm1843, %v1280, 0
      %v2070 = vsel %vm1843, %v1282, 0
      %v2072 = vsel %vm1843, %v1284, 0
      %v2074 = vsel %vm1843, %v1286, 0
      %v2076 = vsel %vm1843, %v1288, 0
      %v2079 = vsel %vm1876, %v2045, 0
      %2081 = vmatprep.subr.bf16.mxu0 0
      %2082 = vmatpush1.bf16.msra.mxu0 %v2079
      %2083 = vmatprep.subr.bf16.mxu0 0
      %2084 = vmatpush1.bf16.msra.mxu0 0
      %2085 = vmatprep.subr.bf16.mxu0 0
      %2086 = vmatpush1.bf16.msra.mxu0 0
      %2087 = vmatprep.subr.bf16.mxu0 0
      %2088 = vmatpush1.bf16.msra.mxu0 0
      %2089 = vmatprep.subr.bf16.mxu0 0
      %2090 = vmatpush1.bf16.msra.mxu0 0
      %2091 = vmatprep.subr.bf16.mxu0 0
      %2092 = vmatpush1.bf16.msra.mxu0 0
      %2093 = vmatprep.subr.bf16.mxu0 0
      %2094 = vmatpush1.bf16.msra.mxu0 0
      %2095 = vmatprep.subr.bf16.mxu0 0
      %2096 = vmatpush1.bf16.msra.mxu0 0
      %2097 = vmatprep.subr.bf16.mxu0 0
      %2098 = vmatpush1.bf16.msra.mxu0 0
      %2099 = vmatprep.subr.bf16.mxu0 0
      %2100 = vmatpush1.bf16.msra.mxu0 0
      %2101 = vmatprep.subr.bf16.mxu0 0
      %2102 = vmatpush1.bf16.msra.mxu0 0
      %2103 = vmatprep.subr.bf16.mxu0 0
      %2104 = vmatpush1.bf16.msra.mxu0 0
      %2105 = vmatprep.subr.bf16.mxu0 0
      %2106 = vmatpush1.bf16.msra.mxu0 0
      %2107 = vmatprep.subr.bf16.mxu0 0
      %2108 = vmatpush1.bf16.msra.mxu0 0
      %2109 = vmatprep.subr.bf16.mxu0 0
      %2110 = vmatpush1.bf16.msra.mxu0 0
      %2111 = vmatprep.subr.bf16.mxu0 0
      %2112 = vmatpush1.bf16.msra.mxu0 0
      %2113 = vmatprep.mubr.bf16.mxu0 0
      %2114 = vmatmul.mubr.bf16.gmra.mrb[0].mxu0 %v2046
      %v2115 = vpop.f32.mrb[0].mxu0
      %v2116 = vadd.f32 %v1915, %v2115
      %v2117 = vpop.f32.mrb[0].mxu0
      %v2118 = vpop.f32.mrb[0].mxu0
      %v2119 = vadd.f32 %v1918, %v2118
      %v2120 = vpop.f32.mrb[0].mxu0
      %2121 = vmatprep.mubr.bf16.mxu0 0
      %2122 = vmatmul.mubr.bf16.gmra.mrb[0].mxu0 %v2048
      %v2123 = vpop.f32.mrb[0].mxu0
      %v2124 = vadd.f32 %v1923, %v2123
      %v2125 = vpop.f32.mrb[0].mxu0
      %v2126 = vpop.f32.mrb[0].mxu0
      %v2127 = vadd.f32 %v1926, %v2126
      %v2128 = vpop.f32.mrb[0].mxu0
      %2129 = vmatprep.mubr.bf16.mxu0 0
      %2130 = vmatmul.mubr.bf16.gmra.mrb[0].mxu0 %v2050
      %v2131 = vpop.f32.mrb[0].mxu0
      %v2132 = vadd.f32 %v1931, %v2131
      %v2133 = vpop.f32.mrb[0].mxu0
      %v2134 = vpop.f32.mrb[0].mxu0
      %v2135 = vadd.f32 %v1934, %v2134
      %v2136 = vpop.f32.mrb[0].mxu0
      %2137 = vmatprep.mubr.bf16.mxu0 0
      %2138 = vmatmul.mubr.bf16.gmra.mrb[0].mxu0 %v2052
      %v2139 = vpop.f32.mrb[0].mxu0
      %v2140 = vadd.f32 %v1939, %v2139
      %v2141 = vpop.f32.mrb[0].mxu0
      %v2142 = vpop.f32.mrb[0].mxu0
      %v2143 = vadd.f32 %v1942, %v2142
      %v2144 = vpop.f32.mrb[0].mxu0
      %2145 = vmatprep.mubr.bf16.mxu0 0
      %2146 = vmatmul.mubr.bf16.gmra.mrb[0].mxu0 %v2054
      %v2147 = vpop.f32.mrb[0].mxu0
      %v2148 = vadd.f32 %v1947, %v2147
      %v2149 = vpop.f32.mrb[0].mxu0
      %v2150 = vpop.f32.mrb[0].mxu0
      %v2151 = vadd.f32 %v1950, %v2150
      %v2152 = vpop.f32.mrb[0].mxu0
      %2153 = vmatprep.mubr.bf16.mxu0 0
      %2154 = vmatmul.mubr.bf16.gmra.mrb[0].mxu0 %v2056
      %v2155 = vpop.f32.mrb[0].mxu0
      %v2156 = vadd.f32 %v1955, %v2155
      %v2157 = vpop.f32.mrb[0].mxu0
      %v2158 = vpop.f32.mrb[0].mxu0
      %v2159 = vadd.f32 %v1958, %v2158
      %v2160 = vpop.f32.mrb[0].mxu0
      %2161 = vmatprep.mubr.bf16.mxu0 0
      %2162 = vmatmul.mubr.bf16.gmra.mrb[0].mxu0 %v2058
      %v2163 = vpop.f32.mrb[0].mxu0
      %v2164 = vadd.f32 %v1963, %v2163
      %v2165 = vpop.f32.mrb[0].mxu0
      %v2166 = vpop.f32.mrb[0].mxu0
      %v2167 = vadd.f32 %v1966, %v2166
      %v2168 = vpop.f32.mrb[0].mxu0
      %2169 = vmatprep.mubr.bf16.mxu0 0
      %2170 = vmatmul.mubr.bf16.gmra.mrb[0].mxu0 %v2060
      %v2171 = vpop.f32.mrb[0].mxu0
      %v2172 = vadd.f32 %v1971, %v2171
      %v2173 = vpop.f32.mrb[0].mxu0
      %v2174 = vpop.f32.mrb[0].mxu0
      %v2175 = vadd.f32 %v1974, %v2174
      %v2176 = vpop.f32.mrb[0].mxu0
      %2177 = vmatprep.mubr.bf16.mxu0 0
      %2178 = vmatmul.mubr.bf16.gmra.mrb[0].mxu0 %v2062
      %v2179 = vpop.f32.mrb[0].mxu0
      %v2180 = vadd.f32 %v1979, %v2179
      %v2181 = vpop.f32.mrb[0].mxu0
      %v2182 = vpop.f32.mrb[0].mxu0
      %v2183 = vadd.f32 %v1982, %v2182
      %v2184 = vpop.f32.mrb[0].mxu0
      %2185 = vmatprep.mubr.bf16.mxu0 0
      %2186 = vmatmul.mubr.bf16.gmra.mrb[0].mxu0 %v2064
      %v2187 = vpop.f32.mrb[0].mxu0
      %v2188 = vadd.f32 %v1987, %v2187
      %v2189 = vpop.f32.mrb[0].mxu0
      %v2190 = vpop.f32.mrb[0].mxu0
      %v2191 = vadd.f32 %v1990, %v2190
      %v2192 = vpop.f32.mrb[0].mxu0
      %2193 = vmatprep.mubr.bf16.mxu0 0
      %2194 = vmatmul.mubr.bf16.gmra.mrb[0].mxu0 %v2066
      %v2195 = vpop.f32.mrb[0].mxu0
      %v2196 = vadd.f32 %v1995, %v2195
      %v2197 = vpop.f32.mrb[0].mxu0
      %v2198 = vpop.f32.mrb[0].mxu0
      %v2199 = vadd.f32 %v1998, %v2198
      %v2200 = vpop.f32.mrb[0].mxu0
      %2201 = vmatprep.mubr.bf16.mxu0 0
      %2202 = vmatmul.mubr.bf16.gmra.mrb[0].mxu0 %v2068
      %v2203 = vpop.f32.mrb[0].mxu0
      %v2204 = vadd.f32 %v2003, %v2203
      %v2205 = vpop.f32.mrb[0].mxu0
      %v2206 = vpop.f32.mrb[0].mxu0
      %v2207 = vadd.f32 %v2006, %v2206
      %v2208 = vpop.f32.mrb[0].mxu0
      %2209 = vmatprep.mubr.bf16.mxu0 0
      %2210 = vmatmul.mubr.bf16.gmra.mrb[0].mxu0 %v2070
      %v2211 = vpop.f32.mrb[0].mxu0
      %v2212 = vadd.f32 %v2011, %v2211
      %v2213 = vpop.f32.mrb[0].mxu0
      %v2214 = vpop.f32.mrb[0].mxu0
      %v2215 = vadd.f32 %v2014, %v2214
      %v2216 = vpop.f32.mrb[0].mxu0
      %2217 = vmatprep.mubr.bf16.mxu0 0
      %2218 = vmatmul.mubr.bf16.gmra.mrb[0].mxu0 %v2072
      %v2219 = vpop.f32.mrb[0].mxu0
      %v2220 = vadd.f32 %v2019, %v2219
      %v2221 = vpop.f32.mrb[0].mxu0
      %v2222 = vpop.f32.mrb[0].mxu0
      %v2223 = vadd.f32 %v2022, %v2222
      %v2224 = vpop.f32.mrb[0].mxu0
      %2225 = vmatprep.mubr.bf16.mxu0 0
      %2226 = vmatmul.mubr.bf16.gmra.mrb[0].mxu0 %v2074
      %v2227 = vpop.f32.mrb[0].mxu0
      %v2228 = vadd.f32 %v2027, %v2227
      %v2229 = vpop.f32.mrb[0].mxu0
      %v2230 = vpop.f32.mrb[0].mxu0
      %v2231 = vadd.f32 %v2030, %v2230
      %v2232 = vpop.f32.mrb[0].mxu0
      %2233 = vmatprep.mubr.bf16.mxu0 0
      %2234 = vmatmul.mubr.bf16.gmra.mrb[0].mxu0 %v2076
      %v2235 = vpop.f32.mrb[0].mxu0
      %v2236 = vadd.f32 %v2035, %v2235
      %v2237 = vpop.f32.mrb[0].mxu0
      %v2238 = vpop.f32.mrb[0].mxu0
      %v2239 = vadd.f32 %v2038, %v2238
      %v2240 = vpop.f32.mrb[0].mxu0
      %2241 = vdwg.mxu0
      %s2242 = scalar_lea.vmem [#allocation2], 24
      %v2243 = vld [vmem:[%s2242] sm:$0xf]
      %v2244 = vld [vmem:[%s2242 + $0x4] sm:$0xf]
      %v2245 = vld [vmem:[%s2242 + $0x8] sm:$0x1]
      %v2246 = vld [vmem:[%s2242 + $0xc] sm:$0xf]
      %v2247 = vld [vmem:[%s2242 + $0x10] sm:$0xf]
      %v2248 = vld [vmem:[%s2242 + $0x14] sm:$0x1]
      %v2249 = vld [vmem:[%s2242 + $0x18] sm:$0xf]
      %v2250 = vld [vmem:[%s2242 + $0x1c] sm:$0xf]
      %v2251 = vld [vmem:[%s2242 + $0x20] sm:$0x1]
      %v2252 = vld [vmem:[%s2242 + $0x24] sm:$0xf]
      %v2253 = vld [vmem:[%s2242 + $0x28] sm:$0xf]
      %v2254 = vld [vmem:[%s2242 + $0x2c] sm:$0x1]
      %v2255 = vld [vmem:[%s2242 + $0x30] sm:$0xf]
      %v2256 = vld [vmem:[%s2242 + $0x34] sm:$0xf]
      %v2257 = vld [vmem:[%s2242 + $0x38] sm:$0x1]
      %v2258 = vld [vmem:[%s2242 + $0x3c] sm:$0xf]
      %v2259 = vld [vmem:[%s2242 + $0x40] sm:$0xf]
      %v2260 = vld [vmem:[%s2242 + $0x44] sm:$0x1]
      %v2261 = vld [vmem:[%s2242 + $0x48] sm:$0xf]
      %v2262 = vld [vmem:[%s2242 + $0x4c] sm:$0xf]
      %v2263 = vld [vmem:[%s2242 + $0x50] sm:$0x1]
      %v2264 = vld [vmem:[%s2242 + $0x54] sm:$0xf]
      %v2265 = vld [vmem:[%s2242 + $0x58] sm:$0xf]
      %v2266 = vld [vmem:[%s2242 + $0x5c] sm:$0x1]
      %v2267 = vld [vmem:[%s2242 + $0x60] sm:$0xf]
      %v2268 = vld [vmem:[%s2242 + $0x64] sm:$0xf]
      %v2269 = vld [vmem:[%s2242 + $0x68] sm:$0x1]
      %v2270 = vld [vmem:[%s2242 + $0x6c] sm:$0xf]
      %v2271 = vld [vmem:[%s2242 + $0x70] sm:$0xf]
      %v2272 = vld [vmem:[%s2242 + $0x74] sm:$0x1]
      %v2273 = vld [vmem:[%s2242 + $0x78] sm:$0xf]
      %v2274 = vld [vmem:[%s2242 + $0x7c] sm:$0xf]
      %v2275 = vld [vmem:[%s2242 + $0x80] sm:$0x1]
      %v2276 = vld [vmem:[%s2242 + $0x84] sm:$0xf]
      %v2277 = vld [vmem:[%s2242 + $0x88] sm:$0xf]
      %v2278 = vld [vmem:[%s2242 + $0x8c] sm:$0x1]
      %v2279 = vld [vmem:[%s2242 + $0x90] sm:$0xf]
      %v2280 = vld [vmem:[%s2242 + $0x94] sm:$0xf]
      %v2281 = vld [vmem:[%s2242 + $0x98] sm:$0x1]
      %v2282 = vld [vmem:[%s2242 + $0x9c] sm:$0xf]
      %v2283 = vld [vmem:[%s2242 + $0xa0] sm:$0xf]
      %v2284 = vld [vmem:[%s2242 + $0xa4] sm:$0x1]
      %v2285 = vld [vmem:[%s2242 + $0xa8] sm:$0xf]
      %v2286 = vld [vmem:[%s2242 + $0xac] sm:$0xf]
      %v2287 = vld [vmem:[%s2242 + $0xb0] sm:$0x1]
      %v2288 = vld [vmem:[%s2242 + $0xb4] sm:$0xf]
      %v2289 = vld [vmem:[%s2242 + $0xb8] sm:$0xf]
      %v2290 = vld [vmem:[%s2242 + $0xbc] sm:$0x1]
      %v2323 = vunpack.c.l.b16 %v2243
      %v2324 = vunpack.c.l.b16 %v2244
      %v2325 = vunpack.c.l.b16 %v2246
      %v2326 = vunpack.c.l.b16 %v2247
      %v2327 = vunpack.c.l.b16 %v2249
      %v2328 = vunpack.c.l.b16 %v2250
      %v2329 = vunpack.c.l.b16 %v2252
      %v2330 = vunpack.c.l.b16 %v2253
      %v2331 = vunpack.c.l.b16 %v2255
      %v2332 = vunpack.c.l.b16 %v2256
      %v2333 = vunpack.c.l.b16 %v2258
      %v2334 = vunpack.c.l.b16 %v2259
      %v2335 = vunpack.c.l.b16 %v2261
      %v2336 = vunpack.c.l.b16 %v2262
      %v2337 = vunpack.c.l.b16 %v2264
      %v2338 = vunpack.c.l.b16 %v2265
      %v2339 = vunpack.c.l.b16 %v2267
      %v2340 = vunpack.c.l.b16 %v2268
      %v2341 = vunpack.c.l.b16 %v2270
      %v2342 = vunpack.c.l.b16 %v2271
      %v2343 = vunpack.c.l.b16 %v2273
      %v2344 = vunpack.c.l.b16 %v2274
      %v2345 = vunpack.c.l.b16 %v2276
      %v2346 = vunpack.c.l.b16 %v2277
      %v2347 = vunpack.c.l.b16 %v2279
      %v2348 = vunpack.c.l.b16 %v2280
      %v2349 = vunpack.c.l.b16 %v2282
      %v2350 = vunpack.c.l.b16 %v2283
      %v2351 = vunpack.c.l.b16 %v2285
      %v2352 = vunpack.c.l.b16 %v2286
      %v2353 = vunpack.c.l.b16 %v2288
      %v2354 = vunpack.c.l.b16 %v2289
      %v2355 = vpack.c.b16 %v2324, %v2323
      %v2356 = vpack.c.b16 %v2326, %v2325
      %v2357 = vpack.c.b16 %v2328, %v2327
      %v2358 = vpack.c.b16 %v2330, %v2329
      %v2359 = vpack.c.b16 %v2332, %v2331
      %v2360 = vpack.c.b16 %v2334, %v2333
      %v2361 = vpack.c.b16 %v2336, %v2335
      %v2362 = vpack.c.b16 %v2338, %v2337
      %v2363 = vpack.c.b16 %v2340, %v2339
      %v2364 = vpack.c.b16 %v2342, %v2341
      %v2365 = vpack.c.b16 %v2344, %v2343
      %v2366 = vpack.c.b16 %v2346, %v2345
      %v2367 = vpack.c.b16 %v2348, %v2347
      %v2368 = vpack.c.b16 %v2350, %v2349
      %v2369 = vpack.c.b16 %v2352, %v2351
      %v2370 = vpack.c.b16 %v2354, %v2353
      %v2387 = vunpack.c.l.b16 %v2245
      %v2388 = vunpack.c.l.b16 %v2248
      %v2389 = vunpack.c.l.b16 %v2251
      %v2390 = vunpack.c.l.b16 %v2254
      %v2391 = vunpack.c.l.b16 %v2257
      %v2392 = vunpack.c.l.b16 %v2260
      %v2393 = vunpack.c.l.b16 %v2263
      %v2394 = vunpack.c.l.b16 %v2266
      %v2395 = vunpack.c.l.b16 %v2269
      %v2396 = vunpack.c.l.b16 %v2272
      %v2397 = vunpack.c.l.b16 %v2275
      %v2398 = vunpack.c.l.b16 %v2278
      %v2399 = vunpack.c.l.b16 %v2281
      %v2400 = vunpack.c.l.b16 %v2284
      %v2401 = vunpack.c.l.b16 %v2287
      %v2402 = vunpack.c.l.b16 %v2290
      %v2403 = vpack.c.b16 %v2387, %v2387
      %v2404 = vpack.c.b16 %v2388, %v2388
      %v2405 = vpack.c.b16 %v2389, %v2389
      %v2406 = vpack.c.b16 %v2390, %v2390
      %v2407 = vpack.c.b16 %v2391, %v2391
      %v2408 = vpack.c.b16 %v2392, %v2392
      %v2409 = vpack.c.b16 %v2393, %v2393
      %v2410 = vpack.c.b16 %v2394, %v2394
      %v2411 = vpack.c.b16 %v2395, %v2395
      %v2412 = vpack.c.b16 %v2396, %v2396
      %v2413 = vpack.c.b16 %v2397, %v2397
      %v2414 = vpack.c.b16 %v2398, %v2398
      %v2415 = vpack.c.b16 %v2399, %v2399
      %v2416 = vpack.c.b16 %v2400, %v2400
      %v2417 = vpack.c.b16 %v2401, %v2401
      %v2418 = vpack.c.b16 %v2402, %v2402
      %v2420 = vshrl.u32 %v2355, 16
      %v2422 = vshll.u32 %v2355, 16
      %v2424 = vrot.slane %v2422, 1
      %v2425 = vor.u32 %v2420, %v2424
      %v2427 = vshll.u32 %v2403, 16
      %v2429 = vrot.slane %v2427, 1
      %v2430 = vsel %vm917, %v2425, %v2429
      %v2432 = vshrl.u32 %v2356, 16
      %v2434 = vshll.u32 %v2356, 16
      %v2436 = vrot.slane %v2434, 1
      %v2437 = vor.u32 %v2432, %v2436
      %v2439 = vshll.u32 %v2404, 16
      %v2441 = vrot.slane %v2439, 1
      %v2442 = vsel %vm917, %v2437, %v2441
      %v2444 = vshrl.u32 %v2357, 16
      %v2446 = vshll.u32 %v2357, 16
      %v2448 = vrot.slane %v2446, 1
      %v2449 = vor.u32 %v2444, %v2448
      %v2451 = vshll.u32 %v2405, 16
      %v2453 = vrot.slane %v2451, 1
      %v2454 = vsel %vm917, %v2449, %v2453
      %v2456 = vshrl.u32 %v2358, 16
      %v2458 = vshll.u32 %v2358, 16
      %v2460 = vrot.slane %v2458, 1
      %v2461 = vor.u32 %v2456, %v2460
      %v2463 = vshll.u32 %v2406, 16
      %v2465 = vrot.slane %v2463, 1
      %v2466 = vsel %vm917, %v2461, %v2465
      %v2468 = vshrl.u32 %v2359, 16
      %v2470 = vshll.u32 %v2359, 16
      %v2472 = vrot.slane %v2470, 1
      %v2473 = vor.u32 %v2468, %v2472
      %v2475 = vshll.u32 %v2407, 16
      %v2477 = vrot.slane %v2475, 1
      %v2478 = vsel %vm917, %v2473, %v2477
      %v2480 = vshrl.u32 %v2360, 16
      %v2482 = vshll.u32 %v2360, 16
      %v2484 = vrot.slane %v2482, 1
      %v2485 = vor.u32 %v2480, %v2484
      %v2487 = vshll.u32 %v2408, 16
      %v2489 = vrot.slane %v2487, 1
      %v2490 = vsel %vm917, %v2485, %v2489
      %v2492 = vshrl.u32 %v2361, 16
      %v2494 = vshll.u32 %v2361, 16
      %v2496 = vrot.slane %v2494, 1
      %v2497 = vor.u32 %v2492, %v2496
      %v2499 = vshll.u32 %v2409, 16
      %v2501 = vrot.slane %v2499, 1
      %v2502 = vsel %vm917, %v2497, %v2501
      %v2504 = vshrl.u32 %v2362, 16
      %v2506 = vshll.u32 %v2362, 16
      %v2508 = vrot.slane %v2506, 1
      %v2509 = vor.u32 %v2504, %v2508
      %v2511 = vshll.u32 %v2410, 16
      %v2513 = vrot.slane %v2511, 1
      %v2514 = vsel %vm917, %v2509, %v2513
      %v2516 = vshrl.u32 %v2363, 16
      %v2518 = vshll.u32 %v2363, 16
      %v2520 = vrot.slane %v2518, 1
      %v2521 = vor.u32 %v2516, %v2520
      %v2523 = vshll.u32 %v2411, 16
      %v2525 = vrot.slane %v2523, 1
      %v2526 = vsel %vm917, %v2521, %v2525
      %v2528 = vshrl.u32 %v2364, 16
      %v2530 = vshll.u32 %v2364, 16
      %v2532 = vrot.slane %v2530, 1
      %v2533 = vor.u32 %v2528, %v2532
      %v2535 = vshll.u32 %v2412, 16
      %v2537 = vrot.slane %v2535, 1
      %v2538 = vsel %vm917, %v2533, %v2537
      %v2540 = vshrl.u32 %v2365, 16
      %v2542 = vshll.u32 %v2365, 16
      %v2544 = vrot.slane %v2542, 1
      %v2545 = vor.u32 %v2540, %v2544
      %v2547 = vshll.u32 %v2413, 16
      %v2549 = vrot.slane %v2547, 1
      %v2550 = vsel %vm917, %v2545, %v2549
      %v2552 = vshrl.u32 %v2366, 16
      %v2554 = vshll.u32 %v2366, 16
      %v2556 = vrot.slane %v2554, 1
      %v2557 = vor.u32 %v2552, %v2556
      %v2559 = vshll.u32 %v2414, 16
      %v2561 = vrot.slane %v2559, 1
      %v2562 = vsel %vm917, %v2557, %v2561
      %v2564 = vshrl.u32 %v2367, 16
      %v2566 = vshll.u32 %v2367, 16
      %v2568 = vrot.slane %v2566, 1
      %v2569 = vor.u32 %v2564, %v2568
      %v2571 = vshll.u32 %v2415, 16
      %v2573 = vrot.slane %v2571, 1
      %v2574 = vsel %vm917, %v2569, %v2573
      %v2576 = vshrl.u32 %v2368, 16
      %v2578 = vshll.u32 %v2368, 16
      %v2580 = vrot.slane %v2578, 1
      %v2581 = vor.u32 %v2576, %v2580
      %v2583 = vshll.u32 %v2416, 16
      %v2585 = vrot.slane %v2583, 1
      %v2586 = vsel %vm917, %v2581, %v2585
      %v2588 = vshrl.u32 %v2369, 16
      %v2590 = vshll.u32 %v2369, 16
      %v2592 = vrot.slane %v2590, 1
      %v2593 = vor.u32 %v2588, %v2592
      %v2595 = vshll.u32 %v2417, 16
      %v2597 = vrot.slane %v2595, 1
      %v2598 = vsel %vm917, %v2593, %v2597
      %v2600 = vshrl.u32 %v2370, 16
      %v2602 = vshll.u32 %v2370, 16
      %v2604 = vrot.slane %v2602, 1
      %v2605 = vor.u32 %v2600, %v2604
      %v2607 = vshll.u32 %v2418, 16
      %v2609 = vrot.slane %v2607, 1
      %v2610 = vsel %vm917, %v2605, %v2609
      %2611 = vrot.lane.b32.xlu0 %v2430, 4
      %v2612 = vpop.permute.xlu0 %2611
      %2613 = vrot.lane.b32.xlu0 %v2442, 4
      %v2614 = vpop.permute.xlu0 %2613
      %2615 = vrot.lane.b32.xlu0 %v2454, 4
      %v2616 = vpop.permute.xlu0 %2615
      %2617 = vrot.lane.b32.xlu0 %v2466, 4
      %v2618 = vpop.permute.xlu0 %2617
      %2619 = vrot.lane.b32.xlu0 %v2478, 4
      %v2620 = vpop.permute.xlu0 %2619
      %2621 = vrot.lane.b32.xlu0 %v2490, 4
      %v2622 = vpop.permute.xlu0 %2621
      %2623 = vrot.lane.b32.xlu0 %v2502, 4
      %v2624 = vpop.permute.xlu0 %2623
      %2625 = vrot.lane.b32.xlu0 %v2514, 4
      %v2626 = vpop.permute.xlu0 %2625
      %2627 = vrot.lane.b32.xlu0 %v2526, 4
      %v2628 = vpop.permute.xlu0 %2627
      %2629 = vrot.lane.b32.xlu0 %v2538, 4
      %v2630 = vpop.permute.xlu0 %2629
      %2631 = vrot.lane.b32.xlu0 %v2550, 4
      %v2632 = vpop.permute.xlu0 %2631
      %2633 = vrot.lane.b32.xlu0 %v2562, 4
      %v2634 = vpop.permute.xlu0 %2633
      %2635 = vrot.lane.b32.xlu0 %v2574, 4
      %v2636 = vpop.permute.xlu0 %2635
      %2637 = vrot.lane.b32.xlu0 %v2586, 4
      %v2638 = vpop.permute.xlu0 %2637
      %2639 = vrot.lane.b32.xlu0 %v2598, 4
      %v2640 = vpop.permute.xlu0 %2639
      %2641 = vrot.lane.b32.xlu0 %v2610, 4
      %v2642 = vpop.permute.xlu0 %2641
      %v2643 = vrot.slane %v2355, 1
      %v2644 = vrot.slane %v2403, 1
      %v2645 = vsel %vm1142, %v2643, %v2644
      %v2646 = vrot.slane %v2356, 1
      %v2647 = vrot.slane %v2404, 1
      %v2648 = vsel %vm1142, %v2646, %v2647
      %v2649 = vrot.slane %v2357, 1
      %v2650 = vrot.slane %v2405, 1
      %v2651 = vsel %vm1142, %v2649, %v2650
      %v2652 = vrot.slane %v2358, 1
      %v2653 = vrot.slane %v2406, 1
      %v2654 = vsel %vm1142, %v2652, %v2653
      %v2655 = vrot.slane %v2359, 1
      %v2656 = vrot.slane %v2407, 1
      %v2657 = vsel %vm1142, %v2655, %v2656
      %v2658 = vrot.slane %v2360, 1
      %v2659 = vrot.slane %v2408, 1
      %v2660 = vsel %vm1142, %v2658, %v2659
      %v2661 = vrot.slane %v2361, 1
      %v2662 = vrot.slane %v2409, 1
      %v2663 = vsel %vm1142, %v2661, %v2662
      %v2664 = vrot.slane %v2362, 1
      %v2665 = vrot.slane %v2410, 1
      %v2666 = vsel %vm1142, %v2664, %v2665
      %v2667 = vrot.slane %v2363, 1
      %v2668 = vrot.slane %v2411, 1
      %v2669 = vsel %vm1142, %v2667, %v2668
      %v2670 = vrot.slane %v2364, 1
      %v2671 = vrot.slane %v2412, 1
      %v2672 = vsel %vm1142, %v2670, %v2671
      %v2673 = vrot.slane %v2365, 1
      %v2674 = vrot.slane %v2413, 1
      %v2675 = vsel %vm1142, %v2673, %v2674
      %v2676 = vrot.slane %v2366, 1
      %v2677 = vrot.slane %v2414, 1
      %v2678 = vsel %vm1142, %v2676, %v2677
      %v2679 = vrot.slane %v2367, 1
      %v2680 = vrot.slane %v2415, 1
      %v2681 = vsel %vm1142, %v2679, %v2680
      %v2682 = vrot.slane %v2368, 1
      %v2683 = vrot.slane %v2416, 1
      %v2684 = vsel %vm1142, %v2682, %v2683
      %v2685 = vrot.slane %v2369, 1
      %v2686 = vrot.slane %v2417, 1
      %v2687 = vsel %vm1142, %v2685, %v2686
      %v2688 = vrot.slane %v2370, 1
      %v2689 = vrot.slane %v2418, 1
      %v2690 = vsel %vm1142, %v2688, %v2689
      %2691 = vrot.lane.b32.xlu0 %v2645, 8
      %v2692 = vpop.permute.xlu0 %2691
      %2693 = vrot.lane.b32.xlu0 %v2648, 8
      %v2694 = vpop.permute.xlu0 %2693
      %2695 = vrot.lane.b32.xlu0 %v2651, 8
      %v2696 = vpop.permute.xlu0 %2695
      %2697 = vrot.lane.b32.xlu0 %v2654, 8
      %v2698 = vpop.permute.xlu0 %2697
      %2699 = vrot.lane.b32.xlu0 %v2657, 8
      %v2700 = vpop.permute.xlu0 %2699
      %2701 = vrot.lane.b32.xlu0 %v2660, 8
      %v2702 = vpop.permute.xlu0 %2701
      %2703 = vrot.lane.b32.xlu0 %v2663, 8
      %v2704 = vpop.permute.xlu0 %2703
      %2705 = vrot.lane.b32.xlu0 %v2666, 8
      %v2706 = vpop.permute.xlu0 %2705
      %2707 = vrot.lane.b32.xlu0 %v2669, 8
      %v2708 = vpop.permute.xlu0 %2707
      %2709 = vrot.lane.b32.xlu0 %v2672, 8
      %v2710 = vpop.permute.xlu0 %2709
      %2711 = vrot.lane.b32.xlu0 %v2675, 8
      %v2712 = vpop.permute.xlu0 %2711
      %2713 = vrot.lane.b32.xlu0 %v2678, 8
      %v2714 = vpop.permute.xlu0 %2713
      %2715 = vrot.lane.b32.xlu0 %v2681, 8
      %v2716 = vpop.permute.xlu0 %2715
      %2717 = vrot.lane.b32.xlu0 %v2684, 8
      %v2718 = vpop.permute.xlu0 %2717
      %2719 = vrot.lane.b32.xlu0 %v2687, 8
      %v2720 = vpop.permute.xlu0 %2719
      %2721 = vrot.lane.b32.xlu0 %v2690, 8
      %v2722 = vpop.permute.xlu0 %2721
      %v2724 = vsel %vm1223, %v2355, %v2612
      %v2726 = vsel %vm1223, %v2356, %v2614
      %v2728 = vsel %vm1223, %v2357, %v2616
      %v2730 = vsel %vm1223, %v2358, %v2618
      %v2732 = vsel %vm1223, %v2359, %v2620
      %v2734 = vsel %vm1223, %v2360, %v2622
      %v2736 = vsel %vm1223, %v2361, %v2624
      %v2738 = vsel %vm1223, %v2362, %v2626
      %v2740 = vsel %vm1223, %v2363, %v2628
      %v2742 = vsel %vm1223, %v2364, %v2630
      %v2744 = vsel %vm1223, %v2365, %v2632
      %v2746 = vsel %vm1223, %v2366, %v2634
      %v2748 = vsel %vm1223, %v2367, %v2636
      %v2750 = vsel %vm1223, %v2368, %v2638
      %v2752 = vsel %vm1223, %v2369, %v2640
      %v2754 = vsel %vm1223, %v2370, %v2642
      %v2756 = vsel %vm1256, %v2724, %v2692
      %v2758 = vsel %vm1256, %v2726, %v2694
      %v2760 = vsel %vm1256, %v2728, %v2696
      %v2762 = vsel %vm1256, %v2730, %v2698
      %v2764 = vsel %vm1256, %v2732, %v2700
      %v2766 = vsel %vm1256, %v2734, %v2702
      %v2768 = vsel %vm1256, %v2736, %v2704
      %v2770 = vsel %vm1256, %v2738, %v2706
      %v2772 = vsel %vm1256, %v2740, %v2708
      %v2774 = vsel %vm1256, %v2742, %v2710
      %v2776 = vsel %vm1256, %v2744, %v2712
      %v2778 = vsel %vm1256, %v2746, %v2714
      %v2780 = vsel %vm1256, %v2748, %v2716
      %v2782 = vsel %vm1256, %v2750, %v2718
      %v2784 = vsel %vm1256, %v2752, %v2720
      %v2786 = vsel %vm1256, %v2754, %v2722
      %s2787 = scalar_lea.vmem %s1, 16
      %v2788 = vld [vmem:[%s2787] sm:$0xf]
      %v2789 = vld [vmem:[%s2787 + $0x4] sm:$0x3]
      %v2792 = vunpack.c.l.b16 %v2788
      %v2793 = vunpack.c.l.b16 %v2789
      %v2794 = vpack.c.b16 %v2793, %v2792
      %v2795 = vsel %vm1843, %v2756, 0
      %v2797 = vsel %vm1843, %v2758, 0
      %v2799 = vsel %vm1843, %v2760, 0
      %v2801 = vsel %vm1843, %v2762, 0
      %v2803 = vsel %vm1843, %v2764, 0
      %v2805 = vsel %vm1843, %v2766, 0
      %v2807 = vsel %vm1843, %v2768, 0
      %v2809 = vsel %vm1843, %v2770, 0
      %v2811 = vsel %vm1843, %v2772, 0
      %v2813 = vsel %vm1843, %v2774, 0
      %v2815 = vsel %vm1843, %v2776, 0
      %v2817 = vsel %vm1843, %v2778, 0
      %v2819 = vsel %vm1843, %v2780, 0
      %v2821 = vsel %vm1843, %v2782, 0
      %v2823 = vsel %vm1843, %v2784, 0
      %v2825 = vsel %vm1843, %v2786, 0
      %v2828 = vsel %vm1876, %v2794, 0
      %2830 = vmatprep.subr.bf16.mxu0 0
      %2831 = vmatpush1.bf16.msra.mxu0 %v2828
      %2832 = vmatprep.subr.bf16.mxu0 0
      %2833 = vmatpush1.bf16.msra.mxu0 0
      %2834 = vmatprep.subr.bf16.mxu0 0
      %2835 = vmatpush1.bf16.msra.mxu0 0
      %2836 = vmatprep.subr.bf16.mxu0 0
      %2837 = vmatpush1.bf16.msra.mxu0 0
      %2838 = vmatprep.subr.bf16.mxu0 0
      %2839 = vmatpush1.bf16.msra.mxu0 0
      %2840 = vmatprep.subr.bf16.mxu0 0
      %2841 = vmatpush1.bf16.msra.mxu0 0
      %2842 = vmatprep.subr.bf16.mxu0 0
      %2843 = vmatpush1.bf16.msra.mxu0 0
      %2844 = vmatprep.subr.bf16.mxu0 0
      %2845 = vmatpush1.bf16.msra.mxu0 0
      %2846 = vmatprep.subr.bf16.mxu0 0
      %2847 = vmatpush1.bf16.msra.mxu0 0
      %2848 = vmatprep.subr.bf16.mxu0 0
      %2849 = vmatpush1.bf16.msra.mxu0 0
      %2850 = vmatprep.subr.bf16.mxu0 0
      %2851 = vmatpush1.bf16.msra.mxu0 0
      %2852 = vmatprep.subr.bf16.mxu0 0
      %2853 = vmatpush1.bf16.msra.mxu0 0
      %2854 = vmatprep.subr.bf16.mxu0 0
      %2855 = vmatpush1.bf16.msra.mxu0 0
      %2856 = vmatprep.subr.bf16.mxu0 0
      %2857 = vmatpush1.bf16.msra.mxu0 0
      %2858 = vmatprep.subr.bf16.mxu0 0
      %2859 = vmatpush1.bf16.msra.mxu0 0
      %2860 = vmatprep.subr.bf16.mxu0 0
      %2861 = vmatpush1.bf16.msra.mxu0 0
      %2862 = vmatprep.mubr.bf16.mxu0 0
      %2863 = vmatmul.mubr.bf16.gmra.mrb[0].mxu0 %v2795
      %v2864 = vpop.f32.mrb[0].mxu0
      %v2865 = vadd.f32 0.0, %v2864
      %v2866 = vpop.f32.mrb[0].mxu0
      %v2867 = vpop.f32.mrb[0].mxu0
      %v2868 = vadd.f32 0.0, %v2867
      %v2869 = vpop.f32.mrb[0].mxu0
      %2870 = vmatprep.mubr.bf16.mxu0 0
      %2871 = vmatmul.mubr.bf16.gmra.mrb[0].mxu0 %v2797
      %v2872 = vpop.f32.mrb[0].mxu0
      %v2873 = vadd.f32 0.0, %v2872
      %v2874 = vpop.f32.mrb[0].mxu0
      %v2875 = vpop.f32.mrb[0].mxu0
      %v2876 = vadd.f32 0.0, %v2875
      %v2877 = vpop.f32.mrb[0].mxu0
      %2878 = vmatprep.mubr.bf16.mxu0 0
      %2879 = vmatmul.mubr.bf16.gmra.mrb[0].mxu0 %v2799
      %v2880 = vpop.f32.mrb[0].mxu0
      %v2881 = vadd.f32 0.0, %v2880
      %v2882 = vpop.f32.mrb[0].mxu0
      %v2883 = vpop.f32.mrb[0].mxu0
      %v2884 = vadd.f32 0.0, %v2883
      %v2885 = vpop.f32.mrb[0].mxu0
      %2886 = vmatprep.mubr.bf16.mxu0 0
      %2887 = vmatmul.mubr.bf16.gmra.mrb[0].mxu0 %v2801
      %v2888 = vpop.f32.mrb[0].mxu0
      %v2889 = vadd.f32 0.0, %v2888
      %v2890 = vpop.f32.mrb[0].mxu0
      %v2891 = vpop.f32.mrb[0].mxu0
      %v2892 = vadd.f32 0.0, %v2891
      %v2893 = vpop.f32.mrb[0].mxu0
      %2894 = vmatprep.mubr.bf16.mxu0 0
      %2895 = vmatmul.mubr.bf16.gmra.mrb[0].mxu0 %v2803
      %v2896 = vpop.f32.mrb[0].mxu0
      %v2897 = vadd.f32 0.0, %v2896
      %v2898 = vpop.f32.mrb[0].mxu0
      %v2899 = vpop.f32.mrb[0].mxu0
      %v2900 = vadd.f32 0.0, %v2899
      %v2901 = vpop.f32.mrb[0].mxu0
      %2902 = vmatprep.mubr.bf16.mxu0 0
      %2903 = vmatmul.mubr.bf16.gmra.mrb[0].mxu0 %v2805
      %v2904 = vpop.f32.mrb[0].mxu0
      %v2905 = vadd.f32 0.0, %v2904
      %v2906 = vpop.f32.mrb[0].mxu0
      %v2907 = vpop.f32.mrb[0].mxu0
      %v2908 = vadd.f32 0.0, %v2907
      %v2909 = vpop.f32.mrb[0].mxu0
      %2910 = vmatprep.mubr.bf16.mxu0 0
      %2911 = vmatmul.mubr.bf16.gmra.mrb[0].mxu0 %v2807
      %v2912 = vpop.f32.mrb[0].mxu0
      %v2913 = vadd.f32 0.0, %v2912
      %v2914 = vpop.f32.mrb[0].mxu0
      %v2915 = vpop.f32.mrb[0].mxu0
      %v2916 = vadd.f32 0.0, %v2915
      %v2917 = vpop.f32.mrb[0].mxu0
      %2918 = vmatprep.mubr.bf16.mxu0 0
      %2919 = vmatmul.mubr.bf16.gmra.mrb[0].mxu0 %v2809
      %v2920 = vpop.f32.mrb[0].mxu0
      %v2921 = vadd.f32 0.0, %v2920
      %v2922 = vpop.f32.mrb[0].mxu0
      %v2923 = vpop.f32.mrb[0].mxu0
      %v2924 = vadd.f32 0.0, %v2923
      %v2925 = vpop.f32.mrb[0].mxu0
      %2926 = vmatprep.mubr.bf16.mxu0 0
      %2927 = vmatmul.mubr.bf16.gmra.mrb[0].mxu0 %v2811
      %v2928 = vpop.f32.mrb[0].mxu0
      %v2929 = vadd.f32 0.0, %v2928
      %v2930 = vpop.f32.mrb[0].mxu0
      %v2931 = vpop.f32.mrb[0].mxu0
      %v2932 = vadd.f32 0.0, %v2931
      %v2933 = vpop.f32.mrb[0].mxu0
      %2934 = vmatprep.mubr.bf16.mxu0 0
      %2935 = vmatmul.mubr.bf16.gmra.mrb[0].mxu0 %v2813
      %v2936 = vpop.f32.mrb[0].mxu0
      %v2937 = vadd.f32 0.0, %v2936
      %v2938 = vpop.f32.mrb[0].mxu0
      %v2939 = vpop.f32.mrb[0].mxu0
      %v2940 = vadd.f32 0.0, %v2939
      %v2941 = vpop.f32.mrb[0].mxu0
      %2942 = vmatprep.mubr.bf16.mxu0 0
      %2943 = vmatmul.mubr.bf16.gmra.mrb[0].mxu0 %v2815
      %v2944 = vpop.f32.mrb[0].mxu0
      %v2945 = vadd.f32 0.0, %v2944
      %v2946 = vpop.f32.mrb[0].mxu0
      %v2947 = vpop.f32.mrb[0].mxu0
      %v2948 = vadd.f32 0.0, %v2947
      %v2949 = vpop.f32.mrb[0].mxu0
      %2950 = vmatprep.mubr.bf16.mxu0 0
      %2951 = vmatmul.mubr.bf16.gmra.mrb[0].mxu0 %v2817
      %v2952 = vpop.f32.mrb[0].mxu0
      %v2953 = vadd.f32 0.0, %v2952
      %v2954 = vpop.f32.mrb[0].mxu0
      %v2955 = vpop.f32.mrb[0].mxu0
      %v2956 = vadd.f32 0.0, %v2955
      %v2957 = vpop.f32.mrb[0].mxu0
      %2958 = vmatprep.mubr.bf16.mxu0 0
      %2959 = vmatmul.mubr.bf16.gmra.mrb[0].mxu0 %v2819
      %v2960 = vpop.f32.mrb[0].mxu0
      %v2961 = vadd.f32 0.0, %v2960
      %v2962 = vpop.f32.mrb[0].mxu0
      %v2963 = vpop.f32.mrb[0].mxu0
      %v2964 = vadd.f32 0.0, %v2963
      %v2965 = vpop.f32.mrb[0].mxu0
      %2966 = vmatprep.mubr.bf16.mxu0 0
      %2967 = vmatmul.mubr.bf16.gmra.mrb[0].mxu0 %v2821
      %v2968 = vpop.f32.mrb[0].mxu0
      %v2969 = vadd.f32 0.0, %v2968
      %v2970 = vpop.f32.mrb[0].mxu0
      %v2971 = vpop.f32.mrb[0].mxu0
      %v2972 = vadd.f32 0.0, %v2971
      %v2973 = vpop.f32.mrb[0].mxu0
      %2974 = vmatprep.mubr.bf16.mxu0 0
      %2975 = vmatmul.mubr.bf16.gmra.mrb[0].mxu0 %v2823
      %v2976 = vpop.f32.mrb[0].mxu0
      %v2977 = vadd.f32 0.0, %v2976
      %v2978 = vpop.f32.mrb[0].mxu0
      %v2979 = vpop.f32.mrb[0].mxu0
      %v2980 = vadd.f32 0.0, %v2979
      %v2981 = vpop.f32.mrb[0].mxu0
      %2982 = vmatprep.mubr.bf16.mxu0 0
      %2983 = vmatmul.mubr.bf16.gmra.mrb[0].mxu0 %v2825
      %v2984 = vpop.f32.mrb[0].mxu0
      %v2985 = vadd.f32 0.0, %v2984
      %v2986 = vpop.f32.mrb[0].mxu0
      %v2987 = vpop.f32.mrb[0].mxu0
      %v2988 = vadd.f32 0.0, %v2987
      %v2989 = vpop.f32.mrb[0].mxu0
      %2990 = vdwg.mxu0
      %v2991 = vadd.f32 %v2116, %v2865
      %v2992 = vadd.f32 %v2119, %v2868
      %v2993 = vadd.f32 %v2124, %v2873
      %v2994 = vadd.f32 %v2127, %v2876
      %v2995 = vadd.f32 %v2132, %v2881
      %v2996 = vadd.f32 %v2135, %v2884
      %v2997 = vadd.f32 %v2140, %v2889
      %v2998 = vadd.f32 %v2143, %v2892
      %v2999 = vadd.f32 %v2148, %v2897
      %v3000 = vadd.f32 %v2151, %v2900
      %v3001 = vadd.f32 %v2156, %v2905
      %v3002 = vadd.f32 %v2159, %v2908
      %v3003 = vadd.f32 %v2164, %v2913
      %v3004 = vadd.f32 %v2167, %v2916
      %v3005 = vadd.f32 %v2172, %v2921
      %v3006 = vadd.f32 %v2175, %v2924
      %v3007 = vadd.f32 %v2180, %v2929
      %v3008 = vadd.f32 %v2183, %v2932
      %v3009 = vadd.f32 %v2188, %v2937
      %v3010 = vadd.f32 %v2191, %v2940
      %v3011 = vadd.f32 %v2196, %v2945
      %v3012 = vadd.f32 %v2199, %v2948
      %v3013 = vadd.f32 %v2204, %v2953
      %v3014 = vadd.f32 %v2207, %v2956
      %v3015 = vadd.f32 %v2212, %v2961
      %v3016 = vadd.f32 %v2215, %v2964
      %v3017 = vadd.f32 %v2220, %v2969
      %v3018 = vadd.f32 %v2223, %v2972
      %v3019 = vadd.f32 %v2228, %v2977
      %v3020 = vadd.f32 %v2231, %v2980
      %v3021 = vadd.f32 %v2236, %v2985
      %v3022 = vadd.f32 %v2239, %v2988
      %v3023 = vld [vmem:[%s3] sm:$0x1]
      %v3025 = vlaneseq
      %v3026 = vshrl.u32 %v3025, 7
      %v3027 = vsub.s32 0, %v3026
      %v3028 = vrot.slane %v3023, %v3027
      %v3030 = vmul.f32 %v2991, %v3028
      %v3031 = vmul.f32 %v2992, %v3028
      %v3032 = vmul.f32 %v2993, %v3028
      %v3033 = vmul.f32 %v2994, %v3028
      %v3034 = vmul.f32 %v2995, %v3028
      %v3035 = vmul.f32 %v2996, %v3028
      %v3036 = vmul.f32 %v2997, %v3028
      %v3037 = vmul.f32 %v2998, %v3028
      %v3038 = vmul.f32 %v2999, %v3028
      %v3039 = vmul.f32 %v3000, %v3028
      %v3040 = vmul.f32 %v3001, %v3028
      %v3041 = vmul.f32 %v3002, %v3028
      %v3042 = vmul.f32 %v3003, %v3028
      %v3043 = vmul.f32 %v3004, %v3028
      %v3044 = vmul.f32 %v3005, %v3028
      %v3045 = vmul.f32 %v3006, %v3028
      %v3046 = vmul.f32 %v3007, %v3028
      %v3047 = vmul.f32 %v3008, %v3028
      %v3048 = vmul.f32 %v3009, %v3028
      %v3049 = vmul.f32 %v3010, %v3028
      %v3050 = vmul.f32 %v3011, %v3028
      %v3051 = vmul.f32 %v3012, %v3028
      %v3052 = vmul.f32 %v3013, %v3028
      %v3053 = vmul.f32 %v3014, %v3028
      %v3054 = vmul.f32 %v3015, %v3028
      %v3055 = vmul.f32 %v3016, %v3028
      %v3056 = vmul.f32 %v3017, %v3028
      %v3057 = vmul.f32 %v3018, %v3028
      %v3058 = vmul.f32 %v3019, %v3028
      %v3059 = vmul.f32 %v3020, %v3028
      %v3060 = vmul.f32 %v3021, %v3028
      %v3061 = vmul.f32 %v3022, %v3028
      %v3062 = vld [vmem:[%s4] sm:$0x1]
      %v3064 = vlaneseq
      %v3065 = vshrl.u32 %v3064, 7
      %v3066 = vsub.s32 0, %v3065
      %v3067 = vrot.slane %v3062, %v3066
      %v3069 = vadd.f32 %v3030, %v3067
      %v3070 = vadd.f32 %v3031, %v3067
      %v3071 = vadd.f32 %v3032, %v3067
      %v3072 = vadd.f32 %v3033, %v3067
      %v3073 = vadd.f32 %v3034, %v3067
      %v3074 = vadd.f32 %v3035, %v3067
      %v3075 = vadd.f32 %v3036, %v3067
      %v3076 = vadd.f32 %v3037, %v3067
      %v3077 = vadd.f32 %v3038, %v3067
      %v3078 = vadd.f32 %v3039, %v3067
      %v3079 = vadd.f32 %v3040, %v3067
      %v3080 = vadd.f32 %v3041, %v3067
      %v3081 = vadd.f32 %v3042, %v3067
      %v3082 = vadd.f32 %v3043, %v3067
      %v3083 = vadd.f32 %v3044, %v3067
      %v3084 = vadd.f32 %v3045, %v3067
      %v3085 = vadd.f32 %v3046, %v3067
      %v3086 = vadd.f32 %v3047, %v3067
      %v3087 = vadd.f32 %v3048, %v3067
      %v3088 = vadd.f32 %v3049, %v3067
      %v3089 = vadd.f32 %v3050, %v3067
      %v3090 = vadd.f32 %v3051, %v3067
      %v3091 = vadd.f32 %v3052, %v3067
      %v3092 = vadd.f32 %v3053, %v3067
      %v3093 = vadd.f32 %v3054, %v3067
      %v3094 = vadd.f32 %v3055, %v3067
      %v3095 = vadd.f32 %v3056, %v3067
      %v3096 = vadd.f32 %v3057, %v3067
      %v3097 = vadd.f32 %v3058, %v3067
      %v3098 = vadd.f32 %v3059, %v3067
      %v3099 = vadd.f32 %v3060, %v3067
      %v3100 = vadd.f32 %v3061, %v3067
      %v3101 = vmax.f32 %v3069, 0.0
      %v3102 = vmax.f32 %v3070, 0.0
      %v3103 = vmax.f32 %v3071, 0.0
      %v3104 = vmax.f32 %v3072, 0.0
      %v3105 = vmax.f32 %v3073, 0.0
      %v3106 = vmax.f32 %v3074, 0.0
      %v3107 = vmax.f32 %v3075, 0.0
      %v3108 = vmax.f32 %v3076, 0.0
      %v3109 = vmax.f32 %v3077, 0.0
      %v3110 = vmax.f32 %v3078, 0.0
      %v3111 = vmax.f32 %v3079, 0.0
      %v3112 = vmax.f32 %v3080, 0.0
      %v3113 = vmax.f32 %v3081, 0.0
      %v3114 = vmax.f32 %v3082, 0.0
      %v3115 = vmax.f32 %v3083, 0.0
      %v3116 = vmax.f32 %v3084, 0.0
      %v3117 = vmax.f32 %v3085, 0.0
      %v3118 = vmax.f32 %v3086, 0.0
      %v3119 = vmax.f32 %v3087, 0.0
      %v3120 = vmax.f32 %v3088, 0.0
      %v3121 = vmax.f32 %v3089, 0.0
      %v3122 = vmax.f32 %v3090, 0.0
      %v3123 = vmax.f32 %v3091, 0.0
      %v3124 = vmax.f32 %v3092, 0.0
      %v3125 = vmax.f32 %v3093, 0.0
      %v3126 = vmax.f32 %v3094, 0.0
      %v3127 = vmax.f32 %v3095, 0.0
      %v3128 = vmax.f32 %v3096, 0.0
      %v3129 = vmax.f32 %v3097, 0.0
      %v3130 = vmax.f32 %v3098, 0.0
      %v3131 = vmax.f32 %v3099, 0.0
      %v3132 = vmax.f32 %v3100, 0.0
      %v3133 = vpack.c.bf16 %v3102, %v3101
      %v3134 = vpack.c.bf16 %v3104, %v3103
      %v3135 = vpack.c.bf16 %v3106, %v3105
      %v3136 = vpack.c.bf16 %v3108, %v3107
      %v3137 = vpack.c.bf16 %v3110, %v3109
      %v3138 = vpack.c.bf16 %v3112, %v3111
      %v3139 = vpack.c.bf16 %v3114, %v3113
      %v3140 = vpack.c.bf16 %v3116, %v3115
      %v3141 = vpack.c.bf16 %v3118, %v3117
      %v3142 = vpack.c.bf16 %v3120, %v3119
      %v3143 = vpack.c.bf16 %v3122, %v3121
      %v3144 = vpack.c.bf16 %v3124, %v3123
      %v3145 = vpack.c.bf16 %v3126, %v3125
      %v3146 = vpack.c.bf16 %v3128, %v3127
      %v3147 = vpack.c.bf16 %v3130, %v3129
      %v3148 = vpack.c.bf16 %v3132, %v3131
      %v3150 = vshrl.u32 %v3133, 16
      %v3152 = vrot.slane %v3150, 7
      %v3153 = vshll.u32 %v3133, 16
      %v3155 = vor.u32 %v3152, %v3153
      %v3157 = vshrl.u32 %v3134, 16
      %v3159 = vrot.slane %v3157, 7
      %v3160 = vshll.u32 %v3134, 16
      %v3162 = vor.u32 %v3159, %v3160
      %v3164 = vshrl.u32 %v3135, 16
      %v3166 = vrot.slane %v3164, 7
      %v3167 = vshll.u32 %v3135, 16
      %v3169 = vor.u32 %v3166, %v3167
      %v3171 = vshrl.u32 %v3136, 16
      %v3173 = vrot.slane %v3171, 7
      %v3174 = vshll.u32 %v3136, 16
      %v3176 = vor.u32 %v3173, %v3174
      %v3178 = vshrl.u32 %v3137, 16
      %v3180 = vrot.slane %v3178, 7
      %v3181 = vshll.u32 %v3137, 16
      %v3183 = vor.u32 %v3180, %v3181
      %v3185 = vshrl.u32 %v3138, 16
      %v3187 = vrot.slane %v3185, 7
      %v3188 = vshll.u32 %v3138, 16
      %v3190 = vor.u32 %v3187, %v3188
      %v3192 = vshrl.u32 %v3139, 16
      %v3194 = vrot.slane %v3192, 7
      %v3195 = vshll.u32 %v3139, 16
      %v3197 = vor.u32 %v3194, %v3195
      %v3199 = vshrl.u32 %v3140, 16
      %v3201 = vrot.slane %v3199, 7
      %v3202 = vshll.u32 %v3140, 16
      %v3204 = vor.u32 %v3201, %v3202
      %v3206 = vshrl.u32 %v3141, 16
      %v3208 = vrot.slane %v3206, 7
      %v3209 = vshll.u32 %v3141, 16
      %v3211 = vor.u32 %v3208, %v3209
      %v3213 = vshrl.u32 %v3142, 16
      %v3215 = vrot.slane %v3213, 7
      %v3216 = vshll.u32 %v3142, 16
      %v3218 = vor.u32 %v3215, %v3216
      %v3220 = vshrl.u32 %v3143, 16
      %v3222 = vrot.slane %v3220, 7
      %v3223 = vshll.u32 %v3143, 16
      %v3225 = vor.u32 %v3222, %v3223
      %v3227 = vshrl.u32 %v3144, 16
      %v3229 = vrot.slane %v3227, 7
      %v3230 = vshll.u32 %v3144, 16
      %v3232 = vor.u32 %v3229, %v3230
      %v3234 = vshrl.u32 %v3145, 16
      %v3236 = vrot.slane %v3234, 7
      %v3237 = vshll.u32 %v3145, 16
      %v3239 = vor.u32 %v3236, %v3237
      %v3241 = vshrl.u32 %v3146, 16
      %v3243 = vrot.slane %v3241, 7
      %v3244 = vshll.u32 %v3146, 16
      %v3246 = vor.u32 %v3243, %v3244
      %v3248 = vshrl.u32 %v3147, 16
      %v3250 = vrot.slane %v3248, 7
      %v3251 = vshll.u32 %v3147, 16
      %v3253 = vor.u32 %v3250, %v3251
      %v3255 = vshrl.u32 %v3148, 16
      %v3257 = vrot.slane %v3255, 7
      %v3258 = vshll.u32 %v3148, 16
      %v3260 = vor.u32 %v3257, %v3258
      %v3293 = vsel %vm483, 0, %v3155
      %v3294 = vsel %vm483, 0, %v3162
      %v3295 = vsel %vm483, 0, %v3169
      %v3296 = vsel %vm483, 0, %v3176
      %v3297 = vsel %vm483, 0, %v3183
      %v3298 = vsel %vm483, 0, %v3190
      %v3299 = vsel %vm483, 0, %v3197
      %v3300 = vsel %vm483, 0, %v3204
      %v3301 = vsel %vm483, 0, %v3211
      %v3302 = vsel %vm483, 0, %v3218
      %v3303 = vsel %vm483, 0, %v3225
      %v3304 = vsel %vm483, 0, %v3232
      %v3305 = vsel %vm483, 0, %v3239
      %v3306 = vsel %vm483, 0, %v3246
      %v3307 = vsel %vm483, 0, %v3253
      %v3308 = vsel %vm483, 0, %v3260
      %v3309 = vsel %vm483, %v3152, 0
      %v3310 = vsel %vm483, %v3159, 0
      %v3311 = vsel %vm483, %v3166, 0
      %v3312 = vsel %vm483, %v3173, 0
      %v3313 = vsel %vm483, %v3180, 0
      %v3314 = vsel %vm483, %v3187, 0
      %v3315 = vsel %vm483, %v3194, 0
      %v3316 = vsel %vm483, %v3201, 0
      %v3317 = vsel %vm483, %v3208, 0
      %v3318 = vsel %vm483, %v3215, 0
      %v3319 = vsel %vm483, %v3222, 0
      %v3320 = vsel %vm483, %v3229, 0
      %v3321 = vsel %vm483, %v3236, 0
      %v3322 = vsel %vm483, %v3243, 0
      %v3323 = vsel %vm483, %v3250, 0
      %v3324 = vsel %vm483, %v3257, 0
      %v3357 = vunpack.c.l.b16 %v3293
      %v3358 = vunpack.c.h.b16 %v3293
      %v3359 = vunpack.c.l.b16 %v3309
      %v3360 = vunpack.c.l.b16 %v3294
      %v3361 = vunpack.c.h.b16 %v3294
      %v3362 = vunpack.c.l.b16 %v3310
      %v3363 = vunpack.c.l.b16 %v3295
      %v3364 = vunpack.c.h.b16 %v3295
      %v3365 = vunpack.c.l.b16 %v3311
      %v3366 = vunpack.c.l.b16 %v3296
      %v3367 = vunpack.c.h.b16 %v3296
      %v3368 = vunpack.c.l.b16 %v3312
      %v3369 = vunpack.c.l.b16 %v3297
      %v3370 = vunpack.c.h.b16 %v3297
      %v3371 = vunpack.c.l.b16 %v3313
      %v3372 = vunpack.c.l.b16 %v3298
      %v3373 = vunpack.c.h.b16 %v3298
      %v3374 = vunpack.c.l.b16 %v3314
      %v3375 = vunpack.c.l.b16 %v3299
      %v3376 = vunpack.c.h.b16 %v3299
      %v3377 = vunpack.c.l.b16 %v3315
      %v3378 = vunpack.c.l.b16 %v3300
      %v3379 = vunpack.c.h.b16 %v3300
      %v3380 = vunpack.c.l.b16 %v3316
      %v3381 = vunpack.c.l.b16 %v3301
      %v3382 = vunpack.c.h.b16 %v3301
      %v3383 = vunpack.c.l.b16 %v3317
      %v3384 = vunpack.c.l.b16 %v3302
      %v3385 = vunpack.c.h.b16 %v3302
      %v3386 = vunpack.c.l.b16 %v3318
      %v3387 = vunpack.c.l.b16 %v3303
      %v3388 = vunpack.c.h.b16 %v3303
      %v3389 = vunpack.c.l.b16 %v3319
      %v3390 = vunpack.c.l.b16 %v3304
      %v3391 = vunpack.c.h.b16 %v3304
      %v3392 = vunpack.c.l.b16 %v3320
      %v3393 = vunpack.c.l.b16 %v3305
      %v3394 = vunpack.c.h.b16 %v3305
      %v3395 = vunpack.c.l.b16 %v3321
      %v3396 = vunpack.c.l.b16 %v3306
      %v3397 = vunpack.c.h.b16 %v3306
      %v3398 = vunpack.c.l.b16 %v3322
      %v3399 = vunpack.c.l.b16 %v3307
      %v3400 = vunpack.c.h.b16 %v3307
      %v3401 = vunpack.c.l.b16 %v3323
      %v3402 = vunpack.c.l.b16 %v3308
      %v3403 = vunpack.c.h.b16 %v3308
      %v3404 = vunpack.c.l.b16 %v3324
      %v3405 = vpack.c.b16 %v3357, %v3357
      %v3406 = vpack.c.b16 %v3358, %v3358
      %v3407 = vpack.c.b16 %v3359, %v3359
      %v3408 = vpack.c.b16 %v3360, %v3360
      %v3409 = vpack.c.b16 %v3361, %v3361
      %v3410 = vpack.c.b16 %v3362, %v3362
      %v3411 = vpack.c.b16 %v3363, %v3363
      %v3412 = vpack.c.b16 %v3364, %v3364
      %v3413 = vpack.c.b16 %v3365, %v3365
      %v3414 = vpack.c.b16 %v3366, %v3366
      %v3415 = vpack.c.b16 %v3367, %v3367
      %v3416 = vpack.c.b16 %v3368, %v3368
      %v3417 = vpack.c.b16 %v3369, %v3369
      %v3418 = vpack.c.b16 %v3370, %v3370
      %v3419 = vpack.c.b16 %v3371, %v3371
      %v3420 = vpack.c.b16 %v3372, %v3372
      %v3421 = vpack.c.b16 %v3373, %v3373
      %v3422 = vpack.c.b16 %v3374, %v3374
      %v3423 = vpack.c.b16 %v3375, %v3375
      %v3424 = vpack.c.b16 %v3376, %v3376
      %v3425 = vpack.c.b16 %v3377, %v3377
      %v3426 = vpack.c.b16 %v3378, %v3378
      %v3427 = vpack.c.b16 %v3379, %v3379
      %v3428 = vpack.c.b16 %v3380, %v3380
      %v3429 = vpack.c.b16 %v3381, %v3381
      %v3430 = vpack.c.b16 %v3382, %v3382
      %v3431 = vpack.c.b16 %v3383, %v3383
      %v3432 = vpack.c.b16 %v3384, %v3384
      %v3433 = vpack.c.b16 %v3385, %v3385
      %v3434 = vpack.c.b16 %v3386, %v3386
      %v3435 = vpack.c.b16 %v3387, %v3387
      %v3436 = vpack.c.b16 %v3388, %v3388
      %v3437 = vpack.c.b16 %v3389, %v3389
      %v3438 = vpack.c.b16 %v3390, %v3390
      %v3439 = vpack.c.b16 %v3391, %v3391
      %v3440 = vpack.c.b16 %v3392, %v3392
      %v3441 = vpack.c.b16 %v3393, %v3393
      %v3442 = vpack.c.b16 %v3394, %v3394
      %v3443 = vpack.c.b16 %v3395, %v3395
      %v3444 = vpack.c.b16 %v3396, %v3396
      %v3445 = vpack.c.b16 %v3397, %v3397
      %v3446 = vpack.c.b16 %v3398, %v3398
      %v3447 = vpack.c.b16 %v3399, %v3399
      %v3448 = vpack.c.b16 %v3400, %v3400
      %v3449 = vpack.c.b16 %v3401, %v3401
      %v3450 = vpack.c.b16 %v3402, %v3402
      %v3451 = vpack.c.b16 %v3403, %v3403
      %v3452 = vpack.c.b16 %v3404, %v3404
      %3501 = vst.msk [vmem:[%s692] sm:$0xf] %vm280, %v3405
      %3502 = vst.msk [vmem:[%s692 + $0x4] sm:$0xf] %vm280, %v3406
      %3503 = vst.msk [vmem:[%s692 + $0x8] sm:$0x1] %vm283, %v3407
      %3504 = vst.msk [vmem:[%s692 + $0xc] sm:$0xf] %vm280, %v3408
      %3505 = vst.msk [vmem:[%s692 + $0x10] sm:$0xf] %vm280, %v3409
      %3506 = vst.msk [vmem:[%s692 + $0x14] sm:$0x1] %vm283, %v3410
      %3507 = vst.msk [vmem:[%s692 + $0x18] sm:$0xf] %vm280, %v3411
      %3508 = vst.msk [vmem:[%s692 + $0x1c] sm:$0xf] %vm280, %v3412
      %3509 = vst.msk [vmem:[%s692 + $0x20] sm:$0x1] %vm283, %v3413
      %3510 = vst.msk [vmem:[%s692 + $0x24] sm:$0xf] %vm280, %v3414
      %3511 = vst.msk [vmem:[%s692 + $0x28] sm:$0xf] %vm280, %v3415
      %3512 = vst.msk [vmem:[%s692 + $0x2c] sm:$0x1] %vm283, %v3416
      %3513 = vst.msk [vmem:[%s692 + $0x30] sm:$0xf] %vm280, %v3417
      %3514 = vst.msk [vmem:[%s692 + $0x34] sm:$0xf] %vm280, %v3418
      %3515 = vst.msk [vmem:[%s692 + $0x38] sm:$0x1] %vm283, %v3419
      %3516 = vst.msk [vmem:[%s692 + $0x3c] sm:$0xf] %vm280, %v3420
      %3517 = vst.msk [vmem:[%s692 + $0x40] sm:$0xf] %vm280, %v3421
      %3518 = vst.msk [vmem:[%s692 + $0x44] sm:$0x1] %vm283, %v3422
      %3519 = vst.msk [vmem:[%s692 + $0x48] sm:$0xf] %vm280, %v3423
      %3520 = vst.msk [vmem:[%s692 + $0x4c] sm:$0xf] %vm280, %v3424
      %3521 = vst.msk [vmem:[%s692 + $0x50] sm:$0x1] %vm283, %v3425
      %3522 = vst.msk [vmem:[%s692 + $0x54] sm:$0xf] %vm280, %v3426
      %3523 = vst.msk [vmem:[%s692 + $0x58] sm:$0xf] %vm280, %v3427
      %3524 = vst.msk [vmem:[%s692 + $0x5c] sm:$0x1] %vm283, %v3428
      %3525 = vst.msk [vmem:[%s692 + $0x60] sm:$0xf] %vm280, %v3429
      %3526 = vst.msk [vmem:[%s692 + $0x64] sm:$0xf] %vm280, %v3430
      %3527 = vst.msk [vmem:[%s692 + $0x68] sm:$0x1] %vm283, %v3431
      %3528 = vst.msk [vmem:[%s692 + $0x6c] sm:$0xf] %vm280, %v3432
      %3529 = vst.msk [vmem:[%s692 + $0x70] sm:$0xf] %vm280, %v3433
      %3530 = vst.msk [vmem:[%s692 + $0x74] sm:$0x1] %vm283, %v3434
      %3531 = vst.msk [vmem:[%s692 + $0x78] sm:$0xf] %vm280, %v3435
      %3532 = vst.msk [vmem:[%s692 + $0x7c] sm:$0xf] %vm280, %v3436
      %3533 = vst.msk [vmem:[%s692 + $0x80] sm:$0x1] %vm283, %v3437
      %3534 = vst.msk [vmem:[%s692 + $0x84] sm:$0xf] %vm280, %v3438
      %3535 = vst.msk [vmem:[%s692 + $0x88] sm:$0xf] %vm280, %v3439
      %3536 = vst.msk [vmem:[%s692 + $0x8c] sm:$0x1] %vm283, %v3440
      %3537 = vst.msk [vmem:[%s692 + $0x90] sm:$0xf] %vm280, %v3441
      %3538 = vst.msk [vmem:[%s692 + $0x94] sm:$0xf] %vm280, %v3442
      %3539 = vst.msk [vmem:[%s692 + $0x98] sm:$0x1] %vm283, %v3443
      %3540 = vst.msk [vmem:[%s692 + $0x9c] sm:$0xf] %vm280, %v3444
      %3541 = vst.msk [vmem:[%s692 + $0xa0] sm:$0xf] %vm280, %v3445
      %3542 = vst.msk [vmem:[%s692 + $0xa4] sm:$0x1] %vm283, %v3446
      %3543 = vst.msk [vmem:[%s692 + $0xa8] sm:$0xf] %vm280, %v3447
      %3544 = vst.msk [vmem:[%s692 + $0xac] sm:$0xf] %vm280, %v3448
      %3545 = vst.msk [vmem:[%s692 + $0xb0] sm:$0x1] %vm283, %v3449
      %3546 = vst.msk [vmem:[%s692 + $0xb4] sm:$0xf] %vm280, %v3450
      %3547 = vst.msk [vmem:[%s692 + $0xb8] sm:$0xf] %vm280, %v3451
      %3548 = vst.msk [vmem:[%s692 + $0xbc] sm:$0x1] %vm283, %v3452
      %v3549 = vld [vmem:[#allocation2] sm:$0xf]
      %v3550 = vld [vmem:[#allocation2 + $0x4] sm:$0xf]
      %v3551 = vld [vmem:[#allocation2 + $0x8] sm:$0x1]
      %v3552 = vld [vmem:[#allocation2 + $0xc] sm:$0xf]
      %v3553 = vld [vmem:[#allocation2 + $0x10] sm:$0xf]
      %v3554 = vld [vmem:[#allocation2 + $0x14] sm:$0x1]
      %v3555 = vld [vmem:[#allocation2 + $0x18] sm:$0xf]
      %v3556 = vld [vmem:[#allocation2 + $0x1c] sm:$0xf]
      %v3557 = vld [vmem:[#allocation2 + $0x20] sm:$0x1]
      %v3558 = vld [vmem:[#allocation2 + $0x24] sm:$0xf]
      %v3559 = vld [vmem:[#allocation2 + $0x28] sm:$0xf]
      %v3560 = vld [vmem:[#allocation2 + $0x2c] sm:$0x1]
      %v3561 = vld [vmem:[#allocation2 + $0x30] sm:$0xf]
      %v3562 = vld [vmem:[#allocation2 + $0x34] sm:$0xf]
      %v3563 = vld [vmem:[#allocation2 + $0x38] sm:$0x1]
      %v3564 = vld [vmem:[#allocation2 + $0x3c] sm:$0xf]
      %v3565 = vld [vmem:[#allocation2 + $0x40] sm:$0xf]
      %v3566 = vld [vmem:[#allocation2 + $0x44] sm:$0x1]
      %v3567 = vld [vmem:[#allocation2 + $0x48] sm:$0xf]
      %v3568 = vld [vmem:[#allocation2 + $0x4c] sm:$0xf]
      %v3569 = vld [vmem:[#allocation2 + $0x50] sm:$0x1]
      %v3570 = vld [vmem:[#allocation2 + $0x54] sm:$0xf]
      %v3571 = vld [vmem:[#allocation2 + $0x58] sm:$0xf]
      %v3572 = vld [vmem:[#allocation2 + $0x5c] sm:$0x1]
      %v3573 = vld [vmem:[#allocation2 + $0x60] sm:$0xf]
      %v3574 = vld [vmem:[#allocation2 + $0x64] sm:$0xf]
      %v3575 = vld [vmem:[#allocation2 + $0x68] sm:$0x1]
      %v3576 = vld [vmem:[#allocation2 + $0x6c] sm:$0xf]
      %v3577 = vld [vmem:[#allocation2 + $0x70] sm:$0xf]
      %v3578 = vld [vmem:[#allocation2 + $0x74] sm:$0x1]
      %v3579 = vld [vmem:[#allocation2 + $0x78] sm:$0xf]
      %v3580 = vld [vmem:[#allocation2 + $0x7c] sm:$0xf]
      %v3581 = vld [vmem:[#allocation2 + $0x80] sm:$0x1]
      %v3582 = vld [vmem:[#allocation2 + $0x84] sm:$0xf]
      %v3583 = vld [vmem:[#allocation2 + $0x88] sm:$0xf]
      %v3584 = vld [vmem:[#allocation2 + $0x8c] sm:$0x1]
      %v3585 = vld [vmem:[#allocation2 + $0x90] sm:$0xf]
      %v3586 = vld [vmem:[#allocation2 + $0x94] sm:$0xf]
      %v3587 = vld [vmem:[#allocation2 + $0x98] sm:$0x1]
      %v3588 = vld [vmem:[#allocation2 + $0x9c] sm:$0xf]
      %v3589 = vld [vmem:[#allocation2 + $0xa0] sm:$0xf]
      %v3590 = vld [vmem:[#allocation2 + $0xa4] sm:$0x1]
      %v3591 = vld [vmem:[#allocation2 + $0xa8] sm:$0xf]
      %v3592 = vld [vmem:[#allocation2 + $0xac] sm:$0xf]
      %v3593 = vld [vmem:[#allocation2 + $0xb0] sm:$0x1]
      %v3594 = vld [vmem:[#allocation2 + $0xb4] sm:$0xf]
      %v3595 = vld [vmem:[#allocation2 + $0xb8] sm:$0xf]
      %v3596 = vld [vmem:[#allocation2 + $0xbc] sm:$0x1]
      %v3629 = vunpack.c.l.b16 %v3549
      %v3630 = vunpack.c.l.b16 %v3550
      %v3631 = vunpack.c.l.b16 %v3552
      %v3632 = vunpack.c.l.b16 %v3553
      %v3633 = vunpack.c.l.b16 %v3555
      %v3634 = vunpack.c.l.b16 %v3556
      %v3635 = vunpack.c.l.b16 %v3558
      %v3636 = vunpack.c.l.b16 %v3559
      %v3637 = vunpack.c.l.b16 %v3561
      %v3638 = vunpack.c.l.b16 %v3562
      %v3639 = vunpack.c.l.b16 %v3564
      %v3640 = vunpack.c.l.b16 %v3565
      %v3641 = vunpack.c.l.b16 %v3567
      %v3642 = vunpack.c.l.b16 %v3568
      %v3643 = vunpack.c.l.b16 %v3570
      %v3644 = vunpack.c.l.b16 %v3571
      %v3645 = vunpack.c.l.b16 %v3573
      %v3646 = vunpack.c.l.b16 %v3574
      %v3647 = vunpack.c.l.b16 %v3576
      %v3648 = vunpack.c.l.b16 %v3577
      %v3649 = vunpack.c.l.b16 %v3579
      %v3650 = vunpack.c.l.b16 %v3580
      %v3651 = vunpack.c.l.b16 %v3582
      %v3652 = vunpack.c.l.b16 %v3583
      %v3653 = vunpack.c.l.b16 %v3585
      %v3654 = vunpack.c.l.b16 %v3586
      %v3655 = vunpack.c.l.b16 %v3588
      %v3656 = vunpack.c.l.b16 %v3589
      %v3657 = vunpack.c.l.b16 %v3591
      %v3658 = vunpack.c.l.b16 %v3592
      %v3659 = vunpack.c.l.b16 %v3594
      %v3660 = vunpack.c.l.b16 %v3595
      %v3661 = vpack.c.b16 %v3630, %v3629
      %v3662 = vpack.c.b16 %v3632, %v3631
      %v3663 = vpack.c.b16 %v3634, %v3633
      %v3664 = vpack.c.b16 %v3636, %v3635
      %v3665 = vpack.c.b16 %v3638, %v3637
      %v3666 = vpack.c.b16 %v3640, %v3639
      %v3667 = vpack.c.b16 %v3642, %v3641
      %v3668 = vpack.c.b16 %v3644, %v3643
      %v3669 = vpack.c.b16 %v3646, %v3645
      %v3670 = vpack.c.b16 %v3648, %v3647
      %v3671 = vpack.c.b16 %v3650, %v3649
      %v3672 = vpack.c.b16 %v3652, %v3651
      %v3673 = vpack.c.b16 %v3654, %v3653
      %v3674 = vpack.c.b16 %v3656, %v3655
      %v3675 = vpack.c.b16 %v3658, %v3657
      %v3676 = vpack.c.b16 %v3660, %v3659
      %v3693 = vunpack.c.l.b16 %v3551
      %v3694 = vunpack.c.l.b16 %v3554
      %v3695 = vunpack.c.l.b16 %v3557
      %v3696 = vunpack.c.l.b16 %v3560
      %v3697 = vunpack.c.l.b16 %v3563
      %v3698 = vunpack.c.l.b16 %v3566
      %v3699 = vunpack.c.l.b16 %v3569
      %v3700 = vunpack.c.l.b16 %v3572
      %v3701 = vunpack.c.l.b16 %v3575
      %v3702 = vunpack.c.l.b16 %v3578
      %v3703 = vunpack.c.l.b16 %v3581
      %v3704 = vunpack.c.l.b16 %v3584
      %v3705 = vunpack.c.l.b16 %v3587
      %v3706 = vunpack.c.l.b16 %v3590
      %v3707 = vunpack.c.l.b16 %v3593
      %v3708 = vunpack.c.l.b16 %v3596
      %v3709 = vpack.c.b16 %v3693, %v3693
      %v3710 = vpack.c.b16 %v3694, %v3694
      %v3711 = vpack.c.b16 %v3695, %v3695
      %v3712 = vpack.c.b16 %v3696, %v3696
      %v3713 = vpack.c.b16 %v3697, %v3697
      %v3714 = vpack.c.b16 %v3698, %v3698
      %v3715 = vpack.c.b16 %v3699, %v3699
      %v3716 = vpack.c.b16 %v3700, %v3700
      %v3717 = vpack.c.b16 %v3701, %v3701
      %v3718 = vpack.c.b16 %v3702, %v3702
      %v3719 = vpack.c.b16 %v3703, %v3703
      %v3720 = vpack.c.b16 %v3704, %v3704
      %v3721 = vpack.c.b16 %v3705, %v3705
      %v3722 = vpack.c.b16 %v3706, %v3706
      %v3723 = vpack.c.b16 %v3707, %v3707
      %v3724 = vpack.c.b16 %v3708, %v3708
      %v3726 = vshrl.u32 %v3661, 16
      %v3728 = vshll.u32 %v3661, 16
      %v3730 = vrot.slane %v3728, 1
      %v3731 = vor.u32 %v3726, %v3730
      %v3733 = vshll.u32 %v3709, 16
      %v3735 = vrot.slane %v3733, 1
      %v3736 = vsel %vm917, %v3731, %v3735
      %v3738 = vshrl.u32 %v3662, 16
      %v3740 = vshll.u32 %v3662, 16
      %v3742 = vrot.slane %v3740, 1
      %v3743 = vor.u32 %v3738, %v3742
      %v3745 = vshll.u32 %v3710, 16
      %v3747 = vrot.slane %v3745, 1
      %v3748 = vsel %vm917, %v3743, %v3747
      %v3750 = vshrl.u32 %v3663, 16
      %v3752 = vshll.u32 %v3663, 16
      %v3754 = vrot.slane %v3752, 1
      %v3755 = vor.u32 %v3750, %v3754
      %v3757 = vshll.u32 %v3711, 16
      %v3759 = vrot.slane %v3757, 1
      %v3760 = vsel %vm917, %v3755, %v3759
      %v3762 = vshrl.u32 %v3664, 16
      %v3764 = vshll.u32 %v3664, 16
      %v3766 = vrot.slane %v3764, 1
      %v3767 = vor.u32 %v3762, %v3766
      %v3769 = vshll.u32 %v3712, 16
      %v3771 = vrot.slane %v3769, 1
      %v3772 = vsel %vm917, %v3767, %v3771
      %v3774 = vshrl.u32 %v3665, 16
      %v3776 = vshll.u32 %v3665, 16
      %v3778 = vrot.slane %v3776, 1
      %v3779 = vor.u32 %v3774, %v3778
      %v3781 = vshll.u32 %v3713, 16
      %v3783 = vrot.slane %v3781, 1
      %v3784 = vsel %vm917, %v3779, %v3783
      %v3786 = vshrl.u32 %v3666, 16
      %v3788 = vshll.u32 %v3666, 16
      %v3790 = vrot.slane %v3788, 1
      %v3791 = vor.u32 %v3786, %v3790
      %v3793 = vshll.u32 %v3714, 16
      %v3795 = vrot.slane %v3793, 1
      %v3796 = vsel %vm917, %v3791, %v3795
      %v3798 = vshrl.u32 %v3667, 16
      %v3800 = vshll.u32 %v3667, 16
      %v3802 = vrot.slane %v3800, 1
      %v3803 = vor.u32 %v3798, %v3802
      %v3805 = vshll.u32 %v3715, 16
      %v3807 = vrot.slane %v3805, 1
      %v3808 = vsel %vm917, %v3803, %v3807
      %v3810 = vshrl.u32 %v3668, 16
      %v3812 = vshll.u32 %v3668, 16
      %v3814 = vrot.slane %v3812, 1
      %v3815 = vor.u32 %v3810, %v3814
      %v3817 = vshll.u32 %v3716, 16
      %v3819 = vrot.slane %v3817, 1
      %v3820 = vsel %vm917, %v3815, %v3819
      %v3822 = vshrl.u32 %v3669, 16
      %v3824 = vshll.u32 %v3669, 16
      %v3826 = vrot.slane %v3824, 1
      %v3827 = vor.u32 %v3822, %v3826
      %v3829 = vshll.u32 %v3717, 16
      %v3831 = vrot.slane %v3829, 1
      %v3832 = vsel %vm917, %v3827, %v3831
      %v3834 = vshrl.u32 %v3670, 16
      %v3836 = vshll.u32 %v3670, 16
      %v3838 = vrot.slane %v3836, 1
      %v3839 = vor.u32 %v3834, %v3838
      %v3841 = vshll.u32 %v3718, 16
      %v3843 = vrot.slane %v3841, 1
      %v3844 = vsel %vm917, %v3839, %v3843
      %v3846 = vshrl.u32 %v3671, 16
      %v3848 = vshll.u32 %v3671, 16
      %v3850 = vrot.slane %v3848, 1
      %v3851 = vor.u32 %v3846, %v3850
      %v3853 = vshll.u32 %v3719, 16
      %v3855 = vrot.slane %v3853, 1
      %v3856 = vsel %vm917, %v3851, %v3855
      %v3858 = vshrl.u32 %v3672, 16
      %v3860 = vshll.u32 %v3672, 16
      %v3862 = vrot.slane %v3860, 1
      %v3863 = vor.u32 %v3858, %v3862
      %v3865 = vshll.u32 %v3720, 16
      %v3867 = vrot.slane %v3865, 1
      %v3868 = vsel %vm917, %v3863, %v3867
      %v3870 = vshrl.u32 %v3673, 16
      %v3872 = vshll.u32 %v3673, 16
      %v3874 = vrot.slane %v3872, 1
      %v3875 = vor.u32 %v3870, %v3874
      %v3877 = vshll.u32 %v3721, 16
      %v3879 = vrot.slane %v3877, 1
      %v3880 = vsel %vm917, %v3875, %v3879
      %v3882 = vshrl.u32 %v3674, 16
      %v3884 = vshll.u32 %v3674, 16
      %v3886 = vrot.slane %v3884, 1
      %v3887 = vor.u32 %v3882, %v3886
      %v3889 = vshll.u32 %v3722, 16
      %v3891 = vrot.slane %v3889, 1
      %v3892 = vsel %vm917, %v3887, %v3891
      %v3894 = vshrl.u32 %v3675, 16
      %v3896 = vshll.u32 %v3675, 16
      %v3898 = vrot.slane %v3896, 1
      %v3899 = vor.u32 %v3894, %v3898
      %v3901 = vshll.u32 %v3723, 16
      %v3903 = vrot.slane %v3901, 1
      %v3904 = vsel %vm917, %v3899, %v3903
      %v3906 = vshrl.u32 %v3676, 16
      %v3908 = vshll.u32 %v3676, 16
      %v3910 = vrot.slane %v3908, 1
      %v3911 = vor.u32 %v3906, %v3910
      %v3913 = vshll.u32 %v3724, 16
      %v3915 = vrot.slane %v3913, 1
      %v3916 = vsel %vm917, %v3911, %v3915
      %3917 = vrot.lane.b32.xlu0 %v3736, 4
      %v3918 = vpop.permute.xlu0 %3917
      %3919 = vrot.lane.b32.xlu0 %v3748, 4
      %v3920 = vpop.permute.xlu0 %3919
      %3921 = vrot.lane.b32.xlu0 %v3760, 4
      %v3922 = vpop.permute.xlu0 %3921
      %3923 = vrot.lane.b32.xlu0 %v3772, 4
      %v3924 = vpop.permute.xlu0 %3923
      %3925 = vrot.lane.b32.xlu0 %v3784, 4
      %v3926 = vpop.permute.xlu0 %3925
      %3927 = vrot.lane.b32.xlu0 %v3796, 4
      %v3928 = vpop.permute.xlu0 %3927
      %3929 = vrot.lane.b32.xlu0 %v3808, 4
      %v3930 = vpop.permute.xlu0 %3929
      %3931 = vrot.lane.b32.xlu0 %v3820, 4
      %v3932 = vpop.permute.xlu0 %3931
      %3933 = vrot.lane.b32.xlu0 %v3832, 4
      %v3934 = vpop.permute.xlu0 %3933
      %3935 = vrot.lane.b32.xlu0 %v3844, 4
      %v3936 = vpop.permute.xlu0 %3935
      %3937 = vrot.lane.b32.xlu0 %v3856, 4
      %v3938 = vpop.permute.xlu0 %3937
      %3939 = vrot.lane.b32.xlu0 %v3868, 4
      %v3940 = vpop.permute.xlu0 %3939
      %3941 = vrot.lane.b32.xlu0 %v3880, 4
      %v3942 = vpop.permute.xlu0 %3941
      %3943 = vrot.lane.b32.xlu0 %v3892, 4
      %v3944 = vpop.permute.xlu0 %3943
      %3945 = vrot.lane.b32.xlu0 %v3904, 4
      %v3946 = vpop.permute.xlu0 %3945
      %3947 = vrot.lane.b32.xlu0 %v3916, 4
      %v3948 = vpop.permute.xlu0 %3947
      %v3949 = vrot.slane %v3661, 1
      %v3950 = vrot.slane %v3709, 1
      %v3951 = vsel %vm1142, %v3949, %v3950
      %v3952 = vrot.slane %v3662, 1
      %v3953 = vrot.slane %v3710, 1
      %v3954 = vsel %vm1142, %v3952, %v3953
      %v3955 = vrot.slane %v3663, 1
      %v3956 = vrot.slane %v3711, 1
      %v3957 = vsel %vm1142, %v3955, %v3956
      %v3958 = vrot.slane %v3664, 1
      %v3959 = vrot.slane %v3712, 1
      %v3960 = vsel %vm1142, %v3958, %v3959
      %v3961 = vrot.slane %v3665, 1
      %v3962 = vrot.slane %v3713, 1
      %v3963 = vsel %vm1142, %v3961, %v3962
      %v3964 = vrot.slane %v3666, 1
      %v3965 = vrot.slane %v3714, 1
      %v3966 = vsel %vm1142, %v3964, %v3965
      %v3967 = vrot.slane %v3667, 1
      %v3968 = vrot.slane %v3715, 1
      %v3969 = vsel %vm1142, %v3967, %v3968
      %v3970 = vrot.slane %v3668, 1
      %v3971 = vrot.slane %v3716, 1
      %v3972 = vsel %vm1142, %v3970, %v3971
      %v3973 = vrot.slane %v3669, 1
      %v3974 = vrot.slane %v3717, 1
      %v3975 = vsel %vm1142, %v3973, %v3974
      %v3976 = vrot.slane %v3670, 1
      %v3977 = vrot.slane %v3718, 1
      %v3978 = vsel %vm1142, %v3976, %v3977
      %v3979 = vrot.slane %v3671, 1
      %v3980 = vrot.slane %v3719, 1
      %v3981 = vsel %vm1142, %v3979, %v3980
      %v3982 = vrot.slane %v3672, 1
      %v3983 = vrot.slane %v3720, 1
      %v3984 = vsel %vm1142, %v3982, %v3983
      %v3985 = vrot.slane %v3673, 1
      %v3986 = vrot.slane %v3721, 1
      %v3987 = vsel %vm1142, %v3985, %v3986
      %v3988 = vrot.slane %v3674, 1
      %v3989 = vrot.slane %v3722, 1
      %v3990 = vsel %vm1142, %v3988, %v3989
      %v3991 = vrot.slane %v3675, 1
      %v3992 = vrot.slane %v3723, 1
      %v3993 = vsel %vm1142, %v3991, %v3992
      %v3994 = vrot.slane %v3676, 1
      %v3995 = vrot.slane %v3724, 1
      %v3996 = vsel %vm1142, %v3994, %v3995
      %3997 = vrot.lane.b32.xlu0 %v3951, 8
      %v3998 = vpop.permute.xlu0 %3997
      %3999 = vrot.lane.b32.xlu0 %v3954, 8
      %v4000 = vpop.permute.xlu0 %3999
      %4001 = vrot.lane.b32.xlu0 %v3957, 8
      %v4002 = vpop.permute.xlu0 %4001
      %4003 = vrot.lane.b32.xlu0 %v3960, 8
      %v4004 = vpop.permute.xlu0 %4003
      %4005 = vrot.lane.b32.xlu0 %v3963, 8
      %v4006 = vpop.permute.xlu0 %4005
      %4007 = vrot.lane.b32.xlu0 %v3966, 8
      %v4008 = vpop.permute.xlu0 %4007
      %4009 = vrot.lane.b32.xlu0 %v3969, 8
      %v4010 = vpop.permute.xlu0 %4009
      %4011 = vrot.lane.b32.xlu0 %v3972, 8
      %v4012 = vpop.permute.xlu0 %4011
      %4013 = vrot.lane.b32.xlu0 %v3975, 8
      %v4014 = vpop.permute.xlu0 %4013
      %4015 = vrot.lane.b32.xlu0 %v3978, 8
      %v4016 = vpop.permute.xlu0 %4015
      %4017 = vrot.lane.b32.xlu0 %v3981, 8
      %v4018 = vpop.permute.xlu0 %4017
      %4019 = vrot.lane.b32.xlu0 %v3984, 8
      %v4020 = vpop.permute.xlu0 %4019
      %4021 = vrot.lane.b32.xlu0 %v3987, 8
      %v4022 = vpop.permute.xlu0 %4021
      %4023 = vrot.lane.b32.xlu0 %v3990, 8
      %v4024 = vpop.permute.xlu0 %4023
      %4025 = vrot.lane.b32.xlu0 %v3993, 8
      %v4026 = vpop.permute.xlu0 %4025
      %4027 = vrot.lane.b32.xlu0 %v3996, 8
      %v4028 = vpop.permute.xlu0 %4027
      %v4030 = vsel %vm1223, %v3661, %v3918
      %v4032 = vsel %vm1223, %v3662, %v3920
      %v4034 = vsel %vm1223, %v3663, %v3922
      %v4036 = vsel %vm1223, %v3664, %v3924
      %v4038 = vsel %vm1223, %v3665, %v3926
      %v4040 = vsel %vm1223, %v3666, %v3928
      %v4042 = vsel %vm1223, %v3667, %v3930
      %v4044 = vsel %vm1223, %v3668, %v3932
      %v4046 = vsel %vm1223, %v3669, %v3934
      %v4048 = vsel %vm1223, %v3670, %v3936
      %v4050 = vsel %vm1223, %v3671, %v3938
      %v4052 = vsel %vm1223, %v3672, %v3940
      %v4054 = vsel %vm1223, %v3673, %v3942
      %v4056 = vsel %vm1223, %v3674, %v3944
      %v4058 = vsel %vm1223, %v3675, %v3946
      %v4060 = vsel %vm1223, %v3676, %v3948
      %v4062 = vsel %vm1256, %v4030, %v3998
      %v4064 = vsel %vm1256, %v4032, %v4000
      %v4066 = vsel %vm1256, %v4034, %v4002
      %v4068 = vsel %vm1256, %v4036, %v4004
      %v4070 = vsel %vm1256, %v4038, %v4006
      %v4072 = vsel %vm1256, %v4040, %v4008
      %v4074 = vsel %vm1256, %v4042, %v4010
      %v4076 = vsel %vm1256, %v4044, %v4012
      %v4078 = vsel %vm1256, %v4046, %v4014
      %v4080 = vsel %vm1256, %v4048, %v4016
      %v4082 = vsel %vm1256, %v4050, %v4018
      %v4084 = vsel %vm1256, %v4052, %v4020
      %v4086 = vsel %vm1256, %v4054, %v4022
      %v4088 = vsel %vm1256, %v4056, %v4024
      %v4090 = vsel %vm1256, %v4058, %v4026
      %v4092 = vsel %vm1256, %v4060, %v4028
      %v4093 = vld [vmem:[%s2] sm:$0xf]
      %v4094 = vld [vmem:[%s2 + $0x4] sm:$0x3]
      %v4095 = vld [vmem:[%s692] sm:$0xf]
      %v4096 = vld [vmem:[%s692 + $0x4] sm:$0xf]
      %v4097 = vld [vmem:[%s692 + $0x8] sm:$0x1]
      %v4098 = vld [vmem:[%s692 + $0xc] sm:$0xf]
      %v4099 = vld [vmem:[%s692 + $0x10] sm:$0xf]
      %v4100 = vld [vmem:[%s692 + $0x14] sm:$0x1]
      %v4101 = vld [vmem:[%s692 + $0x18] sm:$0xf]
      %v4102 = vld [vmem:[%s692 + $0x1c] sm:$0xf]
      %v4103 = vld [vmem:[%s692 + $0x20] sm:$0x1]
      %v4104 = vld [vmem:[%s692 + $0x24] sm:$0xf]
      %v4105 = vld [vmem:[%s692 + $0x28] sm:$0xf]
      %v4106 = vld [vmem:[%s692 + $0x2c] sm:$0x1]
      %v4107 = vld [vmem:[%s692 + $0x30] sm:$0xf]
      %v4108 = vld [vmem:[%s692 + $0x34] sm:$0xf]
      %v4109 = vld [vmem:[%s692 + $0x38] sm:$0x1]
      %v4110 = vld [vmem:[%s692 + $0x3c] sm:$0xf]
      %v4111 = vld [vmem:[%s692 + $0x40] sm:$0xf]
      %v4112 = vld [vmem:[%s692 + $0x44] sm:$0x1]
      %v4113 = vld [vmem:[%s692 + $0x48] sm:$0xf]
      %v4114 = vld [vmem:[%s692 + $0x4c] sm:$0xf]
      %v4115 = vld [vmem:[%s692 + $0x50] sm:$0x1]
      %v4116 = vld [vmem:[%s692 + $0x54] sm:$0xf]
      %v4117 = vld [vmem:[%s692 + $0x58] sm:$0xf]
      %v4118 = vld [vmem:[%s692 + $0x5c] sm:$0x1]
      %v4119 = vld [vmem:[%s692 + $0x60] sm:$0xf]
      %v4120 = vld [vmem:[%s692 + $0x64] sm:$0xf]
      %v4121 = vld [vmem:[%s692 + $0x68] sm:$0x1]
      %v4122 = vld [vmem:[%s692 + $0x6c] sm:$0xf]
      %v4123 = vld [vmem:[%s692 + $0x70] sm:$0xf]
      %v4124 = vld [vmem:[%s692 + $0x74] sm:$0x1]
      %v4125 = vld [vmem:[%s692 + $0x78] sm:$0xf]
      %v4126 = vld [vmem:[%s692 + $0x7c] sm:$0xf]
      %v4127 = vld [vmem:[%s692 + $0x80] sm:$0x1]
      %v4128 = vld [vmem:[%s692 + $0x84] sm:$0xf]
      %v4129 = vld [vmem:[%s692 + $0x88] sm:$0xf]
      %v4130 = vld [vmem:[%s692 + $0x8c] sm:$0x1]
      %v4131 = vld [vmem:[%s692 + $0x90] sm:$0xf]
      %v4132 = vld [vmem:[%s692 + $0x94] sm:$0xf]
      %v4133 = vld [vmem:[%s692 + $0x98] sm:$0x1]
      %v4134 = vld [vmem:[%s692 + $0x9c] sm:$0xf]
      %v4135 = vld [vmem:[%s692 + $0xa0] sm:$0xf]
      %v4136 = vld [vmem:[%s692 + $0xa4] sm:$0x1]
      %v4137 = vld [vmem:[%s692 + $0xa8] sm:$0xf]
      %v4138 = vld [vmem:[%s692 + $0xac] sm:$0xf]
      %v4139 = vld [vmem:[%s692 + $0xb0] sm:$0x1]
      %v4140 = vld [vmem:[%s692 + $0xb4] sm:$0xf]
      %v4141 = vld [vmem:[%s692 + $0xb8] sm:$0xf]
      %v4142 = vld [vmem:[%s692 + $0xbc] sm:$0x1]
      %v4175 = vunpack.c.l.b16 %v4095
      %v4176 = vunpack.c.l.b16 %v4096
      %v4177 = vunpack.c.l.b16 %v4098
      %v4178 = vunpack.c.l.b16 %v4099
      %v4179 = vunpack.c.l.b16 %v4101
      %v4180 = vunpack.c.l.b16 %v4102
      %v4181 = vunpack.c.l.b16 %v4104
      %v4182 = vunpack.c.l.b16 %v4105
      %v4183 = vunpack.c.l.b16 %v4107
      %v4184 = vunpack.c.l.b16 %v4108
      %v4185 = vunpack.c.l.b16 %v4110
      %v4186 = vunpack.c.l.b16 %v4111
      %v4187 = vunpack.c.l.b16 %v4113
      %v4188 = vunpack.c.l.b16 %v4114
      %v4189 = vunpack.c.l.b16 %v4116
      %v4190 = vunpack.c.l.b16 %v4117
      %v4191 = vunpack.c.l.b16 %v4119
      %v4192 = vunpack.c.l.b16 %v4120
      %v4193 = vunpack.c.l.b16 %v4122
      %v4194 = vunpack.c.l.b16 %v4123
      %v4195 = vunpack.c.l.b16 %v4125
      %v4196 = vunpack.c.l.b16 %v4126
      %v4197 = vunpack.c.l.b16 %v4128
      %v4198 = vunpack.c.l.b16 %v4129
      %v4199 = vunpack.c.l.b16 %v4131
      %v4200 = vunpack.c.l.b16 %v4132
      %v4201 = vunpack.c.l.b16 %v4134
      %v4202 = vunpack.c.l.b16 %v4135
      %v4203 = vunpack.c.l.b16 %v4137
      %v4204 = vunpack.c.l.b16 %v4138
      %v4205 = vunpack.c.l.b16 %v4140
      %v4206 = vunpack.c.l.b16 %v4141
      %v4207 = vpack.c.b16 %v4176, %v4175
      %v4208 = vpack.c.b16 %v4178, %v4177
      %v4209 = vpack.c.b16 %v4180, %v4179
      %v4210 = vpack.c.b16 %v4182, %v4181
      %v4211 = vpack.c.b16 %v4184, %v4183
      %v4212 = vpack.c.b16 %v4186, %v4185
      %v4213 = vpack.c.b16 %v4188, %v4187
      %v4214 = vpack.c.b16 %v4190, %v4189
      %v4215 = vpack.c.b16 %v4192, %v4191
      %v4216 = vpack.c.b16 %v4194, %v4193
      %v4217 = vpack.c.b16 %v4196, %v4195
      %v4218 = vpack.c.b16 %v4198, %v4197
      %v4219 = vpack.c.b16 %v4200, %v4199
      %v4220 = vpack.c.b16 %v4202, %v4201
      %v4221 = vpack.c.b16 %v4204, %v4203
      %v4222 = vpack.c.b16 %v4206, %v4205
      %v4239 = vunpack.c.l.b16 %v4097
      %v4240 = vunpack.c.l.b16 %v4100
      %v4241 = vunpack.c.l.b16 %v4103
      %v4242 = vunpack.c.l.b16 %v4106
      %v4243 = vunpack.c.l.b16 %v4109
      %v4244 = vunpack.c.l.b16 %v4112
      %v4245 = vunpack.c.l.b16 %v4115
      %v4246 = vunpack.c.l.b16 %v4118
      %v4247 = vunpack.c.l.b16 %v4121
      %v4248 = vunpack.c.l.b16 %v4124
      %v4249 = vunpack.c.l.b16 %v4127
      %v4250 = vunpack.c.l.b16 %v4130
      %v4251 = vunpack.c.l.b16 %v4133
      %v4252 = vunpack.c.l.b16 %v4136
      %v4253 = vunpack.c.l.b16 %v4139
      %v4254 = vunpack.c.l.b16 %v4142
      %v4255 = vpack.c.b16 %v4239, %v4239
      %v4256 = vpack.c.b16 %v4240, %v4240
      %v4257 = vpack.c.b16 %v4241, %v4241
      %v4258 = vpack.c.b16 %v4242, %v4242
      %v4259 = vpack.c.b16 %v4243, %v4243
      %v4260 = vpack.c.b16 %v4244, %v4244
      %v4261 = vpack.c.b16 %v4245, %v4245
      %v4262 = vpack.c.b16 %v4246, %v4246
      %v4263 = vpack.c.b16 %v4247, %v4247
      %v4264 = vpack.c.b16 %v4248, %v4248
      %v4265 = vpack.c.b16 %v4249, %v4249
      %v4266 = vpack.c.b16 %v4250, %v4250
      %v4267 = vpack.c.b16 %v4251, %v4251
      %v4268 = vpack.c.b16 %v4252, %v4252
      %v4269 = vpack.c.b16 %v4253, %v4253
      %v4270 = vpack.c.b16 %v4254, %v4254
      %v4272 = vshrl.u32 %v4207, 16
      %v4274 = vshll.u32 %v4207, 16
      %v4276 = vrot.slane %v4274, 1
      %v4277 = vor.u32 %v4272, %v4276
      %v4279 = vshll.u32 %v4255, 16
      %v4281 = vrot.slane %v4279, 1
      %v4282 = vsel %vm917, %v4277, %v4281
      %v4284 = vshrl.u32 %v4208, 16
      %v4286 = vshll.u32 %v4208, 16
      %v4288 = vrot.slane %v4286, 1
      %v4289 = vor.u32 %v4284, %v4288
      %v4291 = vshll.u32 %v4256, 16
      %v4293 = vrot.slane %v4291, 1
      %v4294 = vsel %vm917, %v4289, %v4293
      %v4296 = vshrl.u32 %v4209, 16
      %v4298 = vshll.u32 %v4209, 16
      %v4300 = vrot.slane %v4298, 1
      %v4301 = vor.u32 %v4296, %v4300
      %v4303 = vshll.u32 %v4257, 16
      %v4305 = vrot.slane %v4303, 1
      %v4306 = vsel %vm917, %v4301, %v4305
      %v4308 = vshrl.u32 %v4210, 16
      %v4310 = vshll.u32 %v4210, 16
      %v4312 = vrot.slane %v4310, 1
      %v4313 = vor.u32 %v4308, %v4312
      %v4315 = vshll.u32 %v4258, 16
      %v4317 = vrot.slane %v4315, 1
      %v4318 = vsel %vm917, %v4313, %v4317
      %v4320 = vshrl.u32 %v4211, 16
      %v4322 = vshll.u32 %v4211, 16
      %v4324 = vrot.slane %v4322, 1
      %v4325 = vor.u32 %v4320, %v4324
      %v4327 = vshll.u32 %v4259, 16
      %v4329 = vrot.slane %v4327, 1
      %v4330 = vsel %vm917, %v4325, %v4329
      %v4332 = vshrl.u32 %v4212, 16
      %v4334 = vshll.u32 %v4212, 16
      %v4336 = vrot.slane %v4334, 1
      %v4337 = vor.u32 %v4332, %v4336
      %v4339 = vshll.u32 %v4260, 16
      %v4341 = vrot.slane %v4339, 1
      %v4342 = vsel %vm917, %v4337, %v4341
      %v4344 = vshrl.u32 %v4213, 16
      %v4346 = vshll.u32 %v4213, 16
      %v4348 = vrot.slane %v4346, 1
      %v4349 = vor.u32 %v4344, %v4348
      %v4351 = vshll.u32 %v4261, 16
      %v4353 = vrot.slane %v4351, 1
      %v4354 = vsel %vm917, %v4349, %v4353
      %v4356 = vshrl.u32 %v4214, 16
      %v4358 = vshll.u32 %v4214, 16
      %v4360 = vrot.slane %v4358, 1
      %v4361 = vor.u32 %v4356, %v4360
      %v4363 = vshll.u32 %v4262, 16
      %v4365 = vrot.slane %v4363, 1
      %v4366 = vsel %vm917, %v4361, %v4365
      %v4368 = vshrl.u32 %v4215, 16
      %v4370 = vshll.u32 %v4215, 16
      %v4372 = vrot.slane %v4370, 1
      %v4373 = vor.u32 %v4368, %v4372
      %v4375 = vshll.u32 %v4263, 16
      %v4377 = vrot.slane %v4375, 1
      %v4378 = vsel %vm917, %v4373, %v4377
      %v4380 = vshrl.u32 %v4216, 16
      %v4382 = vshll.u32 %v4216, 16
      %v4384 = vrot.slane %v4382, 1
      %v4385 = vor.u32 %v4380, %v4384
      %v4387 = vshll.u32 %v4264, 16
      %v4389 = vrot.slane %v4387, 1
      %v4390 = vsel %vm917, %v4385, %v4389
      %v4392 = vshrl.u32 %v4217, 16
      %v4394 = vshll.u32 %v4217, 16
      %v4396 = vrot.slane %v4394, 1
      %v4397 = vor.u32 %v4392, %v4396
      %v4399 = vshll.u32 %v4265, 16
      %v4401 = vrot.slane %v4399, 1
      %v4402 = vsel %vm917, %v4397, %v4401
      %v4404 = vshrl.u32 %v4218, 16
      %v4406 = vshll.u32 %v4218, 16
      %v4408 = vrot.slane %v4406, 1
      %v4409 = vor.u32 %v4404, %v4408
      %v4411 = vshll.u32 %v4266, 16
      %v4413 = vrot.slane %v4411, 1
      %v4414 = vsel %vm917, %v4409, %v4413
      %v4416 = vshrl.u32 %v4219, 16
      %v4418 = vshll.u32 %v4219, 16
      %v4420 = vrot.slane %v4418, 1
      %v4421 = vor.u32 %v4416, %v4420
      %v4423 = vshll.u32 %v4267, 16
      %v4425 = vrot.slane %v4423, 1
      %v4426 = vsel %vm917, %v4421, %v4425
      %v4428 = vshrl.u32 %v4220, 16
      %v4430 = vshll.u32 %v4220, 16
      %v4432 = vrot.slane %v4430, 1
      %v4433 = vor.u32 %v4428, %v4432
      %v4435 = vshll.u32 %v4268, 16
      %v4437 = vrot.slane %v4435, 1
      %v4438 = vsel %vm917, %v4433, %v4437
      %v4440 = vshrl.u32 %v4221, 16
      %v4442 = vshll.u32 %v4221, 16
      %v4444 = vrot.slane %v4442, 1
      %v4445 = vor.u32 %v4440, %v4444
      %v4447 = vshll.u32 %v4269, 16
      %v4449 = vrot.slane %v4447, 1
      %v4450 = vsel %vm917, %v4445, %v4449
      %v4452 = vshrl.u32 %v4222, 16
      %v4454 = vshll.u32 %v4222, 16
      %v4456 = vrot.slane %v4454, 1
      %v4457 = vor.u32 %v4452, %v4456
      %v4459 = vshll.u32 %v4270, 16
      %v4461 = vrot.slane %v4459, 1
      %v4462 = vsel %vm917, %v4457, %v4461
      %4463 = vrot.lane.b32.xlu0 %v4282, 4
      %v4464 = vpop.permute.xlu0 %4463
      %4465 = vrot.lane.b32.xlu0 %v4294, 4
      %v4466 = vpop.permute.xlu0 %4465
      %4467 = vrot.lane.b32.xlu0 %v4306, 4
      %v4468 = vpop.permute.xlu0 %4467
      %4469 = vrot.lane.b32.xlu0 %v4318, 4
      %v4470 = vpop.permute.xlu0 %4469
      %4471 = vrot.lane.b32.xlu0 %v4330, 4
      %v4472 = vpop.permute.xlu0 %4471
      %4473 = vrot.lane.b32.xlu0 %v4342, 4
      %v4474 = vpop.permute.xlu0 %4473
      %4475 = vrot.lane.b32.xlu0 %v4354, 4
      %v4476 = vpop.permute.xlu0 %4475
      %4477 = vrot.lane.b32.xlu0 %v4366, 4
      %v4478 = vpop.permute.xlu0 %4477
      %4479 = vrot.lane.b32.xlu0 %v4378, 4
      %v4480 = vpop.permute.xlu0 %4479
      %4481 = vrot.lane.b32.xlu0 %v4390, 4
      %v4482 = vpop.permute.xlu0 %4481
      %4483 = vrot.lane.b32.xlu0 %v4402, 4
      %v4484 = vpop.permute.xlu0 %4483
      %4485 = vrot.lane.b32.xlu0 %v4414, 4
      %v4486 = vpop.permute.xlu0 %4485
      %4487 = vrot.lane.b32.xlu0 %v4426, 4
      %v4488 = vpop.permute.xlu0 %4487
      %4489 = vrot.lane.b32.xlu0 %v4438, 4
      %v4490 = vpop.permute.xlu0 %4489
      %4491 = vrot.lane.b32.xlu0 %v4450, 4
      %v4492 = vpop.permute.xlu0 %4491
      %4493 = vrot.lane.b32.xlu0 %v4462, 4
      %v4494 = vpop.permute.xlu0 %4493
      %v4495 = vrot.slane %v4207, 1
      %v4496 = vrot.slane %v4255, 1
      %v4497 = vsel %vm1142, %v4495, %v4496
      %v4498 = vrot.slane %v4208, 1
      %v4499 = vrot.slane %v4256, 1
      %v4500 = vsel %vm1142, %v4498, %v4499
      %v4501 = vrot.slane %v4209, 1
      %v4502 = vrot.slane %v4257, 1
      %v4503 = vsel %vm1142, %v4501, %v4502
      %v4504 = vrot.slane %v4210, 1
      %v4505 = vrot.slane %v4258, 1
      %v4506 = vsel %vm1142, %v4504, %v4505
      %v4507 = vrot.slane %v4211, 1
      %v4508 = vrot.slane %v4259, 1
      %v4509 = vsel %vm1142, %v4507, %v4508
      %v4510 = vrot.slane %v4212, 1
      %v4511 = vrot.slane %v4260, 1
      %v4512 = vsel %vm1142, %v4510, %v4511
      %v4513 = vrot.slane %v4213, 1
      %v4514 = vrot.slane %v4261, 1
      %v4515 = vsel %vm1142, %v4513, %v4514
      %v4516 = vrot.slane %v4214, 1
      %v4517 = vrot.slane %v4262, 1
      %v4518 = vsel %vm1142, %v4516, %v4517
      %v4519 = vrot.slane %v4215, 1
      %v4520 = vrot.slane %v4263, 1
      %v4521 = vsel %vm1142, %v4519, %v4520
      %v4522 = vrot.slane %v4216, 1
      %v4523 = vrot.slane %v4264, 1
      %v4524 = vsel %vm1142, %v4522, %v4523
      %v4525 = vrot.slane %v4217, 1
      %v4526 = vrot.slane %v4265, 1
      %v4527 = vsel %vm1142, %v4525, %v4526
      %v4528 = vrot.slane %v4218, 1
      %v4529 = vrot.slane %v4266, 1
      %v4530 = vsel %vm1142, %v4528, %v4529
      %v4531 = vrot.slane %v4219, 1
      %v4532 = vrot.slane %v4267, 1
      %v4533 = vsel %vm1142, %v4531, %v4532
      %v4534 = vrot.slane %v4220, 1
      %v4535 = vrot.slane %v4268, 1
      %v4536 = vsel %vm1142, %v4534, %v4535
      %v4537 = vrot.slane %v4221, 1
      %v4538 = vrot.slane %v4269, 1
      %v4539 = vsel %vm1142, %v4537, %v4538
      %v4540 = vrot.slane %v4222, 1
      %v4541 = vrot.slane %v4270, 1
      %v4542 = vsel %vm1142, %v4540, %v4541
      %4543 = vrot.lane.b32.xlu0 %v4497, 8
      %v4544 = vpop.permute.xlu0 %4543
      %4545 = vrot.lane.b32.xlu0 %v4500, 8
      %v4546 = vpop.permute.xlu0 %4545
      %4547 = vrot.lane.b32.xlu0 %v4503, 8
      %v4548 = vpop.permute.xlu0 %4547
      %4549 = vrot.lane.b32.xlu0 %v4506, 8
      %v4550 = vpop.permute.xlu0 %4549
      %4551 = vrot.lane.b32.xlu0 %v4509, 8
      %v4552 = vpop.permute.xlu0 %4551
      %4553 = vrot.lane.b32.xlu0 %v4512, 8
      %v4554 = vpop.permute.xlu0 %4553
      %4555 = vrot.lane.b32.xlu0 %v4515, 8
      %v4556 = vpop.permute.xlu0 %4555
      %4557 = vrot.lane.b32.xlu0 %v4518, 8
      %v4558 = vpop.permute.xlu0 %4557
      %4559 = vrot.lane.b32.xlu0 %v4521, 8
      %v4560 = vpop.permute.xlu0 %4559
      %4561 = vrot.lane.b32.xlu0 %v4524, 8
      %v4562 = vpop.permute.xlu0 %4561
      %4563 = vrot.lane.b32.xlu0 %v4527, 8
      %v4564 = vpop.permute.xlu0 %4563
      %4565 = vrot.lane.b32.xlu0 %v4530, 8
      %v4566 = vpop.permute.xlu0 %4565
      %4567 = vrot.lane.b32.xlu0 %v4533, 8
      %v4568 = vpop.permute.xlu0 %4567
      %4569 = vrot.lane.b32.xlu0 %v4536, 8
      %v4570 = vpop.permute.xlu0 %4569
      %4571 = vrot.lane.b32.xlu0 %v4539, 8
      %v4572 = vpop.permute.xlu0 %4571
      %4573 = vrot.lane.b32.xlu0 %v4542, 8
      %v4574 = vpop.permute.xlu0 %4573
      %v4576 = vsel %vm1223, %v4207, %v4464
      %v4578 = vsel %vm1223, %v4208, %v4466
      %v4580 = vsel %vm1223, %v4209, %v4468
      %v4582 = vsel %vm1223, %v4210, %v4470
      %v4584 = vsel %vm1223, %v4211, %v4472
      %v4586 = vsel %vm1223, %v4212, %v4474
      %v4588 = vsel %vm1223, %v4213, %v4476
      %v4590 = vsel %vm1223, %v4214, %v4478
      %v4592 = vsel %vm1223, %v4215, %v4480
      %v4594 = vsel %vm1223, %v4216, %v4482
      %v4596 = vsel %vm1223, %v4217, %v4484
      %v4598 = vsel %vm1223, %v4218, %v4486
      %v4600 = vsel %vm1223, %v4219, %v4488
      %v4602 = vsel %vm1223, %v4220, %v4490
      %v4604 = vsel %vm1223, %v4221, %v4492
      %v4606 = vsel %vm1223, %v4222, %v4494
      %v4608 = vsel %vm1256, %v4576, %v4544
      %v4610 = vsel %vm1256, %v4578, %v4546
      %v4612 = vsel %vm1256, %v4580, %v4548
      %v4614 = vsel %vm1256, %v4582, %v4550
      %v4616 = vsel %vm1256, %v4584, %v4552
      %v4618 = vsel %vm1256, %v4586, %v4554
      %v4620 = vsel %vm1256, %v4588, %v4556
      %v4622 = vsel %vm1256, %v4590, %v4558
      %v4624 = vsel %vm1256, %v4592, %v4560
      %v4626 = vsel %vm1256, %v4594, %v4562
      %v4628 = vsel %vm1256, %v4596, %v4564
      %v4630 = vsel %vm1256, %v4598, %v4566
      %v4632 = vsel %vm1256, %v4600, %v4568
      %v4634 = vsel %vm1256, %v4602, %v4570
      %v4636 = vsel %vm1256, %v4604, %v4572
      %v4638 = vsel %vm1256, %v4606, %v4574
      %s4639 = scalar_lea.vmem %s2, 8
      %v4640 = vld [vmem:[%s4639] sm:$0xf]
      %v4641 = vld [vmem:[%s4639 + $0x4] sm:$0x3]
      %v4644 = vunpack.c.l.b16 %v4640
      %v4645 = vunpack.c.l.b16 %v4641
      %v4646 = vpack.c.b16 %v4645, %v4644
      %v4647 = vsel %vm1843, %v4608, 0
      %v4649 = vsel %vm1843, %v4610, 0
      %v4651 = vsel %vm1843, %v4612, 0
      %v4653 = vsel %vm1843, %v4614, 0
      %v4655 = vsel %vm1843, %v4616, 0
      %v4657 = vsel %vm1843, %v4618, 0
      %v4659 = vsel %vm1843, %v4620, 0
      %v4661 = vsel %vm1843, %v4622, 0
      %v4663 = vsel %vm1843, %v4624, 0
      %v4665 = vsel %vm1843, %v4626, 0
      %v4667 = vsel %vm1843, %v4628, 0
      %v4669 = vsel %vm1843, %v4630, 0
      %v4671 = vsel %vm1843, %v4632, 0
      %v4673 = vsel %vm1843, %v4634, 0
      %v4675 = vsel %vm1843, %v4636, 0
      %v4677 = vsel %vm1843, %v4638, 0
      %v4680 = vsel %vm1876, %v4646, 0
      %4682 = vmatprep.subr.bf16.mxu0 0
      %4683 = vmatpush1.bf16.msra.mxu0 %v4680
      %4684 = vmatprep.subr.bf16.mxu0 0
      %4685 = vmatpush1.bf16.msra.mxu0 0
      %4686 = vmatprep.subr.bf16.mxu0 0
      %4687 = vmatpush1.bf16.msra.mxu0 0
      %4688 = vmatprep.subr.bf16.mxu0 0
      %4689 = vmatpush1.bf16.msra.mxu0 0
      %4690 = vmatprep.subr.bf16.mxu0 0
      %4691 = vmatpush1.bf16.msra.mxu0 0
      %4692 = vmatprep.subr.bf16.mxu0 0
      %4693 = vmatpush1.bf16.msra.mxu0 0
      %4694 = vmatprep.subr.bf16.mxu0 0
      %4695 = vmatpush1.bf16.msra.mxu0 0
      %4696 = vmatprep.subr.bf16.mxu0 0
      %4697 = vmatpush1.bf16.msra.mxu0 0
      %4698 = vmatprep.subr.bf16.mxu0 0
      %4699 = vmatpush1.bf16.msra.mxu0 0
      %4700 = vmatprep.subr.bf16.mxu0 0
      %4701 = vmatpush1.bf16.msra.mxu0 0
      %4702 = vmatprep.subr.bf16.mxu0 0
      %4703 = vmatpush1.bf16.msra.mxu0 0
      %4704 = vmatprep.subr.bf16.mxu0 0
      %4705 = vmatpush1.bf16.msra.mxu0 0
      %4706 = vmatprep.subr.bf16.mxu0 0
      %4707 = vmatpush1.bf16.msra.mxu0 0
      %4708 = vmatprep.subr.bf16.mxu0 0
      %4709 = vmatpush1.bf16.msra.mxu0 0
      %4710 = vmatprep.subr.bf16.mxu0 0
      %4711 = vmatpush1.bf16.msra.mxu0 0
      %4712 = vmatprep.subr.bf16.mxu0 0
      %4713 = vmatpush1.bf16.msra.mxu0 0
      %4714 = vmatprep.mubr.bf16.mxu0 0
      %4715 = vmatmul.mubr.bf16.gmra.mrb[0].mxu0 %v4647
      %v4716 = vpop.f32.mrb[0].mxu0
      %v4717 = vadd.f32 0.0, %v4716
      %v4718 = vpop.f32.mrb[0].mxu0
      %v4719 = vpop.f32.mrb[0].mxu0
      %v4720 = vadd.f32 0.0, %v4719
      %v4721 = vpop.f32.mrb[0].mxu0
      %4722 = vmatprep.mubr.bf16.mxu0 0
      %4723 = vmatmul.mubr.bf16.gmra.mrb[0].mxu0 %v4649
      %v4724 = vpop.f32.mrb[0].mxu0
      %v4725 = vadd.f32 0.0, %v4724
      %v4726 = vpop.f32.mrb[0].mxu0
      %v4727 = vpop.f32.mrb[0].mxu0
      %v4728 = vadd.f32 0.0, %v4727
      %v4729 = vpop.f32.mrb[0].mxu0
      %4730 = vmatprep.mubr.bf16.mxu0 0
      %4731 = vmatmul.mubr.bf16.gmra.mrb[0].mxu0 %v4651
      %v4732 = vpop.f32.mrb[0].mxu0
      %v4733 = vadd.f32 0.0, %v4732
      %v4734 = vpop.f32.mrb[0].mxu0
      %v4735 = vpop.f32.mrb[0].mxu0
      %v4736 = vadd.f32 0.0, %v4735
      %v4737 = vpop.f32.mrb[0].mxu0
      %4738 = vmatprep.mubr.bf16.mxu0 0
      %4739 = vmatmul.mubr.bf16.gmra.mrb[0].mxu0 %v4653
      %v4740 = vpop.f32.mrb[0].mxu0
      %v4741 = vadd.f32 0.0, %v4740
      %v4742 = vpop.f32.mrb[0].mxu0
      %v4743 = vpop.f32.mrb[0].mxu0
      %v4744 = vadd.f32 0.0, %v4743
      %v4745 = vpop.f32.mrb[0].mxu0
      %4746 = vmatprep.mubr.bf16.mxu0 0
      %4747 = vmatmul.mubr.bf16.gmra.mrb[0].mxu0 %v4655
      %v4748 = vpop.f32.mrb[0].mxu0
      %v4749 = vadd.f32 0.0, %v4748
      %v4750 = vpop.f32.mrb[0].mxu0
      %v4751 = vpop.f32.mrb[0].mxu0
      %v4752 = vadd.f32 0.0, %v4751
      %v4753 = vpop.f32.mrb[0].mxu0
      %4754 = vmatprep.mubr.bf16.mxu0 0
      %4755 = vmatmul.mubr.bf16.gmra.mrb[0].mxu0 %v4657
      %v4756 = vpop.f32.mrb[0].mxu0
      %v4757 = vadd.f32 0.0, %v4756
      %v4758 = vpop.f32.mrb[0].mxu0
      %v4759 = vpop.f32.mrb[0].mxu0
      %v4760 = vadd.f32 0.0, %v4759
      %v4761 = vpop.f32.mrb[0].mxu0
      %4762 = vmatprep.mubr.bf16.mxu0 0
      %4763 = vmatmul.mubr.bf16.gmra.mrb[0].mxu0 %v4659
      %v4764 = vpop.f32.mrb[0].mxu0
      %v4765 = vadd.f32 0.0, %v4764
      %v4766 = vpop.f32.mrb[0].mxu0
      %v4767 = vpop.f32.mrb[0].mxu0
      %v4768 = vadd.f32 0.0, %v4767
      %v4769 = vpop.f32.mrb[0].mxu0
      %4770 = vmatprep.mubr.bf16.mxu0 0
      %4771 = vmatmul.mubr.bf16.gmra.mrb[0].mxu0 %v4661
      %v4772 = vpop.f32.mrb[0].mxu0
      %v4773 = vadd.f32 0.0, %v4772
      %v4774 = vpop.f32.mrb[0].mxu0
      %v4775 = vpop.f32.mrb[0].mxu0
      %v4776 = vadd.f32 0.0, %v4775
      %v4777 = vpop.f32.mrb[0].mxu0
      %4778 = vmatprep.mubr.bf16.mxu0 0
      %4779 = vmatmul.mubr.bf16.gmra.mrb[0].mxu0 %v4663
      %v4780 = vpop.f32.mrb[0].mxu0
      %v4781 = vadd.f32 0.0, %v4780
      %v4782 = vpop.f32.mrb[0].mxu0
      %v4783 = vpop.f32.mrb[0].mxu0
      %v4784 = vadd.f32 0.0, %v4783
      %v4785 = vpop.f32.mrb[0].mxu0
      %4786 = vmatprep.mubr.bf16.mxu0 0
      %4787 = vmatmul.mubr.bf16.gmra.mrb[0].mxu0 %v4665
      %v4788 = vpop.f32.mrb[0].mxu0
      %v4789 = vadd.f32 0.0, %v4788
      %v4790 = vpop.f32.mrb[0].mxu0
      %v4791 = vpop.f32.mrb[0].mxu0
      %v4792 = vadd.f32 0.0, %v4791
      %v4793 = vpop.f32.mrb[0].mxu0
      %4794 = vmatprep.mubr.bf16.mxu0 0
      %4795 = vmatmul.mubr.bf16.gmra.mrb[0].mxu0 %v4667
      %v4796 = vpop.f32.mrb[0].mxu0
      %v4797 = vadd.f32 0.0, %v4796
      %v4798 = vpop.f32.mrb[0].mxu0
      %v4799 = vpop.f32.mrb[0].mxu0
      %v4800 = vadd.f32 0.0, %v4799
      %v4801 = vpop.f32.mrb[0].mxu0
      %4802 = vmatprep.mubr.bf16.mxu0 0
      %4803 = vmatmul.mubr.bf16.gmra.mrb[0].mxu0 %v4669
      %v4804 = vpop.f32.mrb[0].mxu0
      %v4805 = vadd.f32 0.0, %v4804
      %v4806 = vpop.f32.mrb[0].mxu0
      %v4807 = vpop.f32.mrb[0].mxu0
      %v4808 = vadd.f32 0.0, %v4807
      %v4809 = vpop.f32.mrb[0].mxu0
      %4810 = vmatprep.mubr.bf16.mxu0 0
      %4811 = vmatmul.mubr.bf16.gmra.mrb[0].mxu0 %v4671
      %v4812 = vpop.f32.mrb[0].mxu0
      %v4813 = vadd.f32 0.0, %v4812
      %v4814 = vpop.f32.mrb[0].mxu0
      %v4815 = vpop.f32.mrb[0].mxu0
      %v4816 = vadd.f32 0.0, %v4815
      %v4817 = vpop.f32.mrb[0].mxu0
      %4818 = vmatprep.mubr.bf16.mxu0 0
      %4819 = vmatmul.mubr.bf16.gmra.mrb[0].mxu0 %v4673
      %v4820 = vpop.f32.mrb[0].mxu0
      %v4821 = vadd.f32 0.0, %v4820
      %v4822 = vpop.f32.mrb[0].mxu0
      %v4823 = vpop.f32.mrb[0].mxu0
      %v4824 = vadd.f32 0.0, %v4823
      %v4825 = vpop.f32.mrb[0].mxu0
      %4826 = vmatprep.mubr.bf16.mxu0 0
      %4827 = vmatmul.mubr.bf16.gmra.mrb[0].mxu0 %v4675
      %v4828 = vpop.f32.mrb[0].mxu0
      %v4829 = vadd.f32 0.0, %v4828
      %v4830 = vpop.f32.mrb[0].mxu0
      %v4831 = vpop.f32.mrb[0].mxu0
      %v4832 = vadd.f32 0.0, %v4831
      %v4833 = vpop.f32.mrb[0].mxu0
      %4834 = vmatprep.mubr.bf16.mxu0 0
      %4835 = vmatmul.mubr.bf16.gmra.mrb[0].mxu0 %v4677
      %v4836 = vpop.f32.mrb[0].mxu0
      %v4837 = vadd.f32 0.0, %v4836
      %v4838 = vpop.f32.mrb[0].mxu0
      %v4839 = vpop.f32.mrb[0].mxu0
      %v4840 = vadd.f32 0.0, %v4839
      %v4841 = vpop.f32.mrb[0].mxu0
      %4842 = vdwg.mxu0
      %v4845 = vunpack.c.l.b16 %v4093
      %v4846 = vunpack.c.l.b16 %v4094
      %v4847 = vpack.c.b16 %v4846, %v4845
      %v4848 = vsel %vm1843, %v4062, 0
      %v4850 = vsel %vm1843, %v4064, 0
      %v4852 = vsel %vm1843, %v4066, 0
      %v4854 = vsel %vm1843, %v4068, 0
      %v4856 = vsel %vm1843, %v4070, 0
      %v4858 = vsel %vm1843, %v4072, 0
      %v4860 = vsel %vm1843, %v4074, 0
      %v4862 = vsel %vm1843, %v4076, 0
      %v4864 = vsel %vm1843, %v4078, 0
      %v4866 = vsel %vm1843, %v4080, 0
      %v4868 = vsel %vm1843, %v4082, 0
      %v4870 = vsel %vm1843, %v4084, 0
      %v4872 = vsel %vm1843, %v4086, 0
      %v4874 = vsel %vm1843, %v4088, 0
      %v4876 = vsel %vm1843, %v4090, 0
      %v4878 = vsel %vm1843, %v4092, 0
      %v4881 = vsel %vm1876, %v4847, 0
      %4883 = vmatprep.subr.bf16.mxu0 0
      %4884 = vmatpush1.bf16.msra.mxu0 %v4881
      %4885 = vmatprep.subr.bf16.mxu0 0
      %4886 = vmatpush1.bf16.msra.mxu0 0
      %4887 = vmatprep.subr.bf16.mxu0 0
      %4888 = vmatpush1.bf16.msra.mxu0 0
      %4889 = vmatprep.subr.bf16.mxu0 0
      %4890 = vmatpush1.bf16.msra.mxu0 0
      %4891 = vmatprep.subr.bf16.mxu0 0
      %4892 = vmatpush1.bf16.msra.mxu0 0
      %4893 = vmatprep.subr.bf16.mxu0 0
      %4894 = vmatpush1.bf16.msra.mxu0 0
      %4895 = vmatprep.subr.bf16.mxu0 0
      %4896 = vmatpush1.bf16.msra.mxu0 0
      %4897 = vmatprep.subr.bf16.mxu0 0
      %4898 = vmatpush1.bf16.msra.mxu0 0
      %4899 = vmatprep.subr.bf16.mxu0 0
      %4900 = vmatpush1.bf16.msra.mxu0 0
      %4901 = vmatprep.subr.bf16.mxu0 0
      %4902 = vmatpush1.bf16.msra.mxu0 0
      %4903 = vmatprep.subr.bf16.mxu0 0
      %4904 = vmatpush1.bf16.msra.mxu0 0
      %4905 = vmatprep.subr.bf16.mxu0 0
      %4906 = vmatpush1.bf16.msra.mxu0 0
      %4907 = vmatprep.subr.bf16.mxu0 0
      %4908 = vmatpush1.bf16.msra.mxu0 0
      %4909 = vmatprep.subr.bf16.mxu0 0
      %4910 = vmatpush1.bf16.msra.mxu0 0
      %4911 = vmatprep.subr.bf16.mxu0 0
      %4912 = vmatpush1.bf16.msra.mxu0 0
      %4913 = vmatprep.subr.bf16.mxu0 0
      %4914 = vmatpush1.bf16.msra.mxu0 0
      %4915 = vmatprep.mubr.bf16.mxu0 0
      %4916 = vmatmul.mubr.bf16.gmra.mrb[0].mxu0 %v4848
      %v4917 = vpop.f32.mrb[0].mxu0
      %v4918 = vadd.f32 %v4717, %v4917
      %v4919 = vpop.f32.mrb[0].mxu0
      %v4920 = vpop.f32.mrb[0].mxu0
      %v4921 = vadd.f32 %v4720, %v4920
      %v4922 = vpop.f32.mrb[0].mxu0
      %4923 = vmatprep.mubr.bf16.mxu0 0
      %4924 = vmatmul.mubr.bf16.gmra.mrb[0].mxu0 %v4850
      %v4925 = vpop.f32.mrb[0].mxu0
      %v4926 = vadd.f32 %v4725, %v4925
      %v4927 = vpop.f32.mrb[0].mxu0
      %v4928 = vpop.f32.mrb[0].mxu0
      %v4929 = vadd.f32 %v4728, %v4928
      %v4930 = vpop.f32.mrb[0].mxu0
      %4931 = vmatprep.mubr.bf16.mxu0 0
      %4932 = vmatmul.mubr.bf16.gmra.mrb[0].mxu0 %v4852
      %v4933 = vpop.f32.mrb[0].mxu0
      %v4934 = vadd.f32 %v4733, %v4933
      %v4935 = vpop.f32.mrb[0].mxu0
      %v4936 = vpop.f32.mrb[0].mxu0
      %v4937 = vadd.f32 %v4736, %v4936
      %v4938 = vpop.f32.mrb[0].mxu0
      %4939 = vmatprep.mubr.bf16.mxu0 0
      %4940 = vmatmul.mubr.bf16.gmra.mrb[0].mxu0 %v4854
      %v4941 = vpop.f32.mrb[0].mxu0
      %v4942 = vadd.f32 %v4741, %v4941
      %v4943 = vpop.f32.mrb[0].mxu0
      %v4944 = vpop.f32.mrb[0].mxu0
      %v4945 = vadd.f32 %v4744, %v4944
      %v4946 = vpop.f32.mrb[0].mxu0
      %4947 = vmatprep.mubr.bf16.mxu0 0
      %4948 = vmatmul.mubr.bf16.gmra.mrb[0].mxu0 %v4856
      %v4949 = vpop.f32.mrb[0].mxu0
      %v4950 = vadd.f32 %v4749, %v4949
      %v4951 = vpop.f32.mrb[0].mxu0
      %v4952 = vpop.f32.mrb[0].mxu0
      %v4953 = vadd.f32 %v4752, %v4952
      %v4954 = vpop.f32.mrb[0].mxu0
      %4955 = vmatprep.mubr.bf16.mxu0 0
      %4956 = vmatmul.mubr.bf16.gmra.mrb[0].mxu0 %v4858
      %v4957 = vpop.f32.mrb[0].mxu0
      %v4958 = vadd.f32 %v4757, %v4957
      %v4959 = vpop.f32.mrb[0].mxu0
      %v4960 = vpop.f32.mrb[0].mxu0
      %v4961 = vadd.f32 %v4760, %v4960
      %v4962 = vpop.f32.mrb[0].mxu0
      %4963 = vmatprep.mubr.bf16.mxu0 0
      %4964 = vmatmul.mubr.bf16.gmra.mrb[0].mxu0 %v4860
      %v4965 = vpop.f32.mrb[0].mxu0
      %v4966 = vadd.f32 %v4765, %v4965
      %v4967 = vpop.f32.mrb[0].mxu0
      %v4968 = vpop.f32.mrb[0].mxu0
      %v4969 = vadd.f32 %v4768, %v4968
      %v4970 = vpop.f32.mrb[0].mxu0
      %4971 = vmatprep.mubr.bf16.mxu0 0
      %4972 = vmatmul.mubr.bf16.gmra.mrb[0].mxu0 %v4862
      %v4973 = vpop.f32.mrb[0].mxu0
      %v4974 = vadd.f32 %v4773, %v4973
      %v4975 = vpop.f32.mrb[0].mxu0
      %v4976 = vpop.f32.mrb[0].mxu0
      %v4977 = vadd.f32 %v4776, %v4976
      %v4978 = vpop.f32.mrb[0].mxu0
      %4979 = vmatprep.mubr.bf16.mxu0 0
      %4980 = vmatmul.mubr.bf16.gmra.mrb[0].mxu0 %v4864
      %v4981 = vpop.f32.mrb[0].mxu0
      %v4982 = vadd.f32 %v4781, %v4981
      %v4983 = vpop.f32.mrb[0].mxu0
      %v4984 = vpop.f32.mrb[0].mxu0
      %v4985 = vadd.f32 %v4784, %v4984
      %v4986 = vpop.f32.mrb[0].mxu0
      %4987 = vmatprep.mubr.bf16.mxu0 0
      %4988 = vmatmul.mubr.bf16.gmra.mrb[0].mxu0 %v4866
      %v4989 = vpop.f32.mrb[0].mxu0
      %v4990 = vadd.f32 %v4789, %v4989
      %v4991 = vpop.f32.mrb[0].mxu0
      %v4992 = vpop.f32.mrb[0].mxu0
      %v4993 = vadd.f32 %v4792, %v4992
      %v4994 = vpop.f32.mrb[0].mxu0
      %4995 = vmatprep.mubr.bf16.mxu0 0
      %4996 = vmatmul.mubr.bf16.gmra.mrb[0].mxu0 %v4868
      %v4997 = vpop.f32.mrb[0].mxu0
      %v4998 = vadd.f32 %v4797, %v4997
      %v4999 = vpop.f32.mrb[0].mxu0
      %v5000 = vpop.f32.mrb[0].mxu0
      %v5001 = vadd.f32 %v4800, %v5000
      %v5002 = vpop.f32.mrb[0].mxu0
      %5003 = vmatprep.mubr.bf16.mxu0 0
      %5004 = vmatmul.mubr.bf16.gmra.mrb[0].mxu0 %v4870
      %v5005 = vpop.f32.mrb[0].mxu0
      %v5006 = vadd.f32 %v4805, %v5005
      %v5007 = vpop.f32.mrb[0].mxu0
      %v5008 = vpop.f32.mrb[0].mxu0
      %v5009 = vadd.f32 %v4808, %v5008
      %v5010 = vpop.f32.mrb[0].mxu0
      %5011 = vmatprep.mubr.bf16.mxu0 0
      %5012 = vmatmul.mubr.bf16.gmra.mrb[0].mxu0 %v4872
      %v5013 = vpop.f32.mrb[0].mxu0
      %v5014 = vadd.f32 %v4813, %v5013
      %v5015 = vpop.f32.mrb[0].mxu0
      %v5016 = vpop.f32.mrb[0].mxu0
      %v5017 = vadd.f32 %v4816, %v5016
      %v5018 = vpop.f32.mrb[0].mxu0
      %5019 = vmatprep.mubr.bf16.mxu0 0
      %5020 = vmatmul.mubr.bf16.gmra.mrb[0].mxu0 %v4874
      %v5021 = vpop.f32.mrb[0].mxu0
      %v5022 = vadd.f32 %v4821, %v5021
      %v5023 = vpop.f32.mrb[0].mxu0
      %v5024 = vpop.f32.mrb[0].mxu0
      %v5025 = vadd.f32 %v4824, %v5024
      %v5026 = vpop.f32.mrb[0].mxu0
      %5027 = vmatprep.mubr.bf16.mxu0 0
      %5028 = vmatmul.mubr.bf16.gmra.mrb[0].mxu0 %v4876
      %v5029 = vpop.f32.mrb[0].mxu0
      %v5030 = vadd.f32 %v4829, %v5029
      %v5031 = vpop.f32.mrb[0].mxu0
      %v5032 = vpop.f32.mrb[0].mxu0
      %v5033 = vadd.f32 %v4832, %v5032
      %v5034 = vpop.f32.mrb[0].mxu0
      %5035 = vmatprep.mubr.bf16.mxu0 0
      %5036 = vmatmul.mubr.bf16.gmra.mrb[0].mxu0 %v4878
      %v5037 = vpop.f32.mrb[0].mxu0
      %v5038 = vadd.f32 %v4837, %v5037
      %v5039 = vpop.f32.mrb[0].mxu0
      %v5040 = vpop.f32.mrb[0].mxu0
      %v5041 = vadd.f32 %v4840, %v5040
      %v5042 = vpop.f32.mrb[0].mxu0
      %5043 = vdwg.mxu0
      %v5044 = vld [vmem:[%s2242] sm:$0xf]
      %v5045 = vld [vmem:[%s2242 + $0x4] sm:$0xf]
      %v5046 = vld [vmem:[%s2242 + $0x8] sm:$0x1]
      %v5047 = vld [vmem:[%s2242 + $0xc] sm:$0xf]
      %v5048 = vld [vmem:[%s2242 + $0x10] sm:$0xf]
      %v5049 = vld [vmem:[%s2242 + $0x14] sm:$0x1]
      %v5050 = vld [vmem:[%s2242 + $0x18] sm:$0xf]
      %v5051 = vld [vmem:[%s2242 + $0x1c] sm:$0xf]
      %v5052 = vld [vmem:[%s2242 + $0x20] sm:$0x1]
      %v5053 = vld [vmem:[%s2242 + $0x24] sm:$0xf]
      %v5054 = vld [vmem:[%s2242 + $0x28] sm:$0xf]
      %v5055 = vld [vmem:[%s2242 + $0x2c] sm:$0x1]
      %v5056 = vld [vmem:[%s2242 + $0x30] sm:$0xf]
      %v5057 = vld [vmem:[%s2242 + $0x34] sm:$0xf]
      %v5058 = vld [vmem:[%s2242 + $0x38] sm:$0x1]
      %v5059 = vld [vmem:[%s2242 + $0x3c] sm:$0xf]
      %v5060 = vld [vmem:[%s2242 + $0x40] sm:$0xf]
      %v5061 = vld [vmem:[%s2242 + $0x44] sm:$0x1]
      %v5062 = vld [vmem:[%s2242 + $0x48] sm:$0xf]
      %v5063 = vld [vmem:[%s2242 + $0x4c] sm:$0xf]
      %v5064 = vld [vmem:[%s2242 + $0x50] sm:$0x1]
      %v5065 = vld [vmem:[%s2242 + $0x54] sm:$0xf]
      %v5066 = vld [vmem:[%s2242 + $0x58] sm:$0xf]
      %v5067 = vld [vmem:[%s2242 + $0x5c] sm:$0x1]
      %v5068 = vld [vmem:[%s2242 + $0x60] sm:$0xf]
      %v5069 = vld [vmem:[%s2242 + $0x64] sm:$0xf]
      %v5070 = vld [vmem:[%s2242 + $0x68] sm:$0x1]
      %v5071 = vld [vmem:[%s2242 + $0x6c] sm:$0xf]
      %v5072 = vld [vmem:[%s2242 + $0x70] sm:$0xf]
      %v5073 = vld [vmem:[%s2242 + $0x74] sm:$0x1]
      %v5074 = vld [vmem:[%s2242 + $0x78] sm:$0xf]
      %v5075 = vld [vmem:[%s2242 + $0x7c] sm:$0xf]
      %v5076 = vld [vmem:[%s2242 + $0x80] sm:$0x1]
      %v5077 = vld [vmem:[%s2242 + $0x84] sm:$0xf]
      %v5078 = vld [vmem:[%s2242 + $0x88] sm:$0xf]
      %v5079 = vld [vmem:[%s2242 + $0x8c] sm:$0x1]
      %v5080 = vld [vmem:[%s2242 + $0x90] sm:$0xf]
      %v5081 = vld [vmem:[%s2242 + $0x94] sm:$0xf]
      %v5082 = vld [vmem:[%s2242 + $0x98] sm:$0x1]
      %v5083 = vld [vmem:[%s2242 + $0x9c] sm:$0xf]
      %v5084 = vld [vmem:[%s2242 + $0xa0] sm:$0xf]
      %v5085 = vld [vmem:[%s2242 + $0xa4] sm:$0x1]
      %v5086 = vld [vmem:[%s2242 + $0xa8] sm:$0xf]
      %v5087 = vld [vmem:[%s2242 + $0xac] sm:$0xf]
      %v5088 = vld [vmem:[%s2242 + $0xb0] sm:$0x1]
      %v5089 = vld [vmem:[%s2242 + $0xb4] sm:$0xf]
      %v5090 = vld [vmem:[%s2242 + $0xb8] sm:$0xf]
      %v5091 = vld [vmem:[%s2242 + $0xbc] sm:$0x1]
      %v5124 = vunpack.c.l.b16 %v5044
      %v5125 = vunpack.c.l.b16 %v5045
      %v5126 = vunpack.c.l.b16 %v5047
      %v5127 = vunpack.c.l.b16 %v5048
      %v5128 = vunpack.c.l.b16 %v5050
      %v5129 = vunpack.c.l.b16 %v5051
      %v5130 = vunpack.c.l.b16 %v5053
      %v5131 = vunpack.c.l.b16 %v5054
      %v5132 = vunpack.c.l.b16 %v5056
      %v5133 = vunpack.c.l.b16 %v5057
      %v5134 = vunpack.c.l.b16 %v5059
      %v5135 = vunpack.c.l.b16 %v5060
      %v5136 = vunpack.c.l.b16 %v5062
      %v5137 = vunpack.c.l.b16 %v5063
      %v5138 = vunpack.c.l.b16 %v5065
      %v5139 = vunpack.c.l.b16 %v5066
      %v5140 = vunpack.c.l.b16 %v5068
      %v5141 = vunpack.c.l.b16 %v5069
      %v5142 = vunpack.c.l.b16 %v5071
      %v5143 = vunpack.c.l.b16 %v5072
      %v5144 = vunpack.c.l.b16 %v5074
      %v5145 = vunpack.c.l.b16 %v5075
      %v5146 = vunpack.c.l.b16 %v5077
      %v5147 = vunpack.c.l.b16 %v5078
      %v5148 = vunpack.c.l.b16 %v5080
      %v5149 = vunpack.c.l.b16 %v5081
      %v5150 = vunpack.c.l.b16 %v5083
      %v5151 = vunpack.c.l.b16 %v5084
      %v5152 = vunpack.c.l.b16 %v5086
      %v5153 = vunpack.c.l.b16 %v5087
      %v5154 = vunpack.c.l.b16 %v5089
      %v5155 = vunpack.c.l.b16 %v5090
      %v5156 = vpack.c.b16 %v5125, %v5124
      %v5157 = vpack.c.b16 %v5127, %v5126
      %v5158 = vpack.c.b16 %v5129, %v5128
      %v5159 = vpack.c.b16 %v5131, %v5130
      %v5160 = vpack.c.b16 %v5133, %v5132
      %v5161 = vpack.c.b16 %v5135, %v5134
      %v5162 = vpack.c.b16 %v5137, %v5136
      %v5163 = vpack.c.b16 %v5139, %v5138
      %v5164 = vpack.c.b16 %v5141, %v5140
      %v5165 = vpack.c.b16 %v5143, %v5142
      %v5166 = vpack.c.b16 %v5145, %v5144
      %v5167 = vpack.c.b16 %v5147, %v5146
      %v5168 = vpack.c.b16 %v5149, %v5148
      %v5169 = vpack.c.b16 %v5151, %v5150
      %v5170 = vpack.c.b16 %v5153, %v5152
      %v5171 = vpack.c.b16 %v5155, %v5154
      %v5188 = vunpack.c.l.b16 %v5046
      %v5189 = vunpack.c.l.b16 %v5049
      %v5190 = vunpack.c.l.b16 %v5052
      %v5191 = vunpack.c.l.b16 %v5055
      %v5192 = vunpack.c.l.b16 %v5058
      %v5193 = vunpack.c.l.b16 %v5061
      %v5194 = vunpack.c.l.b16 %v5064
      %v5195 = vunpack.c.l.b16 %v5067
      %v5196 = vunpack.c.l.b16 %v5070
      %v5197 = vunpack.c.l.b16 %v5073
      %v5198 = vunpack.c.l.b16 %v5076
      %v5199 = vunpack.c.l.b16 %v5079
      %v5200 = vunpack.c.l.b16 %v5082
      %v5201 = vunpack.c.l.b16 %v5085
      %v5202 = vunpack.c.l.b16 %v5088
      %v5203 = vunpack.c.l.b16 %v5091
      %v5204 = vpack.c.b16 %v5188, %v5188
      %v5205 = vpack.c.b16 %v5189, %v5189
      %v5206 = vpack.c.b16 %v5190, %v5190
      %v5207 = vpack.c.b16 %v5191, %v5191
      %v5208 = vpack.c.b16 %v5192, %v5192
      %v5209 = vpack.c.b16 %v5193, %v5193
      %v5210 = vpack.c.b16 %v5194, %v5194
      %v5211 = vpack.c.b16 %v5195, %v5195
      %v5212 = vpack.c.b16 %v5196, %v5196
      %v5213 = vpack.c.b16 %v5197, %v5197
      %v5214 = vpack.c.b16 %v5198, %v5198
      %v5215 = vpack.c.b16 %v5199, %v5199
      %v5216 = vpack.c.b16 %v5200, %v5200
      %v5217 = vpack.c.b16 %v5201, %v5201
      %v5218 = vpack.c.b16 %v5202, %v5202
      %v5219 = vpack.c.b16 %v5203, %v5203
      %v5221 = vshrl.u32 %v5156, 16
      %v5223 = vshll.u32 %v5156, 16
      %v5225 = vrot.slane %v5223, 1
      %v5226 = vor.u32 %v5221, %v5225
      %v5228 = vshll.u32 %v5204, 16
      %v5230 = vrot.slane %v5228, 1
      %v5231 = vsel %vm917, %v5226, %v5230
      %v5233 = vshrl.u32 %v5157, 16
      %v5235 = vshll.u32 %v5157, 16
      %v5237 = vrot.slane %v5235, 1
      %v5238 = vor.u32 %v5233, %v5237
      %v5240 = vshll.u32 %v5205, 16
      %v5242 = vrot.slane %v5240, 1
      %v5243 = vsel %vm917, %v5238, %v5242
      %v5245 = vshrl.u32 %v5158, 16
      %v5247 = vshll.u32 %v5158, 16
      %v5249 = vrot.slane %v5247, 1
      %v5250 = vor.u32 %v5245, %v5249
      %v5252 = vshll.u32 %v5206, 16
      %v5254 = vrot.slane %v5252, 1
      %v5255 = vsel %vm917, %v5250, %v5254
      %v5257 = vshrl.u32 %v5159, 16
      %v5259 = vshll.u32 %v5159, 16
      %v5261 = vrot.slane %v5259, 1
      %v5262 = vor.u32 %v5257, %v5261
      %v5264 = vshll.u32 %v5207, 16
      %v5266 = vrot.slane %v5264, 1
      %v5267 = vsel %vm917, %v5262, %v5266
      %v5269 = vshrl.u32 %v5160, 16
      %v5271 = vshll.u32 %v5160, 16
      %v5273 = vrot.slane %v5271, 1
      %v5274 = vor.u32 %v5269, %v5273
      %v5276 = vshll.u32 %v5208, 16
      %v5278 = vrot.slane %v5276, 1
      %v5279 = vsel %vm917, %v5274, %v5278
      %v5281 = vshrl.u32 %v5161, 16
      %v5283 = vshll.u32 %v5161, 16
      %v5285 = vrot.slane %v5283, 1
      %v5286 = vor.u32 %v5281, %v5285
      %v5288 = vshll.u32 %v5209, 16
      %v5290 = vrot.slane %v5288, 1
      %v5291 = vsel %vm917, %v5286, %v5290
      %v5293 = vshrl.u32 %v5162, 16
      %v5295 = vshll.u32 %v5162, 16
      %v5297 = vrot.slane %v5295, 1
      %v5298 = vor.u32 %v5293, %v5297
      %v5300 = vshll.u32 %v5210, 16
      %v5302 = vrot.slane %v5300, 1
      %v5303 = vsel %vm917, %v5298, %v5302
      %v5305 = vshrl.u32 %v5163, 16
      %v5307 = vshll.u32 %v5163, 16
      %v5309 = vrot.slane %v5307, 1
      %v5310 = vor.u32 %v5305, %v5309
      %v5312 = vshll.u32 %v5211, 16
      %v5314 = vrot.slane %v5312, 1
      %v5315 = vsel %vm917, %v5310, %v5314
      %v5317 = vshrl.u32 %v5164, 16
      %v5319 = vshll.u32 %v5164, 16
      %v5321 = vrot.slane %v5319, 1
      %v5322 = vor.u32 %v5317, %v5321
      %v5324 = vshll.u32 %v5212, 16
      %v5326 = vrot.slane %v5324, 1
      %v5327 = vsel %vm917, %v5322, %v5326
      %v5329 = vshrl.u32 %v5165, 16
      %v5331 = vshll.u32 %v5165, 16
      %v5333 = vrot.slane %v5331, 1
      %v5334 = vor.u32 %v5329, %v5333
      %v5336 = vshll.u32 %v5213, 16
      %v5338 = vrot.slane %v5336, 1
      %v5339 = vsel %vm917, %v5334, %v5338
      %v5341 = vshrl.u32 %v5166, 16
      %v5343 = vshll.u32 %v5166, 16
      %v5345 = vrot.slane %v5343, 1
      %v5346 = vor.u32 %v5341, %v5345
      %v5348 = vshll.u32 %v5214, 16
      %v5350 = vrot.slane %v5348, 1
      %v5351 = vsel %vm917, %v5346, %v5350
      %v5353 = vshrl.u32 %v5167, 16
      %v5355 = vshll.u32 %v5167, 16
      %v5357 = vrot.slane %v5355, 1
      %v5358 = vor.u32 %v5353, %v5357
      %v5360 = vshll.u32 %v5215, 16
      %v5362 = vrot.slane %v5360, 1
      %v5363 = vsel %vm917, %v5358, %v5362
      %v5365 = vshrl.u32 %v5168, 16
      %v5367 = vshll.u32 %v5168, 16
      %v5369 = vrot.slane %v5367, 1
      %v5370 = vor.u32 %v5365, %v5369
      %v5372 = vshll.u32 %v5216, 16
      %v5374 = vrot.slane %v5372, 1
      %v5375 = vsel %vm917, %v5370, %v5374
      %v5377 = vshrl.u32 %v5169, 16
      %v5379 = vshll.u32 %v5169, 16
      %v5381 = vrot.slane %v5379, 1
      %v5382 = vor.u32 %v5377, %v5381
      %v5384 = vshll.u32 %v5217, 16
      %v5386 = vrot.slane %v5384, 1
      %v5387 = vsel %vm917, %v5382, %v5386
      %v5389 = vshrl.u32 %v5170, 16
      %v5391 = vshll.u32 %v5170, 16
      %v5393 = vrot.slane %v5391, 1
      %v5394 = vor.u32 %v5389, %v5393
      %v5396 = vshll.u32 %v5218, 16
      %v5398 = vrot.slane %v5396, 1
      %v5399 = vsel %vm917, %v5394, %v5398
      %v5401 = vshrl.u32 %v5171, 16
      %v5403 = vshll.u32 %v5171, 16
      %v5405 = vrot.slane %v5403, 1
      %v5406 = vor.u32 %v5401, %v5405
      %v5408 = vshll.u32 %v5219, 16
      %v5410 = vrot.slane %v5408, 1
      %v5411 = vsel %vm917, %v5406, %v5410
      %5412 = vrot.lane.b32.xlu0 %v5231, 4
      %v5413 = vpop.permute.xlu0 %5412
      %5414 = vrot.lane.b32.xlu0 %v5243, 4
      %v5415 = vpop.permute.xlu0 %5414
      %5416 = vrot.lane.b32.xlu0 %v5255, 4
      %v5417 = vpop.permute.xlu0 %5416
      %5418 = vrot.lane.b32.xlu0 %v5267, 4
      %v5419 = vpop.permute.xlu0 %5418
      %5420 = vrot.lane.b32.xlu0 %v5279, 4
      %v5421 = vpop.permute.xlu0 %5420
      %5422 = vrot.lane.b32.xlu0 %v5291, 4
      %v5423 = vpop.permute.xlu0 %5422
      %5424 = vrot.lane.b32.xlu0 %v5303, 4
      %v5425 = vpop.permute.xlu0 %5424
      %5426 = vrot.lane.b32.xlu0 %v5315, 4
      %v5427 = vpop.permute.xlu0 %5426
      %5428 = vrot.lane.b32.xlu0 %v5327, 4
      %v5429 = vpop.permute.xlu0 %5428
      %5430 = vrot.lane.b32.xlu0 %v5339, 4
      %v5431 = vpop.permute.xlu0 %5430
      %5432 = vrot.lane.b32.xlu0 %v5351, 4
      %v5433 = vpop.permute.xlu0 %5432
      %5434 = vrot.lane.b32.xlu0 %v5363, 4
      %v5435 = vpop.permute.xlu0 %5434
      %5436 = vrot.lane.b32.xlu0 %v5375, 4
      %v5437 = vpop.permute.xlu0 %5436
      %5438 = vrot.lane.b32.xlu0 %v5387, 4
      %v5439 = vpop.permute.xlu0 %5438
      %5440 = vrot.lane.b32.xlu0 %v5399, 4
      %v5441 = vpop.permute.xlu0 %5440
      %5442 = vrot.lane.b32.xlu0 %v5411, 4
      %v5443 = vpop.permute.xlu0 %5442
      %v5444 = vrot.slane %v5156, 1
      %v5445 = vrot.slane %v5204, 1
      %v5446 = vsel %vm1142, %v5444, %v5445
      %v5447 = vrot.slane %v5157, 1
      %v5448 = vrot.slane %v5205, 1
      %v5449 = vsel %vm1142, %v5447, %v5448
      %v5450 = vrot.slane %v5158, 1
      %v5451 = vrot.slane %v5206, 1
      %v5452 = vsel %vm1142, %v5450, %v5451
      %v5453 = vrot.slane %v5159, 1
      %v5454 = vrot.slane %v5207, 1
      %v5455 = vsel %vm1142, %v5453, %v5454
      %v5456 = vrot.slane %v5160, 1
      %v5457 = vrot.slane %v5208, 1
      %v5458 = vsel %vm1142, %v5456, %v5457
      %v5459 = vrot.slane %v5161, 1
      %v5460 = vrot.slane %v5209, 1
      %v5461 = vsel %vm1142, %v5459, %v5460
      %v5462 = vrot.slane %v5162, 1
      %v5463 = vrot.slane %v5210, 1
      %v5464 = vsel %vm1142, %v5462, %v5463
      %v5465 = vrot.slane %v5163, 1
      %v5466 = vrot.slane %v5211, 1
      %v5467 = vsel %vm1142, %v5465, %v5466
      %v5468 = vrot.slane %v5164, 1
      %v5469 = vrot.slane %v5212, 1
      %v5470 = vsel %vm1142, %v5468, %v5469
      %v5471 = vrot.slane %v5165, 1
      %v5472 = vrot.slane %v5213, 1
      %v5473 = vsel %vm1142, %v5471, %v5472
      %v5474 = vrot.slane %v5166, 1
      %v5475 = vrot.slane %v5214, 1
      %v5476 = vsel %vm1142, %v5474, %v5475
      %v5477 = vrot.slane %v5167, 1
      %v5478 = vrot.slane %v5215, 1
      %v5479 = vsel %vm1142, %v5477, %v5478
      %v5480 = vrot.slane %v5168, 1
      %v5481 = vrot.slane %v5216, 1
      %v5482 = vsel %vm1142, %v5480, %v5481
      %v5483 = vrot.slane %v5169, 1
      %v5484 = vrot.slane %v5217, 1
      %v5485 = vsel %vm1142, %v5483, %v5484
      %v5486 = vrot.slane %v5170, 1
      %v5487 = vrot.slane %v5218, 1
      %v5488 = vsel %vm1142, %v5486, %v5487
      %v5489 = vrot.slane %v5171, 1
      %v5490 = vrot.slane %v5219, 1
      %v5491 = vsel %vm1142, %v5489, %v5490
      %5492 = vrot.lane.b32.xlu0 %v5446, 8
      %v5493 = vpop.permute.xlu0 %5492
      %5494 = vrot.lane.b32.xlu0 %v5449, 8
      %v5495 = vpop.permute.xlu0 %5494
      %5496 = vrot.lane.b32.xlu0 %v5452, 8
      %v5497 = vpop.permute.xlu0 %5496
      %5498 = vrot.lane.b32.xlu0 %v5455, 8
      %v5499 = vpop.permute.xlu0 %5498
      %5500 = vrot.lane.b32.xlu0 %v5458, 8
      %v5501 = vpop.permute.xlu0 %5500
      %5502 = vrot.lane.b32.xlu0 %v5461, 8
      %v5503 = vpop.permute.xlu0 %5502
      %5504 = vrot.lane.b32.xlu0 %v5464, 8
      %v5505 = vpop.permute.xlu0 %5504
      %5506 = vrot.lane.b32.xlu0 %v5467, 8
      %v5507 = vpop.permute.xlu0 %5506
      %5508 = vrot.lane.b32.xlu0 %v5470, 8
      %v5509 = vpop.permute.xlu0 %5508
      %5510 = vrot.lane.b32.xlu0 %v5473, 8
      %v5511 = vpop.permute.xlu0 %5510
      %5512 = vrot.lane.b32.xlu0 %v5476, 8
      %v5513 = vpop.permute.xlu0 %5512
      %5514 = vrot.lane.b32.xlu0 %v5479, 8
      %v5515 = vpop.permute.xlu0 %5514
      %5516 = vrot.lane.b32.xlu0 %v5482, 8
      %v5517 = vpop.permute.xlu0 %5516
      %5518 = vrot.lane.b32.xlu0 %v5485, 8
      %v5519 = vpop.permute.xlu0 %5518
      %5520 = vrot.lane.b32.xlu0 %v5488, 8
      %v5521 = vpop.permute.xlu0 %5520
      %5522 = vrot.lane.b32.xlu0 %v5491, 8
      %v5523 = vpop.permute.xlu0 %5522
      %v5525 = vsel %vm1223, %v5156, %v5413
      %v5527 = vsel %vm1223, %v5157, %v5415
      %v5529 = vsel %vm1223, %v5158, %v5417
      %v5531 = vsel %vm1223, %v5159, %v5419
      %v5533 = vsel %vm1223, %v5160, %v5421
      %v5535 = vsel %vm1223, %v5161, %v5423
      %v5537 = vsel %vm1223, %v5162, %v5425
      %v5539 = vsel %vm1223, %v5163, %v5427
      %v5541 = vsel %vm1223, %v5164, %v5429
      %v5543 = vsel %vm1223, %v5165, %v5431
      %v5545 = vsel %vm1223, %v5166, %v5433
      %v5547 = vsel %vm1223, %v5167, %v5435
      %v5549 = vsel %vm1223, %v5168, %v5437
      %v5551 = vsel %vm1223, %v5169, %v5439
      %v5553 = vsel %vm1223, %v5170, %v5441
      %v5555 = vsel %vm1223, %v5171, %v5443
      %v5557 = vsel %vm1256, %v5525, %v5493
      %v5559 = vsel %vm1256, %v5527, %v5495
      %v5561 = vsel %vm1256, %v5529, %v5497
      %v5563 = vsel %vm1256, %v5531, %v5499
      %v5565 = vsel %vm1256, %v5533, %v5501
      %v5567 = vsel %vm1256, %v5535, %v5503
      %v5569 = vsel %vm1256, %v5537, %v5505
      %v5571 = vsel %vm1256, %v5539, %v5507
      %v5573 = vsel %vm1256, %v5541, %v5509
      %v5575 = vsel %vm1256, %v5543, %v5511
      %v5577 = vsel %vm1256, %v5545, %v5513
      %v5579 = vsel %vm1256, %v5547, %v5515
      %v5581 = vsel %vm1256, %v5549, %v5517
      %v5583 = vsel %vm1256, %v5551, %v5519
      %v5585 = vsel %vm1256, %v5553, %v5521
      %v5587 = vsel %vm1256, %v5555, %v5523
      %s5588 = scalar_lea.vmem %s2, 16
      %v5589 = vld [vmem:[%s5588] sm:$0xf]
      %v5590 = vld [vmem:[%s5588 + $0x4] sm:$0x3]
      %v5593 = vunpack.c.l.b16 %v5589
      %v5594 = vunpack.c.l.b16 %v5590
      %v5595 = vpack.c.b16 %v5594, %v5593
      %v5596 = vsel %vm1843, %v5557, 0
      %v5598 = vsel %vm1843, %v5559, 0
      %v5600 = vsel %vm1843, %v5561, 0
      %v5602 = vsel %vm1843, %v5563, 0
      %v5604 = vsel %vm1843, %v5565, 0
      %v5606 = vsel %vm1843, %v5567, 0
      %v5608 = vsel %vm1843, %v5569, 0
      %v5610 = vsel %vm1843, %v5571, 0
      %v5612 = vsel %vm1843, %v5573, 0
      %v5614 = vsel %vm1843, %v5575, 0
      %v5616 = vsel %vm1843, %v5577, 0
      %v5618 = vsel %vm1843, %v5579, 0
      %v5620 = vsel %vm1843, %v5581, 0
      %v5622 = vsel %vm1843, %v5583, 0
      %v5624 = vsel %vm1843, %v5585, 0
      %v5626 = vsel %vm1843, %v5587, 0
      %v5629 = vsel %vm1876, %v5595, 0
      %5631 = vmatprep.subr.bf16.mxu0 0
      %5632 = vmatpush1.bf16.msra.mxu0 %v5629
      %5633 = vmatprep.subr.bf16.mxu0 0
      %5634 = vmatpush1.bf16.msra.mxu0 0
      %5635 = vmatprep.subr.bf16.mxu0 0
      %5636 = vmatpush1.bf16.msra.mxu0 0
      %5637 = vmatprep.subr.bf16.mxu0 0
      %5638 = vmatpush1.bf16.msra.mxu0 0
      %5639 = vmatprep.subr.bf16.mxu0 0
      %5640 = vmatpush1.bf16.msra.mxu0 0
      %5641 = vmatprep.subr.bf16.mxu0 0
      %5642 = vmatpush1.bf16.msra.mxu0 0
      %5643 = vmatprep.subr.bf16.mxu0 0
      %5644 = vmatpush1.bf16.msra.mxu0 0
      %5645 = vmatprep.subr.bf16.mxu0 0
      %5646 = vmatpush1.bf16.msra.mxu0 0
      %5647 = vmatprep.subr.bf16.mxu0 0
      %5648 = vmatpush1.bf16.msra.mxu0 0
      %5649 = vmatprep.subr.bf16.mxu0 0
      %5650 = vmatpush1.bf16.msra.mxu0 0
      %5651 = vmatprep.subr.bf16.mxu0 0
      %5652 = vmatpush1.bf16.msra.mxu0 0
      %5653 = vmatprep.subr.bf16.mxu0 0
      %5654 = vmatpush1.bf16.msra.mxu0 0
      %5655 = vmatprep.subr.bf16.mxu0 0
      %5656 = vmatpush1.bf16.msra.mxu0 0
      %5657 = vmatprep.subr.bf16.mxu0 0
      %5658 = vmatpush1.bf16.msra.mxu0 0
      %5659 = vmatprep.subr.bf16.mxu0 0
      %5660 = vmatpush1.bf16.msra.mxu0 0
      %5661 = vmatprep.subr.bf16.mxu0 0
      %5662 = vmatpush1.bf16.msra.mxu0 0
      %5663 = vmatprep.mubr.bf16.mxu0 0
      %5664 = vmatmul.mubr.bf16.gmra.mrb[0].mxu0 %v5596
      %v5665 = vpop.f32.mrb[0].mxu0
      %v5666 = vadd.f32 0.0, %v5665
      %v5667 = vpop.f32.mrb[0].mxu0
      %v5668 = vpop.f32.mrb[0].mxu0
      %v5669 = vadd.f32 0.0, %v5668
      %v5670 = vpop.f32.mrb[0].mxu0
      %5671 = vmatprep.mubr.bf16.mxu0 0
      %5672 = vmatmul.mubr.bf16.gmra.mrb[0].mxu0 %v5598
      %v5673 = vpop.f32.mrb[0].mxu0
      %v5674 = vadd.f32 0.0, %v5673
      %v5675 = vpop.f32.mrb[0].mxu0
      %v5676 = vpop.f32.mrb[0].mxu0
      %v5677 = vadd.f32 0.0, %v5676
      %v5678 = vpop.f32.mrb[0].mxu0
      %5679 = vmatprep.mubr.bf16.mxu0 0
      %5680 = vmatmul.mubr.bf16.gmra.mrb[0].mxu0 %v5600
      %v5681 = vpop.f32.mrb[0].mxu0
      %v5682 = vadd.f32 0.0, %v5681
      %v5683 = vpop.f32.mrb[0].mxu0
      %v5684 = vpop.f32.mrb[0].mxu0
      %v5685 = vadd.f32 0.0, %v5684
      %v5686 = vpop.f32.mrb[0].mxu0
      %5687 = vmatprep.mubr.bf16.mxu0 0
      %5688 = vmatmul.mubr.bf16.gmra.mrb[0].mxu0 %v5602
      %v5689 = vpop.f32.mrb[0].mxu0
      %v5690 = vadd.f32 0.0, %v5689
      %v5691 = vpop.f32.mrb[0].mxu0
      %v5692 = vpop.f32.mrb[0].mxu0
      %v5693 = vadd.f32 0.0, %v5692
      %v5694 = vpop.f32.mrb[0].mxu0
      %5695 = vmatprep.mubr.bf16.mxu0 0
      %5696 = vmatmul.mubr.bf16.gmra.mrb[0].mxu0 %v5604
      %v5697 = vpop.f32.mrb[0].mxu0
      %v5698 = vadd.f32 0.0, %v5697
      %v5699 = vpop.f32.mrb[0].mxu0
      %v5700 = vpop.f32.mrb[0].mxu0
      %v5701 = vadd.f32 0.0, %v5700
      %v5702 = vpop.f32.mrb[0].mxu0
      %5703 = vmatprep.mubr.bf16.mxu0 0
      %5704 = vmatmul.mubr.bf16.gmra.mrb[0].mxu0 %v5606
      %v5705 = vpop.f32.mrb[0].mxu0
      %v5706 = vadd.f32 0.0, %v5705
      %v5707 = vpop.f32.mrb[0].mxu0
      %v5708 = vpop.f32.mrb[0].mxu0
      %v5709 = vadd.f32 0.0, %v5708
      %v5710 = vpop.f32.mrb[0].mxu0
      %5711 = vmatprep.mubr.bf16.mxu0 0
      %5712 = vmatmul.mubr.bf16.gmra.mrb[0].mxu0 %v5608
      %v5713 = vpop.f32.mrb[0].mxu0
      %v5714 = vadd.f32 0.0, %v5713
      %v5715 = vpop.f32.mrb[0].mxu0
      %v5716 = vpop.f32.mrb[0].mxu0
      %v5717 = vadd.f32 0.0, %v5716
      %v5718 = vpop.f32.mrb[0].mxu0
      %5719 = vmatprep.mubr.bf16.mxu0 0
      %5720 = vmatmul.mubr.bf16.gmra.mrb[0].mxu0 %v5610
      %v5721 = vpop.f32.mrb[0].mxu0
      %v5722 = vadd.f32 0.0, %v5721
      %v5723 = vpop.f32.mrb[0].mxu0
      %v5724 = vpop.f32.mrb[0].mxu0
      %v5725 = vadd.f32 0.0, %v5724
      %v5726 = vpop.f32.mrb[0].mxu0
      %5727 = vmatprep.mubr.bf16.mxu0 0
      %5728 = vmatmul.mubr.bf16.gmra.mrb[0].mxu0 %v5612
      %v5729 = vpop.f32.mrb[0].mxu0
      %v5730 = vadd.f32 0.0, %v5729
      %v5731 = vpop.f32.mrb[0].mxu0
      %v5732 = vpop.f32.mrb[0].mxu0
      %v5733 = vadd.f32 0.0, %v5732
      %v5734 = vpop.f32.mrb[0].mxu0
      %5735 = vmatprep.mubr.bf16.mxu0 0
      %5736 = vmatmul.mubr.bf16.gmra.mrb[0].mxu0 %v5614
      %v5737 = vpop.f32.mrb[0].mxu0
      %v5738 = vadd.f32 0.0, %v5737
      %v5739 = vpop.f32.mrb[0].mxu0
      %v5740 = vpop.f32.mrb[0].mxu0
      %v5741 = vadd.f32 0.0, %v5740
      %v5742 = vpop.f32.mrb[0].mxu0
      %5743 = vmatprep.mubr.bf16.mxu0 0
      %5744 = vmatmul.mubr.bf16.gmra.mrb[0].mxu0 %v5616
      %v5745 = vpop.f32.mrb[0].mxu0
      %v5746 = vadd.f32 0.0, %v5745
      %v5747 = vpop.f32.mrb[0].mxu0
      %v5748 = vpop.f32.mrb[0].mxu0
      %v5749 = vadd.f32 0.0, %v5748
      %v5750 = vpop.f32.mrb[0].mxu0
      %5751 = vmatprep.mubr.bf16.mxu0 0
      %5752 = vmatmul.mubr.bf16.gmra.mrb[0].mxu0 %v5618
      %v5753 = vpop.f32.mrb[0].mxu0
      %v5754 = vadd.f32 0.0, %v5753
      %v5755 = vpop.f32.mrb[0].mxu0
      %v5756 = vpop.f32.mrb[0].mxu0
      %v5757 = vadd.f32 0.0, %v5756
      %v5758 = vpop.f32.mrb[0].mxu0
      %5759 = vmatprep.mubr.bf16.mxu0 0
      %5760 = vmatmul.mubr.bf16.gmra.mrb[0].mxu0 %v5620
      %v5761 = vpop.f32.mrb[0].mxu0
      %v5762 = vadd.f32 0.0, %v5761
      %v5763 = vpop.f32.mrb[0].mxu0
      %v5764 = vpop.f32.mrb[0].mxu0
      %v5765 = vadd.f32 0.0, %v5764
      %v5766 = vpop.f32.mrb[0].mxu0
      %5767 = vmatprep.mubr.bf16.mxu0 0
      %5768 = vmatmul.mubr.bf16.gmra.mrb[0].mxu0 %v5622
      %v5769 = vpop.f32.mrb[0].mxu0
      %v5770 = vadd.f32 0.0, %v5769
      %v5771 = vpop.f32.mrb[0].mxu0
      %v5772 = vpop.f32.mrb[0].mxu0
      %v5773 = vadd.f32 0.0, %v5772
      %v5774 = vpop.f32.mrb[0].mxu0
      %5775 = vmatprep.mubr.bf16.mxu0 0
      %5776 = vmatmul.mubr.bf16.gmra.mrb[0].mxu0 %v5624
      %v5777 = vpop.f32.mrb[0].mxu0
      %v5778 = vadd.f32 0.0, %v5777
      %v5779 = vpop.f32.mrb[0].mxu0
      %v5780 = vpop.f32.mrb[0].mxu0
      %v5781 = vadd.f32 0.0, %v5780
      %v5782 = vpop.f32.mrb[0].mxu0
      %5783 = vmatprep.mubr.bf16.mxu0 0
      %5784 = vmatmul.mubr.bf16.gmra.mrb[0].mxu0 %v5626
      %v5785 = vpop.f32.mrb[0].mxu0
      %v5786 = vadd.f32 0.0, %v5785
      %v5787 = vpop.f32.mrb[0].mxu0
      %v5788 = vpop.f32.mrb[0].mxu0
      %v5789 = vadd.f32 0.0, %v5788
      %v5790 = vpop.f32.mrb[0].mxu0
      %5791 = vdwg.mxu0
      %v5792 = vadd.f32 %v4918, %v5666
      %v5793 = vadd.f32 %v4921, %v5669
      %v5794 = vadd.f32 %v4926, %v5674
      %v5795 = vadd.f32 %v4929, %v5677
      %v5796 = vadd.f32 %v4934, %v5682
      %v5797 = vadd.f32 %v4937, %v5685
      %v5798 = vadd.f32 %v4942, %v5690
      %v5799 = vadd.f32 %v4945, %v5693
      %v5800 = vadd.f32 %v4950, %v5698
      %v5801 = vadd.f32 %v4953, %v5701
      %v5802 = vadd.f32 %v4958, %v5706
      %v5803 = vadd.f32 %v4961, %v5709
      %v5804 = vadd.f32 %v4966, %v5714
      %v5805 = vadd.f32 %v4969, %v5717
      %v5806 = vadd.f32 %v4974, %v5722
      %v5807 = vadd.f32 %v4977, %v5725
      %v5808 = vadd.f32 %v4982, %v5730
      %v5809 = vadd.f32 %v4985, %v5733
      %v5810 = vadd.f32 %v4990, %v5738
      %v5811 = vadd.f32 %v4993, %v5741
      %v5812 = vadd.f32 %v4998, %v5746
      %v5813 = vadd.f32 %v5001, %v5749
      %v5814 = vadd.f32 %v5006, %v5754
      %v5815 = vadd.f32 %v5009, %v5757
      %v5816 = vadd.f32 %v5014, %v5762
      %v5817 = vadd.f32 %v5017, %v5765
      %v5818 = vadd.f32 %v5022, %v5770
      %v5819 = vadd.f32 %v5025, %v5773
      %v5820 = vadd.f32 %v5030, %v5778
      %v5821 = vadd.f32 %v5033, %v5781
      %v5822 = vadd.f32 %v5038, %v5786
      %v5823 = vadd.f32 %v5041, %v5789
      %v5824 = vld [vmem:[%s5] sm:$0x1]
      %v5826 = vlaneseq
      %v5827 = vshrl.u32 %v5826, 7
      %v5828 = vsub.s32 0, %v5827
      %v5829 = vrot.slane %v5824, %v5828
      %v5831 = vmul.f32 %v5792, %v5829
      %v5832 = vmul.f32 %v5793, %v5829
      %v5833 = vmul.f32 %v5794, %v5829
      %v5834 = vmul.f32 %v5795, %v5829
      %v5835 = vmul.f32 %v5796, %v5829
      %v5836 = vmul.f32 %v5797, %v5829
      %v5837 = vmul.f32 %v5798, %v5829
      %v5838 = vmul.f32 %v5799, %v5829
      %v5839 = vmul.f32 %v5800, %v5829
      %v5840 = vmul.f32 %v5801, %v5829
      %v5841 = vmul.f32 %v5802, %v5829
      %v5842 = vmul.f32 %v5803, %v5829
      %v5843 = vmul.f32 %v5804, %v5829
      %v5844 = vmul.f32 %v5805, %v5829
      %v5845 = vmul.f32 %v5806, %v5829
      %v5846 = vmul.f32 %v5807, %v5829
      %v5847 = vmul.f32 %v5808, %v5829
      %v5848 = vmul.f32 %v5809, %v5829
      %v5849 = vmul.f32 %v5810, %v5829
      %v5850 = vmul.f32 %v5811, %v5829
      %v5851 = vmul.f32 %v5812, %v5829
      %v5852 = vmul.f32 %v5813, %v5829
      %v5853 = vmul.f32 %v5814, %v5829
      %v5854 = vmul.f32 %v5815, %v5829
      %v5855 = vmul.f32 %v5816, %v5829
      %v5856 = vmul.f32 %v5817, %v5829
      %v5857 = vmul.f32 %v5818, %v5829
      %v5858 = vmul.f32 %v5819, %v5829
      %v5859 = vmul.f32 %v5820, %v5829
      %v5860 = vmul.f32 %v5821, %v5829
      %v5861 = vmul.f32 %v5822, %v5829
      %v5862 = vmul.f32 %v5823, %v5829
      %v5863 = vld [vmem:[%s6] sm:$0x1]
      %v5865 = vlaneseq
      %v5866 = vshrl.u32 %v5865, 7
      %v5867 = vsub.s32 0, %v5866
      %v5868 = vrot.slane %v5863, %v5867
      %v5870 = vadd.f32 %v5831, %v5868
      %v5871 = vadd.f32 %v5832, %v5868
      %v5872 = vadd.f32 %v5833, %v5868
      %v5873 = vadd.f32 %v5834, %v5868
      %v5874 = vadd.f32 %v5835, %v5868
      %v5875 = vadd.f32 %v5836, %v5868
      %v5876 = vadd.f32 %v5837, %v5868
      %v5877 = vadd.f32 %v5838, %v5868
      %v5878 = vadd.f32 %v5839, %v5868
      %v5879 = vadd.f32 %v5840, %v5868
      %v5880 = vadd.f32 %v5841, %v5868
      %v5881 = vadd.f32 %v5842, %v5868
      %v5882 = vadd.f32 %v5843, %v5868
      %v5883 = vadd.f32 %v5844, %v5868
      %v5884 = vadd.f32 %v5845, %v5868
      %v5885 = vadd.f32 %v5846, %v5868
      %v5886 = vadd.f32 %v5847, %v5868
      %v5887 = vadd.f32 %v5848, %v5868
      %v5888 = vadd.f32 %v5849, %v5868
      %v5889 = vadd.f32 %v5850, %v5868
      %v5890 = vadd.f32 %v5851, %v5868
      %v5891 = vadd.f32 %v5852, %v5868
      %v5892 = vadd.f32 %v5853, %v5868
      %v5893 = vadd.f32 %v5854, %v5868
      %v5894 = vadd.f32 %v5855, %v5868
      %v5895 = vadd.f32 %v5856, %v5868
      %v5896 = vadd.f32 %v5857, %v5868
      %v5897 = vadd.f32 %v5858, %v5868
      %v5898 = vadd.f32 %v5859, %v5868
      %v5899 = vadd.f32 %v5860, %v5868
      %v5900 = vadd.f32 %v5861, %v5868
      %v5901 = vadd.f32 %v5862, %v5868
      %v5902 = vld [vmem:[%s273] sm:$0xff]
      %v5903 = vld [vmem:[%s273 + $0x8] sm:$0xff]
      %v5904 = vld [vmem:[%s273 + $0x10] sm:$0xff]
      %v5905 = vld [vmem:[%s273 + $0x18] sm:$0xff]
      %v5906 = vld [vmem:[%s273 + $0x20] sm:$0xff]
      %v5907 = vld [vmem:[%s273 + $0x28] sm:$0xff]
      %v5908 = vld [vmem:[%s273 + $0x30] sm:$0xff]
      %v5909 = vld [vmem:[%s273 + $0x38] sm:$0xff]
      %v5910 = vld [vmem:[%s273 + $0x40] sm:$0xff]
      %v5911 = vld [vmem:[%s273 + $0x48] sm:$0xff]
      %v5912 = vld [vmem:[%s273 + $0x50] sm:$0xff]
      %v5913 = vld [vmem:[%s273 + $0x58] sm:$0xff]
      %v5914 = vld [vmem:[%s273 + $0x60] sm:$0xff]
      %v5915 = vld [vmem:[%s273 + $0x68] sm:$0xff]
      %v5916 = vld [vmem:[%s273 + $0x70] sm:$0xff]
      %v5917 = vld [vmem:[%s273 + $0x78] sm:$0xff]
      %v5918 = vld [vmem:[%s273 + $0x80] sm:$0xff]
      %v5919 = vld [vmem:[%s273 + $0x88] sm:$0xff]
      %v5920 = vld [vmem:[%s273 + $0x90] sm:$0xff]
      %v5921 = vld [vmem:[%s273 + $0x98] sm:$0xff]
      %v5922 = vld [vmem:[%s273 + $0xa0] sm:$0xff]
      %v5923 = vld [vmem:[%s273 + $0xa8] sm:$0xff]
      %v5924 = vld [vmem:[%s273 + $0xb0] sm:$0xff]
      %v5925 = vld [vmem:[%s273 + $0xb8] sm:$0xff]
      %v5926 = vld [vmem:[%s273 + $0xc0] sm:$0xff]
      %v5927 = vld [vmem:[%s273 + $0xc8] sm:$0xff]
      %v5928 = vld [vmem:[%s273 + $0xd0] sm:$0xff]
      %v5929 = vld [vmem:[%s273 + $0xd8] sm:$0xff]
      %v5930 = vld [vmem:[%s273 + $0xe0] sm:$0xff]
      %v5931 = vld [vmem:[%s273 + $0xe8] sm:$0xff]
      %v5932 = vld [vmem:[%s273 + $0xf0] sm:$0xff]
      %v5933 = vld [vmem:[%s273 + $0xf8] sm:$0xff]
      %v5934 = vadd.f32 %v5870, %v5902
      %v5935 = vadd.f32 %v5871, %v5903
      %v5936 = vadd.f32 %v5872, %v5904
      %v5937 = vadd.f32 %v5873, %v5905
      %v5938 = vadd.f32 %v5874, %v5906
      %v5939 = vadd.f32 %v5875, %v5907
      %v5940 = vadd.f32 %v5876, %v5908
      %v5941 = vadd.f32 %v5877, %v5909
      %v5942 = vadd.f32 %v5878, %v5910
      %v5943 = vadd.f32 %v5879, %v5911
      %v5944 = vadd.f32 %v5880, %v5912
      %v5945 = vadd.f32 %v5881, %v5913
      %v5946 = vadd.f32 %v5882, %v5914
      %v5947 = vadd.f32 %v5883, %v5915
      %v5948 = vadd.f32 %v5884, %v5916
      %v5949 = vadd.f32 %v5885, %v5917
      %v5950 = vadd.f32 %v5886, %v5918
      %v5951 = vadd.f32 %v5887, %v5919
      %v5952 = vadd.f32 %v5888, %v5920
      %v5953 = vadd.f32 %v5889, %v5921
      %v5954 = vadd.f32 %v5890, %v5922
      %v5955 = vadd.f32 %v5891, %v5923
      %v5956 = vadd.f32 %v5892, %v5924
      %v5957 = vadd.f32 %v5893, %v5925
      %v5958 = vadd.f32 %v5894, %v5926
      %v5959 = vadd.f32 %v5895, %v5927
      %v5960 = vadd.f32 %v5896, %v5928
      %v5961 = vadd.f32 %v5897, %v5929
      %v5962 = vadd.f32 %v5898, %v5930
      %v5963 = vadd.f32 %v5899, %v5931
      %v5964 = vadd.f32 %v5900, %v5932
      %v5965 = vadd.f32 %v5901, %v5933
      %v5966 = vmax.f32 %v5934, 0.0
      %v5967 = vmax.f32 %v5935, 0.0
      %v5968 = vmax.f32 %v5936, 0.0
      %v5969 = vmax.f32 %v5937, 0.0
      %v5970 = vmax.f32 %v5938, 0.0
      %v5971 = vmax.f32 %v5939, 0.0
      %v5972 = vmax.f32 %v5940, 0.0
      %v5973 = vmax.f32 %v5941, 0.0
      %v5974 = vmax.f32 %v5942, 0.0
      %v5975 = vmax.f32 %v5943, 0.0
      %v5976 = vmax.f32 %v5944, 0.0
      %v5977 = vmax.f32 %v5945, 0.0
      %v5978 = vmax.f32 %v5946, 0.0
      %v5979 = vmax.f32 %v5947, 0.0
      %v5980 = vmax.f32 %v5948, 0.0
      %v5981 = vmax.f32 %v5949, 0.0
      %v5982 = vmax.f32 %v5950, 0.0
      %v5983 = vmax.f32 %v5951, 0.0
      %v5984 = vmax.f32 %v5952, 0.0
      %v5985 = vmax.f32 %v5953, 0.0
      %v5986 = vmax.f32 %v5954, 0.0
      %v5987 = vmax.f32 %v5955, 0.0
      %v5988 = vmax.f32 %v5956, 0.0
      %v5989 = vmax.f32 %v5957, 0.0
      %v5990 = vmax.f32 %v5958, 0.0
      %v5991 = vmax.f32 %v5959, 0.0
      %v5992 = vmax.f32 %v5960, 0.0
      %v5993 = vmax.f32 %v5961, 0.0
      %v5994 = vmax.f32 %v5962, 0.0
      %v5995 = vmax.f32 %v5963, 0.0
      %v5996 = vmax.f32 %v5964, 0.0
      %v5997 = vmax.f32 %v5965, 0.0
      %5998 = vst.msk [vmem:[%s278] sm:$0xff] %vm1223, %v5966
      %5999 = vst.msk [vmem:[%s278 + $0x8] sm:$0xff] %vm1223, %v5967
      %6000 = vst.msk [vmem:[%s278 + $0x10] sm:$0xff] %vm1223, %v5968
      %6001 = vst.msk [vmem:[%s278 + $0x18] sm:$0xff] %vm1223, %v5969
      %6002 = vst.msk [vmem:[%s278 + $0x20] sm:$0xff] %vm1223, %v5970
      %6003 = vst.msk [vmem:[%s278 + $0x28] sm:$0xff] %vm1223, %v5971
      %6004 = vst.msk [vmem:[%s278 + $0x30] sm:$0xff] %vm1223, %v5972
      %6005 = vst.msk [vmem:[%s278 + $0x38] sm:$0xff] %vm1223, %v5973
      %6006 = vst.msk [vmem:[%s278 + $0x40] sm:$0xff] %vm1223, %v5974
      %6007 = vst.msk [vmem:[%s278 + $0x48] sm:$0xff] %vm1223, %v5975
      %6008 = vst.msk [vmem:[%s278 + $0x50] sm:$0xff] %vm1223, %v5976
      %6009 = vst.msk [vmem:[%s278 + $0x58] sm:$0xff] %vm1223, %v5977
      %6010 = vst.msk [vmem:[%s278 + $0x60] sm:$0xff] %vm1223, %v5978
      %6011 = vst.msk [vmem:[%s278 + $0x68] sm:$0xff] %vm1223, %v5979
      %6012 = vst.msk [vmem:[%s278 + $0x70] sm:$0xff] %vm1223, %v5980
      %6013 = vst.msk [vmem:[%s278 + $0x78] sm:$0xff] %vm1223, %v5981
      %6014 = vst.msk [vmem:[%s278 + $0x80] sm:$0xff] %vm1223, %v5982
      %6015 = vst.msk [vmem:[%s278 + $0x88] sm:$0xff] %vm1223, %v5983
      %6016 = vst.msk [vmem:[%s278 + $0x90] sm:$0xff] %vm1223, %v5984
      %6017 = vst.msk [vmem:[%s278 + $0x98] sm:$0xff] %vm1223, %v5985
      %6018 = vst.msk [vmem:[%s278 + $0xa0] sm:$0xff] %vm1223, %v5986
      %6019 = vst.msk [vmem:[%s278 + $0xa8] sm:$0xff] %vm1223, %v5987
      %6020 = vst.msk [vmem:[%s278 + $0xb0] sm:$0xff] %vm1223, %v5988
      %6021 = vst.msk [vmem:[%s278 + $0xb8] sm:$0xff] %vm1223, %v5989
      %6022 = vst.msk [vmem:[%s278 + $0xc0] sm:$0xff] %vm1223, %v5990
      %6023 = vst.msk [vmem:[%s278 + $0xc8] sm:$0xff] %vm1223, %v5991
      %6024 = vst.msk [vmem:[%s278 + $0xd0] sm:$0xff] %vm1223, %v5992
      %6025 = vst.msk [vmem:[%s278 + $0xd8] sm:$0xff] %vm1223, %v5993
      %6026 = vst.msk [vmem:[%s278 + $0xe0] sm:$0xff] %vm1223, %v5994
      %6027 = vst.msk [vmem:[%s278 + $0xe8] sm:$0xff] %vm1223, %v5995
      %6028 = vst.msk [vmem:[%s278 + $0xf0] sm:$0xff] %vm1223, %v5996
      %6029 = vst.msk [vmem:[%s278 + $0xf8] sm:$0xff] %vm1223, %v5997
      %p6030 = scmp.lt.s32.totalorder %s18, 1
      %s6031 = scalar_select %p6030, %s18, 1
      %s6032 = smul.addr %s6031, 32
      %s6033 = smul.addr %s6032, 8
      %s6034 = scalar_lea.vmem %s7, %s6033
      // Predicated region
      $region49: #{tpu_custom_call.1} parent=47 // pred_check
        %p6035 = pneg %p188
      $region50: #{tpu_custom_call.1} parent=47 // pred_check_branch
        %6037 = sbr.rel (%p6035) target = $region52
      $region51: #{tpu_custom_call.1} parent=47 // pred_region
        _
      $region52: #{tpu_custom_call.1} parent=47 // pred_fallthru
        _
    $region48: #{tpu_custom_call.1} parent=5 // pred_fallthru
      _
    %p6038 = scmp.le.s32.totalorder 2, %s13
    // Predicated region
    $region53: #{tpu_custom_call.1} parent=5 // pred_check
      %p6039 = pneg %p6038
    $region54: #{tpu_custom_call.1} parent=5 // pred_check_branch
      %6041 = sbr.rel (%p6039) target = $region56
    $region55: #{tpu_custom_call.1} parent=5 // pred_region
      %s6042 = ssub.s32 %s13, 2
      // Predicated region
      $region57: #{tpu_custom_call.1} parent=55 // pred_check
        %p6043 = pneg %p194
      $region58: #{tpu_custom_call.1} parent=55 // pred_check_branch
        %6045 = sbr.rel (%p6043) target = $region60
      $region59: #{tpu_custom_call.1} parent=55 // pred_region
        %p6046 = scmp.lt.s32.totalorder %s19, 1
        %s6047 = scalar_select %p6046, %s19, 1
        %s6048 = smul.addr %s6047, 32
        %s6049 = smul.addr %s6048, 8
        %s6050 = scalar_lea.vmem %s7, %s6049
      $region60: #{tpu_custom_call.1} parent=55 // pred_fallthru
        _
    $region56: #{tpu_custom_call.1} parent=5 // pred_fallthru
      _
  $region6: #{tpu_custom_call.1} parent=0 // loop_footer
    %s17 = sadd.s32 1, %s13
  $region7: #{tpu_custom_call.1} parent=0 // loop_footer_branch
    %12 = sbr.rel target = $region3
  $region8: #{tpu_custom_call.1} parent=0 // loop_exit
    _

</llo_original>
